<compile_context>
chip_gen: v7x
topology: tpu7x:2x2x1
jax: 0.10.0
libtpu: 0.0.40
codegen_flags: <defaults>
</compile_context>

<pallas_src>
import functools
import math

import numpy as np
import jax
import jax.numpy as jnp
from jax import lax
from jax.experimental import pallas as pl
from jax.experimental.pallas import tpu as pltpu

# ---------------- config (small synthetic SSD) ----------------
IMG_C, IMG_H, IMG_W = 3, 32, 32          # image_chw shape
C1, C2 = 16, 32                          # backbone channels
NUM_CLASSES = 4                          # classes (incl. background)
FEAT = IMG_H // 2                        # 16x16 feature map after stride-2 conv
P = FEAT * FEAT                          # 256 priors
NUM_HEAD_CH = 4 + NUM_CLASSES            # fused loc(4) + cls(C) head channels = 8
SCALE_XY, SCALE_WH = 0.1, 0.2            # SSD box-decode scales
WH_CLAMP = math.log(1000.0)              # clamp before exp (avoid overflow)
HHALF = IMG_H // 2                       # 16 rows per parity buffer
N_IMG = IMG_W * IMG_C                    # 96  lanes of the preprocessed image rows
N_C1 = IMG_W * C1                        # 512 lanes of the conv1 feature rows
N_C2 = FEAT * C2                         # 512 lanes of the conv2 feature rows


# ======================= Pallas kernel =======================

def _fused_ssd_kernel(img_ref, pre_ref, sel_ref, shift_ref,
                      bw1_ref, bb1_ref, bw2_ref, bb2_ref, bwh_ref, bbh_ref,
                      dbox_ref, perm_ref,
                      boxes_ref, probs_ref,
                      f0e, f0o, f1e, f1o, f2):
    """preprocess + conv1(s1) + conv2(s2) + fused head + SSD postprocess, all in VMEM.

    Feature maps live as (row, col*C) matrices, rows split by parity so conv2's
    row stride-2 needs only static sublane slices.  Each 3x3 conv is 3 MXU
    matmuls (one per kernel row) against block-banded bf16 weights with the
    column taps / zero-padding / column stride folded in (interior output
    columns only, N = 512 / 512 / 128).  Layout changes (CHW->HWC, row parity,
    channel-block -> prior-major output) are exact f32 permutation matmuls.
    """
    bf16 = jnp.bfloat16
    f32 = jnp.float32
    F = FEAT
    H2 = HHALF

    def mm(a, w):
        return jnp.dot(a, w, preferred_element_type=f32)

    # ---- preprocess: CHW->HWC interleave (scale folded in) + row-parity split ----
    # hwc[r, col*3+c] = image[c, r, col] / (255*std[c])
    hwc = (mm(img_ref[0], pre_ref[0]) + mm(img_ref[1], pre_ref[1])
           + mm(img_ref[2], pre_ref[2]))                       # (32, 96) f32
    shift = shift_ref[...]
    zero_img = jnp.zeros((1, N_IMG), f32)
    f0e[0:1, :] = zero_img                                     # pad row (image row -1)
    f0o[H2:H2 + 1, :] = zero_img                               # pad row (image row 32)
    f0o[0:H2, :] = mm(sel_ref[0], hwc) + shift                 # even image rows 0,2,..,30
    f0e[1:H2 + 1, :] = mm(sel_ref[1], hwc) + shift             # odd  image rows 1,3,..,31

    # ---- conv1: 3x3, stride 1, 3 -> 16, ReLU (per output-row parity) ----
    x_e0 = f0e[0:H2, :].astype(bf16)
    x_e1 = f0e[1:H2 + 1, :].astype(bf16)
    x_o0 = f0o[0:H2, :].astype(bf16)
    x_o1 = f0o[1:H2 + 1, :].astype(bf16)
    b1 = bb1_ref[...]
    y_even = jnp.maximum(mm(x_e0, bw1_ref[0]) + mm(x_o0, bw1_ref[1])
                         + mm(x_e1, bw1_ref[2]) + b1, 0.0)     # output rows 0,2,..,30
    y_odd = jnp.maximum(mm(x_o0, bw1_ref[0]) + mm(x_e1, bw1_ref[1])
                        + mm(x_o1, bw1_ref[2]) + b1, 0.0)      # output rows 1,3,..,31
    f1e[0:1, :] = jnp.zeros((1, N_C1), f32)                    # pad row (-1)
    f1e[1:H2 + 1, :] = y_odd
    f1o[...] = y_even                                          # no pad row needed

    # ---- conv2: 3x3, stride 2, 16 -> 32, ReLU (row stride == parity slicing) ----
    a0 = f1e[0:H2, :].astype(bf16)          # rows -1,1,3,..,29  (kernel row 0)
    a1 = f1o[...].astype(bf16)              # rows  0,2,4,..,30  (kernel row 1)
    a2 = f1e[1:H2 + 1, :].astype(bf16)      # rows  1,3,5,..,31  (kernel row 2)
    y2 = jnp.maximum(mm(a0, bw2_ref[0]) + mm(a1, bw2_ref[1]) + mm(a2, bw2_ref[2])
                     + bb2_ref[...], 0.0)
    zero_c2 = jnp.zeros((1, N_C2), f32)
    f2[0:1, :] = zero_c2                                       # pad row (-1)
    f2[F + 1:F + 2, :] = zero_c2                               # pad row (16)
    f2[1:F + 1, :] = y2

    # ---- fused loc+cls head: 3x3, stride 1, 32 -> 8, lane = channel*16 + col ----
    h0 = f2[0:F, :].astype(bf16)
    h1 = f2[1:F + 1, :].astype(bf16)
    h2 = f2[2:F + 2, :].astype(bf16)
    heads = (mm(h0, bwh_ref[0]) + mm(h1, bwh_ref[1]) + mm(h2, bwh_ref[2])
             + bbh_ref[...])                                   # (16, 128) f32

    # ---- SSD postprocess: box decode + 4-class softmax (channel-block layout) ----
    d = dbox_ref[...]                                          # (16, 64): cx|cy|w|h
    dx, dy = heads[:, 0:F], heads[:, F:2 * F]
    dw, dh = heads[:, 2 * F:3 * F], heads[:, 3 * F:4 * F]
    d_cx, d_cy = d[:, 0:F], d[:, F:2 * F]
    d_w, d_h = d[:, 2 * F:3 * F], d[:, 3 * F:4 * F]
    px = dx * SCALE_XY * d_w + d_cx
    py = dy * SCALE_XY * d_h + d_cy
    pw = jnp.exp(jnp.minimum(dw * SCALE_WH, WH_CLAMP)) * d_w
    ph = jnp.exp(jnp.minimum(dh * SCALE_WH, WH_CLAMP)) * d_h
    xl, yt = px - 0.5 * pw, py - 0.5 * ph
    xr, yb = px + 0.5 * pw, py + 0.5 * ph

    s0, s1 = heads[:, 4 * F:5 * F], heads[:, 5 * F:6 * F]
    s2, s3 = heads[:, 6 * F:7 * F], heads[:, 7 * F:8 * F]
    m = jnp.maximum(jnp.maximum(s0, s1), jnp.maximum(s2, s3))
    e0, e1 = jnp.exp(s0 - m), jnp.exp(s1 - m)
    e2, e3 = jnp.exp(s2 - m), jnp.exp(s3 - m)
    inv = 1.0 / (e0 + e1 + e2 + e3)                            # exact softmax denominator
    p0, p1, p2, p3 = e0 * inv, e1 * inv, e2 * inv, e3 * inv

    # ---- channel-block (c*16+col) -> prior-major (col*4+c) via exact f32 perm matmuls
    # so the wrapper needs only FREE reshapes (no XLA transpose epilogue).
    pm = perm_ref[...]
    boxes_ref[...] = (mm(xl, pm[0:F, :]) + mm(yt, pm[F:2 * F, :])
                      + mm(xr, pm[2 * F:3 * F, :]) + mm(yb, pm[3 * F:4 * F, :]))
    probs_ref[...] = (mm(p0, pm[0:F, :]) + mm(p1, pm[F:2 * F, :])
                      + mm(p2, pm[2 * F:3 * F, :]) + mm(p3, pm[3 * F:4 * F, :]))


# ======================= wrapper =======================

def torchscript_part_forward(image_chw, params):
    """Mirrors TorchScriptPart.forward: preprocess -> detector -> postprocess,
    fused into a single Pallas kernel."""
    vmem = pltpu.MemorySpace.VMEM
    boxes_il, probs_il = pl.pallas_call(
        _fused_ssd_kernel,
        out_shape=(jax.ShapeDtypeStruct((FEAT, 4 * FEAT), jnp.float32),
                   jax.ShapeDtypeStruct((FEAT, NUM_CLASSES * FEAT), jnp.float32)),
        in_specs=[pl.BlockSpec(memory_space=vmem)] * 12,
        out_specs=(pl.BlockSpec(memory_space=vmem),
                   pl.BlockSpec(memory_space=vmem)),
        scratch_shapes=[
            pltpu.VMEM((HHALF + 1, N_IMG), jnp.float32),   # f0e: odd image rows (+top pad)
            pltpu.VMEM((HHALF + 1, N_IMG), jnp.float32),   # f0o: even image rows (+bot pad)
            pltpu.VMEM((HHALF + 1, N_C1), jnp.float32),    # f1e: odd conv1 rows (+top pad)
            pltpu.VMEM((HHALF, N_C1), jnp.float32),        # f1o: even conv1 rows
            pltpu.VMEM((FEAT + 2, N_C2), jnp.float32),     # f2 : conv2 rows (+row pads)
        ],
        cost_estimate=pl.CostEstimate(flops=4_600_000, transcendentals=1_536,
                                      bytes_accessed=2_400_000),
    )(image_chw, params["pre"], params["sel"], params["shift_row"],
      params["bw1"], params["bb1"], params["bw2"], params["bb2"],
      params["bwh"], params["bbh"], params["dbox_cblk"], params["perm"])

    # lane order is already prior-major (p*4 + c): reshapes below are free bitcasts.
    boxes = boxes_il.reshape(1, P, 4)
    probs = probs_il.reshape(1, P, NUM_CLASSES)
    return boxes, probs


# ======================= weight construction =======================

def _banded_conv(kw, w_in, w_out, stride):
    """(3,3,cin,cout) conv kernel -> 3 block-banded mats (w_in*cin, w_out*cout).
    Interior output columns only; taps that read a pad column are dropped."""
    kh, kwid, cin, cout = kw.shape
    mats = np.zeros((kh, w_in * cin, w_out * cout), np.float32)
    for d in range(kh):
        for dj in range(kwid):
            for wo in range(w_out):
                wi = stride * wo + dj - 1
                if 0 <= wi < w_in:
                    mats[d, wi * cin:(wi + 1) * cin, wo * cout:(wo + 1) * cout] = kw[d, dj]
    return mats


def _banded_head(kw, w_in, w_out):
    """Head conv -> banded mats with output lane = channel * w_out + col."""
    kh, kwid, cin, cout = kw.shape
    mats = np.zeros((kh, w_in * cin, cout * w_out), np.float32)
    for d in range(kh):
        for dj in range(kwid):
            for oj in range(w_out):
                wi = oj + dj - 1
                if 0 <= wi < w_in:
                    for k in range(cout):
                        mats[d, wi * cin:(wi + 1) * cin, k * w_out + oj] = kw[d, dj, :, k]
    return mats


def make_dbox_cblk(fh, fw):
    """Default boxes in channel-block layout (fh, 4*fw): lanes = [cx | cy | w | h]."""
    ys = (np.arange(fh, dtype=np.float32) + 0.5) / fh
    xs = (np.arange(fw, dtype=np.float32) + 0.5) / fw
    cx = np.tile(xs[None, :], (fh, 1))
    cy = np.tile(ys[:, None], (1, fw))
    w = np.full((fh, fw), 0.2, np.float32)
    h = np.full((fh, fw), 0.2, np.float32)
    return np.concatenate([cx, cy, w, h], axis=1).astype(np.float32)


def make_dboxes_planar(fh, fw):
    ys = (np.arange(fh, dtype=np.float32) + 0.5) / fh
    xs = (np.arange(fw, dtype=np.float32) + 0.5) / fw
    cy, cx = np.meshgrid(ys, xs, indexing="ij")
    w = np.full_like(cx, 0.2)
    h = np.full_like(cx, 0.2)
    return np.stack([cx.ravel(), cy.ravel(), w.ravel(), h.ravel()], axis=0)   # (4, P)


def init_params():
    rng = np.random.RandomState(42)

    def kern(cin, cout):
        return (rng.randn(3, 3, cin, cout) / np.sqrt(9.0 * cin)).astype(np.float32)

    def bias(cout):
        return (0.1 * rng.randn(cout)).astype(np.float32)

    k1, b1 = kern(IMG_C, C1), bias(C1)
    k2, b2 = kern(C1, C2), bias(C2)
    kloc, bloc = kern(C2, 4), bias(4)
    kcls, bcls = kern(C2, NUM_CLASSES), bias(NUM_CLASSES)
    kh = np.concatenate([kloc, kcls], axis=-1)               # fused head (3,3,C2,8)
    bh = np.concatenate([bloc, bcls]).astype(np.float32)

    mean = np.array([0.485, 0.456, 0.406], np.float32)
    std = np.array([0.229, 0.224, 0.225], np.float32)

    # CHW->HWC interleave matrices with the 1/(255*std) scale folded in
    pre = np.zeros((IMG_C, IMG_W, N_IMG), np.float32)
    for c in range(IMG_C):
        for j in range(IMG_W):
            pre[c, j, j * IMG_C + c] = 1.0 / (255.0 * std[c])
    shift_row = np.tile((-mean / std).astype(np.float32), IMG_W)[None, :]   # (1, 96)

    # even/odd image-row selection matrices (row-parity split on the MXU)
    sel = np.zeros((2, HHALF, IMG_H), np.float32)
    for i in range(HHALF):
        sel[0, i, 2 * i] = 1.0
        sel[1, i, 2 * i + 1] = 1.0

    # channel-block (c*16+col) -> prior-major (col*4+c) lane permutation
    perm = np.zeros((4 * FEAT, FEAT * 4), np.float32)
    for c in range(4):
        for oj in range(FEAT):
            perm[c * FEAT + oj, oj * 4 + c] = 1.0

    return {
        "pre": jnp.asarray(pre),
        "sel": jnp.asarray(sel),
        "shift_row": jnp.asarray(shift_row),
        # block-banded conv weights in bf16 for the MXU; biases/accumulation in f32
        "bw1": jnp.asarray(_banded_conv(k1, IMG_W, IMG_W, 1), dtype=jnp.bfloat16),
        "bb1": jnp.asarray(np.tile(b1, IMG_W)[None, :].astype(np.float32)),
        "bw2": jnp.asarray(_banded_conv(k2, IMG_W, FEAT, 2), dtype=jnp.bfloat16),
        "bb2": jnp.asarray(np.tile(b2, FEAT)[None, :].astype(np.float32)),
        "bwh": jnp.asarray(_banded_head(kh, FEAT, FEAT), dtype=jnp.bfloat16),
        "bbh": jnp.asarray(np.repeat(bh, FEAT)[None, :].astype(np.float32)),
        "dbox_cblk": jnp.asarray(make_dbox_cblk(FEAT, FEAT)),
        "perm": jnp.asarray(perm),
        # original kernels kept only for the pure-JAX reference check
        "k1": jnp.asarray(k1), "b1": jnp.asarray(b1),
        "k2": jnp.asarray(k2), "b2": jnp.asarray(b2),
        "kh": jnp.asarray(kh), "bh": jnp.asarray(bh),
        "mean": jnp.asarray(mean), "std": jnp.asarray(std),
        "dboxes_planar": jnp.asarray(make_dboxes_planar(FEAT, FEAT)),
    }


# ======================= pure-JAX reference =======================

def reference_forward(image_chw, params):
    f32 = jnp.float32
    bf = lambda v: v.astype(jnp.bfloat16).astype(f32)   # mimic kernel's bf16 MXU operands
    sc = (1.0 / (255.0 * params["std"]))[:, None, None]
    sh = (-params["mean"] / params["std"])[:, None, None]
    x = (image_chw.astype(f32) * sc + sh)[None]          # (1, 3, 32, 32) NCHW

    def conv(v, k, b, stride):
        y = lax.conv_general_dilated(bf(v), bf(k), (stride, stride), ((1, 1), (1, 1)),
                                     dimension_numbers=("NCHW", "HWIO", "NCHW"),
                                     precision=lax.Precision.HIGHEST)
        return y + b[None, :, None, None]

    f = jax.nn.relu(conv(x, params["k1"], params["b1"], 1))
    f = jax.nn.relu(conv(f, params["k2"], params["b2"], 2))
    h = conv(f, params["kh"], params["bh"], 1).reshape(NUM_HEAD_CH, P)
    locs, labels = h[:4], h[4:]
    d = params["dboxes_planar"]
    px = locs[0] * SCALE_XY * d[2] + d[0]
    py = locs[1] * SCALE_XY * d[3] + d[1]
    pw = jnp.exp(jnp.minimum(locs[2] * SCALE_WH, WH_CLAMP)) * d[2]
    ph = jnp.exp(jnp.minimum(locs[3] * SCALE_WH, WH_CLAMP)) * d[3]
    boxes = jnp.stack([px - 0.5 * pw, py - 0.5 * ph, px + 0.5 * pw, py + 0.5 * ph], axis=-1)
    probs = jax.nn.softmax(labels, axis=0).T
    return boxes[None], probs[None]


# ======================= main =======================

if __name__ == "__main__":
    params = init_params()
    key = jax.random.PRNGKey(0)
    image_chw = jax.random.uniform(key, (IMG_C, IMG_H, IMG_W), jnp.float32,
                                   minval=0.0, maxval=255.0)

    fwd = jax.jit(functools.partial(torchscript_part_forward, params=params))
    boxes, probs = fwd(image_chw)
    jax.block_until_ready((boxes, probs))

    assert boxes.shape == (1, P, 4) and probs.shape == (1, P, NUM_CLASSES)
    assert bool(jnp.all(jnp.isfinite(boxes))) and bool(jnp.all(jnp.isfinite(probs)))

    # numerical check of the fused Pallas pipeline against a lax.conv reference
    ref_boxes, ref_probs = jax.jit(
        functools.partial(reference_forward, params=params))(image_chw)
    np.testing.assert_allclose(np.asarray(boxes), np.asarray(ref_boxes),
                               rtol=2e-2, atol=2e-2)
    np.testing.assert_allclose(np.asarray(probs), np.asarray(ref_probs),
                               rtol=2e-2, atol=2e-2)

    print("KERNEL_OK")
</pallas_src>

<mosaic_0001>
module attributes {stable_mosaic.version = 11 : i64} {
  func.func @_fused_ssd_kernel(%arg0: memref<3x32x32xf32, #tpu.memory_space<vmem>>, %arg1: memref<3x32x96xf32, #tpu.memory_space<vmem>>, %arg2: memref<2x16x32xf32, #tpu.memory_space<vmem>>, %arg3: memref<1x96xf32, #tpu.memory_space<vmem>>, %arg4: memref<3x96x512xbf16, #tpu.memory_space<vmem>>, %arg5: memref<1x512xf32, #tpu.memory_space<vmem>>, %arg6: memref<3x512x512xbf16, #tpu.memory_space<vmem>>, %arg7: memref<1x512xf32, #tpu.memory_space<vmem>>, %arg8: memref<3x512x128xbf16, #tpu.memory_space<vmem>>, %arg9: memref<1x128xf32, #tpu.memory_space<vmem>>, %arg10: memref<16x64xf32, #tpu.memory_space<vmem>>, %arg11: memref<64x64xf32, #tpu.memory_space<vmem>>, %arg12: memref<16x64xf32, #tpu.memory_space<vmem>>, %arg13: memref<16x64xf32, #tpu.memory_space<vmem>>, %arg14: memref<17x96xf32, #tpu.memory_space<vmem>>, %arg15: memref<17x96xf32, #tpu.memory_space<vmem>>, %arg16: memref<17x512xf32, #tpu.memory_space<vmem>>, %arg17: memref<16x512xf32, #tpu.memory_space<vmem>>, %arg18: memref<18x512xf32, #tpu.memory_space<vmem>>) attributes {dimension_semantics = [], scalar_prefetch = 0 : i64, scratch_operands = 5 : i64, tpu.core_type = #tpu.core_type<tc>} {
    %c0 = arith.constant 0 : index
    %c0_0 = arith.constant 0 : index
    %c0_1 = arith.constant 0 : index
    %0 = vector.load %arg0[%c0, %c0_0, %c0_1] : memref<3x32x32xf32, #tpu.memory_space<vmem>>, vector<1x32x32xf32>
    %1 = vector.shape_cast %0 : vector<1x32x32xf32> to vector<32x32xf32>
    %c0_2 = arith.constant 0 : index
    %c0_3 = arith.constant 0 : index
    %c0_4 = arith.constant 0 : index
    %2 = vector.load %arg1[%c0_2, %c0_3, %c0_4] : memref<3x32x96xf32, #tpu.memory_space<vmem>>, vector<1x32x96xf32>
    %3 = vector.shape_cast %2 : vector<1x32x96xf32> to vector<32x96xf32>
    %cst = arith.constant dense<0.000000e+00> : vector<32x96xf32>
    %4 = tpu.matmul %1, %3, %cst {dimension_numbers = #tpu.dot_dimension_numbers<[1], [0], [0], [1], [0, 0, 1, 1], [], []>} : vector<32x32xf32>, vector<32x96xf32>, vector<32x96xf32> -> vector<32x96xf32>
    %c1 = arith.constant 1 : index
    %c0_5 = arith.constant 0 : index
    %c0_6 = arith.constant 0 : index
    %5 = vector.load %arg0[%c1, %c0_5, %c0_6] : memref<3x32x32xf32, #tpu.memory_space<vmem>>, vector<1x32x32xf32>
    %6 = vector.shape_cast %5 : vector<1x32x32xf32> to vector<32x32xf32>
    %c1_7 = arith.constant 1 : index
    %c0_8 = arith.constant 0 : index
    %c0_9 = arith.constant 0 : index
    %7 = vector.load %arg1[%c1_7, %c0_8, %c0_9] : memref<3x32x96xf32, #tpu.memory_space<vmem>>, vector<1x32x96xf32>
    %8 = vector.shape_cast %7 : vector<1x32x96xf32> to vector<32x96xf32>
    %cst_10 = arith.constant dense<0.000000e+00> : vector<32x96xf32>
    %9 = tpu.matmul %6, %8, %cst_10 {dimension_numbers = #tpu.dot_dimension_numbers<[1], [0], [0], [1], [0, 0, 1, 1], [], []>} : vector<32x32xf32>, vector<32x96xf32>, vector<32x96xf32> -> vector<32x96xf32>
    %10 = arith.addf %4, %9 : vector<32x96xf32>
    %c2 = arith.constant 2 : index
    %c0_11 = arith.constant 0 : index
    %c0_12 = arith.constant 0 : index
    %11 = vector.load %arg0[%c2, %c0_11, %c0_12] : memref<3x32x32xf32, #tpu.memory_space<vmem>>, vector<1x32x32xf32>
    %12 = vector.shape_cast %11 : vector<1x32x32xf32> to vector<32x32xf32>
    %c2_13 = arith.constant 2 : index
    %c0_14 = arith.constant 0 : index
    %c0_15 = arith.constant 0 : index
    %13 = vector.load %arg1[%c2_13, %c0_14, %c0_15] : memref<3x32x96xf32, #tpu.memory_space<vmem>>, vector<1x32x96xf32>
    %14 = vector.shape_cast %13 : vector<1x32x96xf32> to vector<32x96xf32>
    %cst_16 = arith.constant dense<0.000000e+00> : vector<32x96xf32>
    %15 = tpu.matmul %12, %14, %cst_16 {dimension_numbers = #tpu.dot_dimension_numbers<[1], [0], [0], [1], [0, 0, 1, 1], [], []>} : vector<32x32xf32>, vector<32x96xf32>, vector<32x96xf32> -> vector<32x96xf32>
    %16 = arith.addf %10, %15 : vector<32x96xf32>
    %c0_17 = arith.constant 0 : index
    %c0_18 = arith.constant 0 : index
    %17 = vector.load %arg3[%c0_17, %c0_18] : memref<1x96xf32, #tpu.memory_space<vmem>>, vector<1x96xf32>
    %cst_19 = arith.constant 0.000000e+00 : f32
    %18 = vector.broadcast %cst_19 : f32 to vector<1x96xf32>
    %c0_20 = arith.constant 0 : index
    %c0_21 = arith.constant 0 : index
    %19 = vector.load %arg14[%c0_20, %c0_21] : memref<17x96xf32, #tpu.memory_space<vmem>>, vector<1x96xf32>
    tpu.vector_store %arg14[%c0_20, %c0_21], %18 {strides = array<i32>} : memref<17x96xf32, #tpu.memory_space<vmem>>, vector<1x96xf32>,
    %c16 = arith.constant 16 : index
    %c0_22 = arith.constant 0 : index
    %20 = vector.load %arg15[%c16, %c0_22] : memref<17x96xf32, #tpu.memory_space<vmem>>, vector<1x96xf32>
    tpu.vector_store %arg15[%c16, %c0_22], %18 {strides = array<i32>} : memref<17x96xf32, #tpu.memory_space<vmem>>, vector<1x96xf32>,
    %c0_23 = arith.constant 0 : index
    %c0_24 = arith.constant 0 : index
    %c0_25 = arith.constant 0 : index
    %21 = vector.load %arg2[%c0_23, %c0_24, %c0_25] : memref<2x16x32xf32, #tpu.memory_space<vmem>>, vector<1x16x32xf32>
    %22 = vector.shape_cast %21 : vector<1x16x32xf32> to vector<16x32xf32>
    %cst_26 = arith.constant dense<0.000000e+00> : vector<16x96xf32>
    %23 = tpu.matmul %22, %16, %cst_26 {dimension_numbers = #tpu.dot_dimension_numbers<[1], [0], [0], [1], [0, 0, 1, 1], [], []>} : vector<16x32xf32>, vector<32x96xf32>, vector<16x96xf32> -> vector<16x96xf32>
    %24 = vector.broadcast %17 : vector<1x96xf32> to vector<16x96xf32>
    %25 = arith.addf %23, %24 : vector<16x96xf32>
    %c0_27 = arith.constant 0 : index
    %c0_28 = arith.constant 0 : index
    %26 = vector.load %arg15[%c0_27, %c0_28] : memref<17x96xf32, #tpu.memory_space<vmem>>, vector<16x96xf32>
    tpu.vector_store %arg15[%c0_27, %c0_28], %25 {strides = array<i32>} : memref<17x96xf32, #tpu.memory_space<vmem>>, vector<16x96xf32>,
    %c1_29 = arith.constant 1 : index
    %c0_30 = arith.constant 0 : index
    %c0_31 = arith.constant 0 : index
    %27 = vector.load %arg2[%c1_29, %c0_30, %c0_31] : memref<2x16x32xf32, #tpu.memory_space<vmem>>, vector<1x16x32xf32>
    %28 = vector.shape_cast %27 : vector<1x16x32xf32> to vector<16x32xf32>
    %cst_32 = arith.constant dense<0.000000e+00> : vector<16x96xf32>
    %29 = tpu.matmul %28, %16, %cst_32 {dimension_numbers = #tpu.dot_dimension_numbers<[1], [0], [0], [1], [0, 0, 1, 1], [], []>} : vector<16x32xf32>, vector<32x96xf32>, vector<16x96xf32> -> vector<16x96xf32>
    %30 = vector.broadcast %17 : vector<1x96xf32> to vector<16x96xf32>
    %31 = arith.addf %29, %30 : vector<16x96xf32>
    %c1_33 = arith.constant 1 : index
    %c0_34 = arith.constant 0 : index
    %32 = vector.load %arg14[%c1_33, %c0_34] : memref<17x96xf32, #tpu.memory_space<vmem>>, vector<16x96xf32>
    tpu.vector_store %arg14[%c1_33, %c0_34], %31 {strides = array<i32>} : memref<17x96xf32, #tpu.memory_space<vmem>>, vector<16x96xf32>,
    %c0_35 = arith.constant 0 : index
    %c0_36 = arith.constant 0 : index
    %33 = vector.load %arg14[%c0_35, %c0_36] : memref<17x96xf32, #tpu.memory_space<vmem>>, vector<16x96xf32>
    %34 = arith.truncf %33 : vector<16x96xf32> to vector<16x96xbf16>
    %c1_37 = arith.constant 1 : index
    %c0_38 = arith.constant 0 : index
    %35 = vector.load %arg14[%c1_37, %c0_38] : memref<17x96xf32, #tpu.memory_space<vmem>>, vector<16x96xf32>
    %36 = arith.truncf %35 : vector<16x96xf32> to vector<16x96xbf16>
    %c0_39 = arith.constant 0 : index
    %c0_40 = arith.constant 0 : index
    %37 = vector.load %arg15[%c0_39, %c0_40] : memref<17x96xf32, #tpu.memory_space<vmem>>, vector<16x96xf32>
    %38 = arith.truncf %37 : vector<16x96xf32> to vector<16x96xbf16>
    %c1_41 = arith.constant 1 : index
    %c0_42 = arith.constant 0 : index
    %39 = vector.load %arg15[%c1_41, %c0_42] : memref<17x96xf32, #tpu.memory_space<vmem>>, vector<16x96xf32>
    %40 = arith.truncf %39 : vector<16x96xf32> to vector<16x96xbf16>
    %c0_43 = arith.constant 0 : index
    %c0_44 = arith.constant 0 : index
    %41 = vector.load %arg5[%c0_43, %c0_44] : memref<1x512xf32, #tpu.memory_space<vmem>>, vector<1x512xf32>
    %c0_45 = arith.constant 0 : index
    %c0_46 = arith.constant 0 : index
    %c0_47 = arith.constant 0 : index
    %42 = vector.load %arg4[%c0_45, %c0_46, %c0_47] : memref<3x96x512xbf16, #tpu.memory_space<vmem>>, vector<1x96x512xbf16>
    %43 = vector.shape_cast %42 : vector<1x96x512xbf16> to vector<96x512xbf16>
    %cst_48 = arith.constant dense<0.000000e+00> : vector<16x512xf32>
    %44 = tpu.matmul %34, %43, %cst_48 {dimension_numbers = #tpu.dot_dimension_numbers<[1], [0], [0], [1], [0, 0, 1, 1], [], []>} : vector<16x96xbf16>, vector<96x512xbf16>, vector<16x512xf32> -> vector<16x512xf32>
    %c1_49 = arith.constant 1 : index
    %c0_50 = arith.constant 0 : index
    %c0_51 = arith.constant 0 : index
    %45 = vector.load %arg4[%c1_49, %c0_50, %c0_51] : memref<3x96x512xbf16, #tpu.memory_space<vmem>>, vector<1x96x512xbf16>
    %46 = vector.shape_cast %45 : vector<1x96x512xbf16> to vector<96x512xbf16>
    %cst_52 = arith.constant dense<0.000000e+00> : vector<16x512xf32>
    %47 = tpu.matmul %38, %46, %cst_52 {dimension_numbers = #tpu.dot_dimension_numbers<[1], [0], [0], [1], [0, 0, 1, 1], [], []>} : vector<16x96xbf16>, vector<96x512xbf16>, vector<16x512xf32> -> vector<16x512xf32>
    %48 = arith.addf %44, %47 : vector<16x512xf32>
    %c2_53 = arith.constant 2 : index
    %c0_54 = arith.constant 0 : index
    %c0_55 = arith.constant 0 : index
    %49 = vector.load %arg4[%c2_53, %c0_54, %c0_55] : memref<3x96x512xbf16, #tpu.memory_space<vmem>>, vector<1x96x512xbf16>
    %50 = vector.shape_cast %49 : vector<1x96x512xbf16> to vector<96x512xbf16>
    %cst_56 = arith.constant dense<0.000000e+00> : vector<16x512xf32>
    %51 = tpu.matmul %36, %50, %cst_56 {dimension_numbers = #tpu.dot_dimension_numbers<[1], [0], [0], [1], [0, 0, 1, 1], [], []>} : vector<16x96xbf16>, vector<96x512xbf16>, vector<16x512xf32> -> vector<16x512xf32>
    %52 = arith.addf %48, %51 : vector<16x512xf32>
    %53 = vector.broadcast %41 : vector<1x512xf32> to vector<16x512xf32>
    %54 = arith.addf %52, %53 : vector<16x512xf32>
    %cst_57 = arith.constant 0.000000e+00 : f32
    %55 = vector.broadcast %cst_57 : f32 to vector<16x512xf32>
    %56 = arith.maximumf %54, %55 : vector<16x512xf32>
    %c0_58 = arith.constant 0 : index
    %c0_59 = arith.constant 0 : index
    %c0_60 = arith.constant 0 : index
    %57 = vector.load %arg4[%c0_58, %c0_59, %c0_60] : memref<3x96x512xbf16, #tpu.memory_space<vmem>>, vector<1x96x512xbf16>
    %58 = vector.shape_cast %57 : vector<1x96x512xbf16> to vector<96x512xbf16>
    %cst_61 = arith.constant dense<0.000000e+00> : vector<16x512xf32>
    %59 = tpu.matmul %38, %58, %cst_61 {dimension_numbers = #tpu.dot_dimension_numbers<[1], [0], [0], [1], [0, 0, 1, 1], [], []>} : vector<16x96xbf16>, vector<96x512xbf16>, vector<16x512xf32> -> vector<16x512xf32>
    %c1_62 = arith.constant 1 : index
    %c0_63 = arith.constant 0 : index
    %c0_64 = arith.constant 0 : index
    %60 = vector.load %arg4[%c1_62, %c0_63, %c0_64] : memref<3x96x512xbf16, #tpu.memory_space<vmem>>, vector<1x96x512xbf16>
    %61 = vector.shape_cast %60 : vector<1x96x512xbf16> to vector<96x512xbf16>
    %cst_65 = arith.constant dense<0.000000e+00> : vector<16x512xf32>
    %62 = tpu.matmul %36, %61, %cst_65 {dimension_numbers = #tpu.dot_dimension_numbers<[1], [0], [0], [1], [0, 0, 1, 1], [], []>} : vector<16x96xbf16>, vector<96x512xbf16>, vector<16x512xf32> -> vector<16x512xf32>
    %63 = arith.addf %59, %62 : vector<16x512xf32>
    %c2_66 = arith.constant 2 : index
    %c0_67 = arith.constant 0 : index
    %c0_68 = arith.constant 0 : index
    %64 = vector.load %arg4[%c2_66, %c0_67, %c0_68] : memref<3x96x512xbf16, #tpu.memory_space<vmem>>, vector<1x96x512xbf16>
    %65 = vector.shape_cast %64 : vector<1x96x512xbf16> to vector<96x512xbf16>
    %cst_69 = arith.constant dense<0.000000e+00> : vector<16x512xf32>
    %66 = tpu.matmul %40, %65, %cst_69 {dimension_numbers = #tpu.dot_dimension_numbers<[1], [0], [0], [1], [0, 0, 1, 1], [], []>} : vector<16x96xbf16>, vector<96x512xbf16>, vector<16x512xf32> -> vector<16x512xf32>
    %67 = arith.addf %63, %66 : vector<16x512xf32>
    %68 = vector.broadcast %41 : vector<1x512xf32> to vector<16x512xf32>
    %69 = arith.addf %67, %68 : vector<16x512xf32>
    %cst_70 = arith.constant 0.000000e+00 : f32
    %70 = vector.broadcast %cst_70 : f32 to vector<16x512xf32>
    %71 = arith.maximumf %69, %70 : vector<16x512xf32>
    %cst_71 = arith.constant 0.000000e+00 : f32
    %72 = vector.broadcast %cst_71 : f32 to vector<1x512xf32>
    %c0_72 = arith.constant 0 : index
    %c0_73 = arith.constant 0 : index
    %73 = vector.load %arg16[%c0_72, %c0_73] : memref<17x512xf32, #tpu.memory_space<vmem>>, vector<1x512xf32>
    tpu.vector_store %arg16[%c0_72, %c0_73], %72 {strides = array<i32>} : memref<17x512xf32, #tpu.memory_space<vmem>>, vector<1x512xf32>,
    %c1_74 = arith.constant 1 : index
    %c0_75 = arith.constant 0 : index
    %74 = vector.load %arg16[%c1_74, %c0_75] : memref<17x512xf32, #tpu.memory_space<vmem>>, vector<16x512xf32>
    tpu.vector_store %arg16[%c1_74, %c0_75], %71 {strides = array<i32>} : memref<17x512xf32, #tpu.memory_space<vmem>>, vector<16x512xf32>,
    %c0_76 = arith.constant 0 : index
    %c0_77 = arith.constant 0 : index
    %75 = vector.load %arg17[%c0_76, %c0_77] : memref<16x512xf32, #tpu.memory_space<vmem>>, vector<16x512xf32>
    tpu.vector_store %arg17[%c0_76, %c0_77], %56 {strides = array<i32>} : memref<16x512xf32, #tpu.memory_space<vmem>>, vector<16x512xf32>,
    %c0_78 = arith.constant 0 : index
    %c0_79 = arith.constant 0 : index
    %76 = vector.load %arg16[%c0_78, %c0_79] : memref<17x512xf32, #tpu.memory_space<vmem>>, vector<16x512xf32>
    %77 = arith.truncf %76 : vector<16x512xf32> to vector<16x512xbf16>
    %c0_80 = arith.constant 0 : index
    %c0_81 = arith.constant 0 : index
    %78 = vector.load %arg17[%c0_80, %c0_81] : memref<16x512xf32, #tpu.memory_space<vmem>>, vector<16x512xf32>
    %79 = arith.truncf %78 : vector<16x512xf32> to vector<16x512xbf16>
    %c1_82 = arith.constant 1 : index
    %c0_83 = arith.constant 0 : index
    %80 = vector.load %arg16[%c1_82, %c0_83] : memref<17x512xf32, #tpu.memory_space<vmem>>, vector<16x512xf32>
    %81 = arith.truncf %80 : vector<16x512xf32> to vector<16x512xbf16>
    %c0_84 = arith.constant 0 : index
    %c0_85 = arith.constant 0 : index
    %c0_86 = arith.constant 0 : index
    %82 = vector.load %arg6[%c0_84, %c0_85, %c0_86] : memref<3x512x512xbf16, #tpu.memory_space<vmem>>, vector<1x512x512xbf16>
    %83 = vector.shape_cast %82 : vector<1x512x512xbf16> to vector<512x512xbf16>
    %cst_87 = arith.constant dense<0.000000e+00> : vector<16x512xf32>
    %84 = tpu.matmul %77, %83, %cst_87 {dimension_numbers = #tpu.dot_dimension_numbers<[1], [0], [0], [1], [0, 0, 1, 1], [], []>} : vector<16x512xbf16>, vector<512x512xbf16>, vector<16x512xf32> -> vector<16x512xf32>
    %c1_88 = arith.constant 1 : index
    %c0_89 = arith.constant 0 : index
    %c0_90 = arith.constant 0 : index
    %85 = vector.load %arg6[%c1_88, %c0_89, %c0_90] : memref<3x512x512xbf16, #tpu.memory_space<vmem>>, vector<1x512x512xbf16>
    %86 = vector.shape_cast %85 : vector<1x512x512xbf16> to vector<512x512xbf16>
    %cst_91 = arith.constant dense<0.000000e+00> : vector<16x512xf32>
    %87 = tpu.matmul %79, %86, %cst_91 {dimension_numbers = #tpu.dot_dimension_numbers<[1], [0], [0], [1], [0, 0, 1, 1], [], []>} : vector<16x512xbf16>, vector<512x512xbf16>, vector<16x512xf32> -> vector<16x512xf32>
    %88 = arith.addf %84, %87 : vector<16x512xf32>
    %c2_92 = arith.constant 2 : index
    %c0_93 = arith.constant 0 : index
    %c0_94 = arith.constant 0 : index
    %89 = vector.load %arg6[%c2_92, %c0_93, %c0_94] : memref<3x512x512xbf16, #tpu.memory_space<vmem>>, vector<1x512x512xbf16>
    %90 = vector.shape_cast %89 : vector<1x512x512xbf16> to vector<512x512xbf16>
    %cst_95 = arith.constant dense<0.000000e+00> : vector<16x512xf32>
    %91 = tpu.matmul %81, %90, %cst_95 {dimension_numbers = #tpu.dot_dimension_numbers<[1], [0], [0], [1], [0, 0, 1, 1], [], []>} : vector<16x512xbf16>, vector<512x512xbf16>, vector<16x512xf32> -> vector<16x512xf32>
    %92 = arith.addf %88, %91 : vector<16x512xf32>
    %c0_96 = arith.constant 0 : index
    %c0_97 = arith.constant 0 : index
    %93 = vector.load %arg7[%c0_96, %c0_97] : memref<1x512xf32, #tpu.memory_space<vmem>>, vector<1x512xf32>
    %94 = vector.broadcast %93 : vector<1x512xf32> to vector<16x512xf32>
    %95 = arith.addf %92, %94 : vector<16x512xf32>
    %cst_98 = arith.constant 0.000000e+00 : f32
    %96 = vector.broadcast %cst_98 : f32 to vector<16x512xf32>
    %97 = arith.maximumf %95, %96 : vector<16x512xf32>
    %cst_99 = arith.constant 0.000000e+00 : f32
    %98 = vector.broadcast %cst_99 : f32 to vector<1x512xf32>
    %c0_100 = arith.constant 0 : index
    %c0_101 = arith.constant 0 : index
    %99 = vector.load %arg18[%c0_100, %c0_101] : memref<18x512xf32, #tpu.memory_space<vmem>>, vector<1x512xf32>
    tpu.vector_store %arg18[%c0_100, %c0_101], %98 {strides = array<i32>} : memref<18x512xf32, #tpu.memory_space<vmem>>, vector<1x512xf32>,
    %c17 = arith.constant 17 : index
    %c0_102 = arith.constant 0 : index
    %100 = vector.load %arg18[%c17, %c0_102] : memref<18x512xf32, #tpu.memory_space<vmem>>, vector<1x512xf32>
    tpu.vector_store %arg18[%c17, %c0_102], %98 {strides = array<i32>} : memref<18x512xf32, #tpu.memory_space<vmem>>, vector<1x512xf32>,
    %c1_103 = arith.constant 1 : index
    %c0_104 = arith.constant 0 : index
    %101 = vector.load %arg18[%c1_103, %c0_104] : memref<18x512xf32, #tpu.memory_space<vmem>>, vector<16x512xf32>
    tpu.vector_store %arg18[%c1_103, %c0_104], %97 {strides = array<i32>} : memref<18x512xf32, #tpu.memory_space<vmem>>, vector<16x512xf32>,
    %c0_105 = arith.constant 0 : index
    %c0_106 = arith.constant 0 : index
    %102 = vector.load %arg18[%c0_105, %c0_106] : memref<18x512xf32, #tpu.memory_space<vmem>>, vector<16x512xf32>
    %103 = arith.truncf %102 : vector<16x512xf32> to vector<16x512xbf16>
    %c1_107 = arith.constant 1 : index
    %c0_108 = arith.constant 0 : index
    %104 = vector.load %arg18[%c1_107, %c0_108] : memref<18x512xf32, #tpu.memory_space<vmem>>, vector<16x512xf32>
    %105 = arith.truncf %104 : vector<16x512xf32> to vector<16x512xbf16>
    %c2_109 = arith.constant 2 : index
    %c0_110 = arith.constant 0 : index
    %106 = vector.load %arg18[%c2_109, %c0_110] : memref<18x512xf32, #tpu.memory_space<vmem>>, vector<16x512xf32>
    %107 = arith.truncf %106 : vector<16x512xf32> to vector<16x512xbf16>
    %c0_111 = arith.constant 0 : index
    %c0_112 = arith.constant 0 : index
    %c0_113 = arith.constant 0 : index
    %108 = vector.load %arg8[%c0_111, %c0_112, %c0_113] : memref<3x512x128xbf16, #tpu.memory_space<vmem>>, vector<1x512x128xbf16>
    %109 = vector.shape_cast %108 : vector<1x512x128xbf16> to vector<512x128xbf16>
    %cst_114 = arith.constant dense<0.000000e+00> : vector<16x128xf32>
    %110 = tpu.matmul %103, %109, %cst_114 {dimension_numbers = #tpu.dot_dimension_numbers<[1], [0], [0], [1], [0, 0, 1, 1], [], []>} : vector<16x512xbf16>, vector<512x128xbf16>, vector<16x128xf32> -> vector<16x128xf32>
    %c1_115 = arith.constant 1 : index
    %c0_116 = arith.constant 0 : index
    %c0_117 = arith.constant 0 : index
    %111 = vector.load %arg8[%c1_115, %c0_116, %c0_117] : memref<3x512x128xbf16, #tpu.memory_space<vmem>>, vector<1x512x128xbf16>
    %112 = vector.shape_cast %111 : vector<1x512x128xbf16> to vector<512x128xbf16>
    %cst_118 = arith.constant dense<0.000000e+00> : vector<16x128xf32>
    %113 = tpu.matmul %105, %112, %cst_118 {dimension_numbers = #tpu.dot_dimension_numbers<[1], [0], [0], [1], [0, 0, 1, 1], [], []>} : vector<16x512xbf16>, vector<512x128xbf16>, vector<16x128xf32> -> vector<16x128xf32>
    %114 = arith.addf %110, %113 : vector<16x128xf32>
    %c2_119 = arith.constant 2 : index
    %c0_120 = arith.constant 0 : index
    %c0_121 = arith.constant 0 : index
    %115 = vector.load %arg8[%c2_119, %c0_120, %c0_121] : memref<3x512x128xbf16, #tpu.memory_space<vmem>>, vector<1x512x128xbf16>
    %116 = vector.shape_cast %115 : vector<1x512x128xbf16> to vector<512x128xbf16>
    %cst_122 = arith.constant dense<0.000000e+00> : vector<16x128xf32>
    %117 = tpu.matmul %107, %116, %cst_122 {dimension_numbers = #tpu.dot_dimension_numbers<[1], [0], [0], [1], [0, 0, 1, 1], [], []>} : vector<16x512xbf16>, vector<512x128xbf16>, vector<16x128xf32> -> vector<16x128xf32>
    %118 = arith.addf %114, %117 : vector<16x128xf32>
    %c0_123 = arith.constant 0 : index
    %c0_124 = arith.constant 0 : index
    %119 = vector.load %arg9[%c0_123, %c0_124] : memref<1x128xf32, #tpu.memory_space<vmem>>, vector<1x128xf32>
    %120 = vector.broadcast %119 : vector<1x128xf32> to vector<16x128xf32>
    %121 = arith.addf %118, %120 : vector<16x128xf32>
    %c0_125 = arith.constant 0 : index
    %c0_126 = arith.constant 0 : index
    %122 = vector.load %arg10[%c0_125, %c0_126] : memref<16x64xf32, #tpu.memory_space<vmem>>, vector<16x64xf32>
    %123 = vector.extract_strided_slice %121 {offsets = [0, 0], sizes = [16, 16], strides = [1, 1]} : vector<16x128xf32> to vector<16x16xf32>
    %124 = vector.extract_strided_slice %121 {offsets = [0, 16], sizes = [16, 16], strides = [1, 1]} : vector<16x128xf32> to vector<16x16xf32>
    %125 = vector.extract_strided_slice %121 {offsets = [0, 32], sizes = [16, 16], strides = [1, 1]} : vector<16x128xf32> to vector<16x16xf32>
    %126 = vector.extract_strided_slice %121 {offsets = [0, 48], sizes = [16, 16], strides = [1, 1]} : vector<16x128xf32> to vector<16x16xf32>
    %127 = vector.extract_strided_slice %122 {offsets = [0, 0], sizes = [16, 16], strides = [1, 1]} : vector<16x64xf32> to vector<16x16xf32>
    %128 = vector.extract_strided_slice %122 {offsets = [0, 16], sizes = [16, 16], strides = [1, 1]} : vector<16x64xf32> to vector<16x16xf32>
    %129 = vector.extract_strided_slice %122 {offsets = [0, 32], sizes = [16, 16], strides = [1, 1]} : vector<16x64xf32> to vector<16x16xf32>
    %130 = vector.extract_strided_slice %122 {offsets = [0, 48], sizes = [16, 16], strides = [1, 1]} : vector<16x64xf32> to vector<16x16xf32>
    %cst_127 = arith.constant 1.000000e-01 : f32
    %131 = vector.broadcast %cst_127 : f32 to vector<16x16xf32>
    %132 = arith.mulf %123, %131 : vector<16x16xf32>
    %133 = arith.mulf %132, %129 : vector<16x16xf32>
    %134 = arith.addf %133, %127 : vector<16x16xf32>
    %cst_128 = arith.constant 1.000000e-01 : f32
    %135 = vector.broadcast %cst_128 : f32 to vector<16x16xf32>
    %136 = arith.mulf %124, %135 : vector<16x16xf32>
    %137 = arith.mulf %136, %130 : vector<16x16xf32>
    %138 = arith.addf %137, %128 : vector<16x16xf32>
    %cst_129 = arith.constant 2.000000e-01 : f32
    %139 = vector.broadcast %cst_129 : f32 to vector<16x16xf32>
    %140 = arith.mulf %125, %139 : vector<16x16xf32>
    %cst_130 = arith.constant 6.90775537 : f32
    %141 = vector.broadcast %cst_130 : f32 to vector<16x16xf32>
    %142 = arith.minimumf %140, %141 : vector<16x16xf32>
    %143 = math.exp %142 : vector<16x16xf32>
    %144 = arith.mulf %143, %129 : vector<16x16xf32>
    %cst_131 = arith.constant 2.000000e-01 : f32
    %145 = vector.broadcast %cst_131 : f32 to vector<16x16xf32>
    %146 = arith.mulf %126, %145 : vector<16x16xf32>
    %cst_132 = arith.constant 6.90775537 : f32
    %147 = vector.broadcast %cst_132 : f32 to vector<16x16xf32>
    %148 = arith.minimumf %146, %147 : vector<16x16xf32>
    %149 = math.exp %148 : vector<16x16xf32>
    %150 = arith.mulf %149, %130 : vector<16x16xf32>
    %cst_133 = arith.constant 5.000000e-01 : f32
    %151 = vector.broadcast %cst_133 : f32 to vector<16x16xf32>
    %152 = arith.mulf %151, %144 : vector<16x16xf32>
    %153 = arith.subf %134, %152 : vector<16x16xf32>
    %cst_134 = arith.constant 5.000000e-01 : f32
    %154 = vector.broadcast %cst_134 : f32 to vector<16x16xf32>
    %155 = arith.mulf %154, %150 : vector<16x16xf32>
    %156 = arith.subf %138, %155 : vector<16x16xf32>
    %cst_135 = arith.constant 5.000000e-01 : f32
    %157 = vector.broadcast %cst_135 : f32 to vector<16x16xf32>
    %158 = arith.mulf %157, %144 : vector<16x16xf32>
    %159 = arith.addf %134, %158 : vector<16x16xf32>
    %cst_136 = arith.constant 5.000000e-01 : f32
    %160 = vector.broadcast %cst_136 : f32 to vector<16x16xf32>
    %161 = arith.mulf %160, %150 : vector<16x16xf32>
    %162 = arith.addf %138, %161 : vector<16x16xf32>
    %163 = vector.extract_strided_slice %121 {offsets = [0, 64], sizes = [16, 16], strides = [1, 1]} : vector<16x128xf32> to vector<16x16xf32>
    %164 = vector.extract_strided_slice %121 {offsets = [0, 80], sizes = [16, 16], strides = [1, 1]} : vector<16x128xf32> to vector<16x16xf32>
    %165 = vector.extract_strided_slice %121 {offsets = [0, 96], sizes = [16, 16], strides = [1, 1]} : vector<16x128xf32> to vector<16x16xf32>
    %166 = vector.extract_strided_slice %121 {offsets = [0, 112], sizes = [16, 16], strides = [1, 1]} : vector<16x128xf32> to vector<16x16xf32>
    %167 = arith.maximumf %163, %164 : vector<16x16xf32>
    %168 = arith.maximumf %165, %166 : vector<16x16xf32>
    %169 = arith.maximumf %167, %168 : vector<16x16xf32>
    %170 = arith.subf %163, %169 : vector<16x16xf32>
    %171 = math.exp %170 : vector<16x16xf32>
    %172 = arith.subf %164, %169 : vector<16x16xf32>
    %173 = math.exp %172 : vector<16x16xf32>
    %174 = arith.subf %165, %169 : vector<16x16xf32>
    %175 = math.exp %174 : vector<16x16xf32>
    %176 = arith.subf %166, %169 : vector<16x16xf32>
    %177 = math.exp %176 : vector<16x16xf32>
    %178 = arith.addf %171, %173 : vector<16x16xf32>
    %179 = arith.addf %178, %175 : vector<16x16xf32>
    %180 = arith.addf %179, %177 : vector<16x16xf32>
    %cst_137 = arith.constant 1.000000e+00 : f32
    %181 = vector.broadcast %cst_137 : f32 to vector<16x16xf32>
    %182 = arith.divf %181, %180 : vector<16x16xf32>
    %183 = arith.mulf %171, %182 : vector<16x16xf32>
    %184 = arith.mulf %173, %182 : vector<16x16xf32>
    %185 = arith.mulf %175, %182 : vector<16x16xf32>
    %186 = arith.mulf %177, %182 : vector<16x16xf32>
    %c0_138 = arith.constant 0 : index
    %c0_139 = arith.constant 0 : index
    %187 = vector.load %arg11[%c0_138, %c0_139] : memref<64x64xf32, #tpu.memory_space<vmem>>, vector<64x64xf32>
    %188 = vector.extract_strided_slice %187 {offsets = [0, 0], sizes = [16, 64], strides = [1, 1]} : vector<64x64xf32> to vector<16x64xf32>
    %cst_140 = arith.constant dense<0.000000e+00> : vector<16x64xf32>
    %189 = tpu.matmul %153, %188, %cst_140 {dimension_numbers = #tpu.dot_dimension_numbers<[1], [0], [0], [1], [0, 0, 1, 1], [], []>} : vector<16x16xf32>, vector<16x64xf32>, vector<16x64xf32> -> vector<16x64xf32>
    %190 = vector.extract_strided_slice %187 {offsets = [16, 0], sizes = [16, 64], strides = [1, 1]} : vector<64x64xf32> to vector<16x64xf32>
    %cst_141 = arith.constant dense<0.000000e+00> : vector<16x64xf32>
    %191 = tpu.matmul %156, %190, %cst_141 {dimension_numbers = #tpu.dot_dimension_numbers<[1], [0], [0], [1], [0, 0, 1, 1], [], []>} : vector<16x16xf32>, vector<16x64xf32>, vector<16x64xf32> -> vector<16x64xf32>
    %192 = arith.addf %189, %191 : vector<16x64xf32>
    %193 = vector.extract_strided_slice %187 {offsets = [32, 0], sizes = [16, 64], strides = [1, 1]} : vector<64x64xf32> to vector<16x64xf32>
    %cst_142 = arith.constant dense<0.000000e+00> : vector<16x64xf32>
    %194 = tpu.matmul %159, %193, %cst_142 {dimension_numbers = #tpu.dot_dimension_numbers<[1], [0], [0], [1], [0, 0, 1, 1], [], []>} : vector<16x16xf32>, vector<16x64xf32>, vector<16x64xf32> -> vector<16x64xf32>
    %195 = arith.addf %192, %194 : vector<16x64xf32>
    %196 = vector.extract_strided_slice %187 {offsets = [48, 0], sizes = [16, 64], strides = [1, 1]} : vector<64x64xf32> to vector<16x64xf32>
    %cst_143 = arith.constant dense<0.000000e+00> : vector<16x64xf32>
    %197 = tpu.matmul %162, %196, %cst_143 {dimension_numbers = #tpu.dot_dimension_numbers<[1], [0], [0], [1], [0, 0, 1, 1], [], []>} : vector<16x16xf32>, vector<16x64xf32>, vector<16x64xf32> -> vector<16x64xf32>
    %198 = arith.addf %195, %197 : vector<16x64xf32>
    %c0_144 = arith.constant 0 : index
    %c0_145 = arith.constant 0 : index
    %199 = vector.load %arg12[%c0_144, %c0_145] : memref<16x64xf32, #tpu.memory_space<vmem>>, vector<16x64xf32>
    tpu.vector_store %arg12[%c0_144, %c0_145], %198 {strides = array<i32>} : memref<16x64xf32, #tpu.memory_space<vmem>>, vector<16x64xf32>,
    %200 = vector.extract_strided_slice %187 {offsets = [0, 0], sizes = [16, 64], strides = [1, 1]} : vector<64x64xf32> to vector<16x64xf32>
    %cst_146 = arith.constant dense<0.000000e+00> : vector<16x64xf32>
    %201 = tpu.matmul %183, %200, %cst_146 {dimension_numbers = #tpu.dot_dimension_numbers<[1], [0], [0], [1], [0, 0, 1, 1], [], []>} : vector<16x16xf32>, vector<16x64xf32>, vector<16x64xf32> -> vector<16x64xf32>
    %202 = vector.extract_strided_slice %187 {offsets = [16, 0], sizes = [16, 64], strides = [1, 1]} : vector<64x64xf32> to vector<16x64xf32>
    %cst_147 = arith.constant dense<0.000000e+00> : vector<16x64xf32>
    %203 = tpu.matmul %184, %202, %cst_147 {dimension_numbers = #tpu.dot_dimension_numbers<[1], [0], [0], [1], [0, 0, 1, 1], [], []>} : vector<16x16xf32>, vector<16x64xf32>, vector<16x64xf32> -> vector<16x64xf32>
    %204 = arith.addf %201, %203 : vector<16x64xf32>
    %205 = vector.extract_strided_slice %187 {offsets = [32, 0], sizes = [16, 64], strides = [1, 1]} : vector<64x64xf32> to vector<16x64xf32>
    %cst_148 = arith.constant dense<0.000000e+00> : vector<16x64xf32>
    %206 = tpu.matmul %185, %205, %cst_148 {dimension_numbers = #tpu.dot_dimension_numbers<[1], [0], [0], [1], [0, 0, 1, 1], [], []>} : vector<16x16xf32>, vector<16x64xf32>, vector<16x64xf32> -> vector<16x64xf32>
    %207 = arith.addf %204, %206 : vector<16x64xf32>
    %208 = vector.extract_strided_slice %187 {offsets = [48, 0], sizes = [16, 64], strides = [1, 1]} : vector<64x64xf32> to vector<16x64xf32>
    %cst_149 = arith.constant dense<0.000000e+00> : vector<16x64xf32>
    %209 = tpu.matmul %186, %208, %cst_149 {dimension_numbers = #tpu.dot_dimension_numbers<[1], [0], [0], [1], [0, 0, 1, 1], [], []>} : vector<16x16xf32>, vector<16x64xf32>, vector<16x64xf32> -> vector<16x64xf32>
    %210 = arith.addf %207, %209 : vector<16x64xf32>
    %c0_150 = arith.constant 0 : index
    %c0_151 = arith.constant 0 : index
    %211 = vector.load %arg13[%c0_150, %c0_151] : memref<16x64xf32, #tpu.memory_space<vmem>>, vector<16x64xf32>
    tpu.vector_store %arg13[%c0_150, %c0_151], %210 {strides = array<i32>} : memref<16x64xf32, #tpu.memory_space<vmem>>, vector<16x64xf32>,
    return
  }
}

</mosaic_0001>

<llo_original>
// kernel: torchscript_part_forward.1
$region0: #{torchscript_part_forward.1}
  #allocation0 [shape = 'u32[]', space=smem, size = 0x4, offset = 0x4, fixed_abs, tag = 'smem constant byte address 0x4 - core index']
  #allocation1 [shape = 'u32[144,128]{1,0:T(1,128)}', space=vmem, size = 0x12000, scoped, tag = 'internal scratch']
  #allocation2 [shape = 'f32[17,96]{1,0:T(8,128)}', space=vmem, size = 0x3000, scoped, tag = 'scratch operand']
  #allocation3 [shape = 'f32[17,96]{1,0:T(8,128)}', space=vmem, size = 0x3000, scoped, tag = 'scratch operand']
  #allocation4 [shape = 'f32[17,512]{1,0:T(8,128)}', space=vmem, size = 0xc000, scoped, tag = 'scratch operand']
  #allocation5 [shape = 'f32[16,512]{1,0:T(8,128)}', space=vmem, size = 0x8000, scoped, tag = 'scratch operand']
  #allocation6 [shape = 'f32[18,512]{1,0:T(8,128)}', space=vmem, size = 0xc000, scoped, tag = 'scratch operand']
  %s0 = inlined_call_operand.vmem [shape: f32[3,32,32], index: 0, kind: input, shape index: {}]
  %s1 = inlined_call_operand.vmem [shape: f32[3,32,96], index: 1, kind: input, shape index: {}]
  %s2 = inlined_call_operand.vmem [shape: f32[2,16,32], index: 2, kind: input, shape index: {}]
  %s3 = inlined_call_operand.vmem [shape: f32[1,96], index: 3, kind: input, shape index: {}]
  %s4 = inlined_call_operand.vmem [shape: bf16[3,96,512], index: 4, kind: input, shape index: {}]
  %s5 = inlined_call_operand.vmem [shape: f32[1,512], index: 5, kind: input, shape index: {}]
  %s6 = inlined_call_operand.vmem [shape: bf16[3,512,512], index: 6, kind: input, shape index: {}]
  %s7 = inlined_call_operand.vmem [shape: f32[1,512], index: 7, kind: input, shape index: {}]
  %s8 = inlined_call_operand.vmem [shape: bf16[3,512,128], index: 8, kind: input, shape index: {}]
  %s9 = inlined_call_operand.vmem [shape: f32[1,128], index: 9, kind: input, shape index: {}]
  %s10 = inlined_call_operand.vmem [shape: f32[16,64], index: 10, kind: input, shape index: {}]
  %s11 = inlined_call_operand.vmem [shape: f32[64,64], index: 11, kind: input, shape index: {}]
  %s12 = inlined_call_operand.vmem [shape: f32[16,64], index: 12, kind: output, shape index: {0}]
  %s13 = inlined_call_operand.vmem [shape: f32[16,64], index: 13, kind: output, shape index: {1}]
  %14 = xla_tuple %s12, %s13
  %s15 = sld [smem:[#allocation0]]
  $region66: #{torchscript_part_forward.1} parent=0
    _
  %s17 = ssub.s32 1, %s15
  %s18 = scalar_select 0, %s17, %s15
  // Predicated region
  $region2: #{torchscript_part_forward.1} parent=0 // pred_check
    _
  $region3: #{torchscript_part_forward.1} parent=0 // pred_check_branch
    %20 = sbr.rel (0) target = $region5
  $region4: #{torchscript_part_forward.1} parent=0 // pred_region
    _
  $region5: #{torchscript_part_forward.1} parent=0 // pred_fallthru
    _
  // Predicated region
  $region6: #{torchscript_part_forward.1} parent=0 // pred_check
    _
  $region7: #{torchscript_part_forward.1} parent=0 // pred_check_branch
    %22 = sbr.rel (0) target = $region9
  $region8: #{torchscript_part_forward.1} parent=0 // pred_region
    _
  $region9: #{torchscript_part_forward.1} parent=0 // pred_fallthru
    _
  // Predicated region
  $region10: #{torchscript_part_forward.1} parent=0 // pred_check
    _
  $region11: #{torchscript_part_forward.1} parent=0 // pred_check_branch
    %24 = sbr.rel (0) target = $region13
  $region12: #{torchscript_part_forward.1} parent=0 // pred_region
    _
  $region13: #{torchscript_part_forward.1} parent=0 // pred_fallthru
    _
  // Predicated region
  $region14: #{torchscript_part_forward.1} parent=0 // pred_check
    _
  $region15: #{torchscript_part_forward.1} parent=0 // pred_check_branch
    %26 = sbr.rel (0) target = $region17
  $region16: #{torchscript_part_forward.1} parent=0 // pred_region
    _
  $region17: #{torchscript_part_forward.1} parent=0 // pred_fallthru
    _
  // Predicated region
  $region18: #{torchscript_part_forward.1} parent=0 // pred_check
    _
  $region19: #{torchscript_part_forward.1} parent=0 // pred_check_branch
    %28 = sbr.rel (0) target = $region21
  $region20: #{torchscript_part_forward.1} parent=0 // pred_region
    _
  $region21: #{torchscript_part_forward.1} parent=0 // pred_fallthru
    _
  // Predicated region
  $region22: #{torchscript_part_forward.1} parent=0 // pred_check
    _
  $region23: #{torchscript_part_forward.1} parent=0 // pred_check_branch
    %30 = sbr.rel (0) target = $region25
  $region24: #{torchscript_part_forward.1} parent=0 // pred_region
    _
  $region25: #{torchscript_part_forward.1} parent=0 // pred_fallthru
    _
  // Predicated region
  $region26: #{torchscript_part_forward.1} parent=0 // pred_check
    _
  $region27: #{torchscript_part_forward.1} parent=0 // pred_check_branch
    %32 = sbr.rel (0) target = $region29
  $region28: #{torchscript_part_forward.1} parent=0 // pred_region
    _
  $region29: #{torchscript_part_forward.1} parent=0 // pred_fallthru
    _
  // Predicated region
  $region30: #{torchscript_part_forward.1} parent=0 // pred_check
    _
  $region31: #{torchscript_part_forward.1} parent=0 // pred_check_branch
    %34 = sbr.rel (0) target = $region33
  $region32: #{torchscript_part_forward.1} parent=0 // pred_region
    _
  $region33: #{torchscript_part_forward.1} parent=0 // pred_fallthru
    _
  // Predicated region
  $region34: #{torchscript_part_forward.1} parent=0 // pred_check
    _
  $region35: #{torchscript_part_forward.1} parent=0 // pred_check_branch
    %36 = sbr.rel (0) target = $region37
  $region36: #{torchscript_part_forward.1} parent=0 // pred_region
    _
  $region37: #{torchscript_part_forward.1} parent=0 // pred_fallthru
    _
  // Predicated region
  $region38: #{torchscript_part_forward.1} parent=0 // pred_check
    _
  $region39: #{torchscript_part_forward.1} parent=0 // pred_check_branch
    %38 = sbr.rel (0) target = $region41
  $region40: #{torchscript_part_forward.1} parent=0 // pred_region
    _
  $region41: #{torchscript_part_forward.1} parent=0 // pred_fallthru
    _
  // Predicated region
  $region42: #{torchscript_part_forward.1} parent=0 // pred_check
    _
  $region43: #{torchscript_part_forward.1} parent=0 // pred_check_branch
    %40 = sbr.rel (0) target = $region45
  $region44: #{torchscript_part_forward.1} parent=0 // pred_region
    _
  $region45: #{torchscript_part_forward.1} parent=0 // pred_fallthru
    _
  // Predicated region
  $region46: #{torchscript_part_forward.1} parent=0 // pred_check
    _
  $region47: #{torchscript_part_forward.1} parent=0 // pred_check_branch
    %42 = sbr.rel (0) target = $region49
  $region48: #{torchscript_part_forward.1} parent=0 // pred_region
    _
  $region49: #{torchscript_part_forward.1} parent=0 // pred_fallthru
    _
  %v44 = vld [vmem:[%s0] sm:$0xff]
  %v45 = vld [vmem:[%s0 + $0x8] sm:$0xff]
  %v46 = vld [vmem:[%s0 + $0x10] sm:$0xff]
  %v47 = vld [vmem:[%s0 + $0x18] sm:$0xff]
  %v48 = vld [vmem:[%s1] sm:$0xff]
  %v49 = vld [vmem:[%s1 + $0x8] sm:$0xff]
  %v50 = vld [vmem:[%s1 + $0x10] sm:$0xff]
  %v51 = vld [vmem:[%s1 + $0x18] sm:$0xff]
  %s52 = scalar_lea.vmem %s0, 32
  %v53 = vld [vmem:[%s52] sm:$0xff]
  %v54 = vld [vmem:[%s52 + $0x8] sm:$0xff]
  %v55 = vld [vmem:[%s52 + $0x10] sm:$0xff]
  %v56 = vld [vmem:[%s52 + $0x18] sm:$0xff]
  %s57 = scalar_lea.vmem %s1, 32
  %v58 = vld [vmem:[%s57] sm:$0xff]
  %v59 = vld [vmem:[%s57 + $0x8] sm:$0xff]
  %v60 = vld [vmem:[%s57 + $0x10] sm:$0xff]
  %v61 = vld [vmem:[%s57 + $0x18] sm:$0xff]
  %vm62 = vcmask 261120
  %v64 = vsel %vm62, %v53, 0
  %v67 = vsel %vm62, %v54, 0
  %v70 = vsel %vm62, %v55, 0
  %v73 = vsel %vm62, %v56, 0
  %75 = vmatprep.subr.mxu0 0.0
  %76 = vmatpush1.msra.mxu0 %v58
  %77 = vmatprep.subr.mxu0 0.0
  %78 = vmatpush1.msra.mxu0 %v59
  %79 = vmatprep.subr.mxu0 0.0
  %80 = vmatpush1.msra.mxu0 %v60
  %81 = vmatprep.subr.mxu0 0.0
  %82 = vmatpush1.msra.mxu0 %v61
  %83 = vmatprep.subr.mxu0 0.0
  %84 = vmatpush1.msra.mxu0 0.0
  %85 = vmatprep.subr.mxu0 0.0
  %86 = vmatpush1.msra.mxu0 0.0
  %87 = vmatprep.subr.mxu0 0.0
  %88 = vmatpush1.msra.mxu0 0.0
  %89 = vmatprep.subr.mxu0 0.0
  %90 = vmatpush1.msra.mxu0 0.0
  %91 = vmatprep.subr.mxu0 0.0
  %92 = vmatpush1.msra.mxu0 0.0
  %93 = vmatprep.subr.mxu0 0.0
  %94 = vmatpush1.msra.mxu0 0.0
  %95 = vmatprep.subr.mxu0 0.0
  %96 = vmatpush1.msra.mxu0 0.0
  %97 = vmatprep.subr.mxu0 0.0
  %98 = vmatpush1.msra.mxu0 0.0
  %99 = vmatprep.subr.mxu0 0.0
  %100 = vmatpush1.msra.mxu0 0.0
  %101 = vmatprep.subr.mxu0 0.0
  %102 = vmatpush1.msra.mxu0 0.0
  %103 = vmatprep.subr.mxu0 0.0
  %104 = vmatpush1.msra.mxu0 0.0
  %105 = vmatprep.subr.mxu0 0.0
  %106 = vmatpush1.msra.mxu0 0.0
  %107 = vmatprep.subr.mxu0 0.0
  %108 = vmatpush1.msra.mxu0 0.0
  %109 = vmatprep.subr.mxu0 0.0
  %110 = vmatpush1.msra.mxu0 0.0
  %111 = vmatprep.subr.mxu0 0.0
  %112 = vmatpush1.msra.mxu0 0.0
  %113 = vmatprep.subr.mxu0 0.0
  %114 = vmatpush1.msra.mxu0 0.0
  %115 = vmatprep.subr.mxu0 0.0
  %116 = vmatpush1.msra.mxu0 0.0
  %117 = vmatprep.subr.mxu0 0.0
  %118 = vmatpush1.msra.mxu0 0.0
  %119 = vmatprep.subr.mxu0 0.0
  %120 = vmatpush1.msra.mxu0 0.0
  %121 = vmatprep.subr.mxu0 0.0
  %122 = vmatpush1.msra.mxu0 0.0
  %123 = vmatprep.subr.mxu0 0.0
  %124 = vmatpush1.msra.mxu0 0.0
  %125 = vmatprep.subr.mxu0 0.0
  %126 = vmatpush1.msra.mxu0 0.0
  %127 = vmatprep.subr.mxu0 0.0
  %128 = vmatpush1.msra.mxu0 0.0
  %129 = vmatprep.subr.mxu0 0.0
  %130 = vmatpush1.msra.mxu0 0.0
  %131 = vmatprep.subr.mxu0 0.0
  %132 = vmatpush1.msra.mxu0 0.0
  %133 = vmatprep.subr.mxu0 0.0
  %134 = vmatpush1.msra.mxu0 0.0
  %135 = vmatprep.subr.mxu0 0.0
  %136 = vmatpush1.msra.mxu0 0.0
  %137 = vmatprep.subr.mxu0 0.0
  %138 = vmatpush1.msra.mxu0 0.0
  %139 = vmatprep.mubr.f32.mxu0 0.0
  %140 = vmatmul.mubr.f32.gmra.mrb[0].mxu0 %v64
  %v141 = vpop.f32.mrb[0].mxu0
  %v142 = vadd.f32 0.0, %v141
  %v143 = vpop.f32.mrb[0].mxu0
  %144 = vmatprep.mubr.f32.mxu0 0.0
  %145 = vmatmul.mubr.f32.gmra.mrb[0].mxu0 %v67
  %v146 = vpop.f32.mrb[0].mxu0
  %v147 = vadd.f32 0.0, %v146
  %v148 = vpop.f32.mrb[0].mxu0
  %149 = vmatprep.mubr.f32.mxu0 0.0
  %150 = vmatmul.mubr.f32.gmra.mrb[0].mxu0 %v70
  %v151 = vpop.f32.mrb[0].mxu0
  %v152 = vadd.f32 0.0, %v151
  %v153 = vpop.f32.mrb[0].mxu0
  %154 = vmatprep.mubr.f32.mxu0 0.0
  %155 = vmatmul.mubr.f32.gmra.mrb[0].mxu0 %v73
  %v156 = vpop.f32.mrb[0].mxu0
  %v157 = vadd.f32 0.0, %v156
  %v158 = vpop.f32.mrb[0].mxu0
  %159 = vdwg.mxu0
  %v161 = vsel %vm62, %v44, 0
  %v164 = vsel %vm62, %v45, 0
  %v167 = vsel %vm62, %v46, 0
  %v170 = vsel %vm62, %v47, 0
  %172 = vmatprep.subr.mxu0 0.0
  %173 = vmatpush1.msra.mxu0 %v48
  %174 = vmatprep.subr.mxu0 0.0
  %175 = vmatpush1.msra.mxu0 %v49
  %176 = vmatprep.subr.mxu0 0.0
  %177 = vmatpush1.msra.mxu0 %v50
  %178 = vmatprep.subr.mxu0 0.0
  %179 = vmatpush1.msra.mxu0 %v51
  %180 = vmatprep.subr.mxu0 0.0
  %181 = vmatpush1.msra.mxu0 0.0
  %182 = vmatprep.subr.mxu0 0.0
  %183 = vmatpush1.msra.mxu0 0.0
  %184 = vmatprep.subr.mxu0 0.0
  %185 = vmatpush1.msra.mxu0 0.0
  %186 = vmatprep.subr.mxu0 0.0
  %187 = vmatpush1.msra.mxu0 0.0
  %188 = vmatprep.subr.mxu0 0.0
  %189 = vmatpush1.msra.mxu0 0.0
  %190 = vmatprep.subr.mxu0 0.0
  %191 = vmatpush1.msra.mxu0 0.0
  %192 = vmatprep.subr.mxu0 0.0
  %193 = vmatpush1.msra.mxu0 0.0
  %194 = vmatprep.subr.mxu0 0.0
  %195 = vmatpush1.msra.mxu0 0.0
  %196 = vmatprep.subr.mxu0 0.0
  %197 = vmatpush1.msra.mxu0 0.0
  %198 = vmatprep.subr.mxu0 0.0
  %199 = vmatpush1.msra.mxu0 0.0
  %200 = vmatprep.subr.mxu0 0.0
  %201 = vmatpush1.msra.mxu0 0.0
  %202 = vmatprep.subr.mxu0 0.0
  %203 = vmatpush1.msra.mxu0 0.0
  %204 = vmatprep.subr.mxu0 0.0
  %205 = vmatpush1.msra.mxu0 0.0
  %206 = vmatprep.subr.mxu0 0.0
  %207 = vmatpush1.msra.mxu0 0.0
  %208 = vmatprep.subr.mxu0 0.0
  %209 = vmatpush1.msra.mxu0 0.0
  %210 = vmatprep.subr.mxu0 0.0
  %211 = vmatpush1.msra.mxu0 0.0
  %212 = vmatprep.subr.mxu0 0.0
  %213 = vmatpush1.msra.mxu0 0.0
  %214 = vmatprep.subr.mxu0 0.0
  %215 = vmatpush1.msra.mxu0 0.0
  %216 = vmatprep.subr.mxu0 0.0
  %217 = vmatpush1.msra.mxu0 0.0
  %218 = vmatprep.subr.mxu0 0.0
  %219 = vmatpush1.msra.mxu0 0.0
  %220 = vmatprep.subr.mxu0 0.0
  %221 = vmatpush1.msra.mxu0 0.0
  %222 = vmatprep.subr.mxu0 0.0
  %223 = vmatpush1.msra.mxu0 0.0
  %224 = vmatprep.subr.mxu0 0.0
  %225 = vmatpush1.msra.mxu0 0.0
  %226 = vmatprep.subr.mxu0 0.0
  %227 = vmatpush1.msra.mxu0 0.0
  %228 = vmatprep.subr.mxu0 0.0
  %229 = vmatpush1.msra.mxu0 0.0
  %230 = vmatprep.subr.mxu0 0.0
  %231 = vmatpush1.msra.mxu0 0.0
  %232 = vmatprep.subr.mxu0 0.0
  %233 = vmatpush1.msra.mxu0 0.0
  %234 = vmatprep.subr.mxu0 0.0
  %235 = vmatpush1.msra.mxu0 0.0
  %236 = vmatprep.mubr.f32.mxu0 0.0
  %237 = vmatmul.mubr.f32.gmra.mrb[0].mxu0 %v161
  %v238 = vpop.f32.mrb[0].mxu0
  %v239 = vadd.f32 %v142, %v238
  %v240 = vpop.f32.mrb[0].mxu0
  %241 = vmatprep.mubr.f32.mxu0 0.0
  %242 = vmatmul.mubr.f32.gmra.mrb[0].mxu0 %v164
  %v243 = vpop.f32.mrb[0].mxu0
  %v244 = vadd.f32 %v147, %v243
  %v245 = vpop.f32.mrb[0].mxu0
  %246 = vmatprep.mubr.f32.mxu0 0.0
  %247 = vmatmul.mubr.f32.gmra.mrb[0].mxu0 %v167
  %v248 = vpop.f32.mrb[0].mxu0
  %v249 = vadd.f32 %v152, %v248
  %v250 = vpop.f32.mrb[0].mxu0
  %251 = vmatprep.mubr.f32.mxu0 0.0
  %252 = vmatmul.mubr.f32.gmra.mrb[0].mxu0 %v170
  %v253 = vpop.f32.mrb[0].mxu0
  %v254 = vadd.f32 %v157, %v253
  %v255 = vpop.f32.mrb[0].mxu0
  %256 = vdwg.mxu0
  %s257 = scalar_lea.vmem %s0, 64
  %v258 = vld [vmem:[%s257] sm:$0xff]
  %v259 = vld [vmem:[%s257 + $0x8] sm:$0xff]
  %v260 = vld [vmem:[%s257 + $0x10] sm:$0xff]
  %v261 = vld [vmem:[%s257 + $0x18] sm:$0xff]
  %s262 = scalar_lea.vmem %s1, 64
  %v263 = vld [vmem:[%s262] sm:$0xff]
  %v264 = vld [vmem:[%s262 + $0x8] sm:$0xff]
  %v265 = vld [vmem:[%s262 + $0x10] sm:$0xff]
  %v266 = vld [vmem:[%s262 + $0x18] sm:$0xff]
  %v268 = vsel %vm62, %v258, 0
  %v271 = vsel %vm62, %v259, 0
  %v274 = vsel %vm62, %v260, 0
  %v277 = vsel %vm62, %v261, 0
  %279 = vmatprep.subr.mxu0 0.0
  %280 = vmatpush1.msra.mxu0 %v263
  %281 = vmatprep.subr.mxu0 0.0
  %282 = vmatpush1.msra.mxu0 %v264
  %283 = vmatprep.subr.mxu0 0.0
  %284 = vmatpush1.msra.mxu0 %v265
  %285 = vmatprep.subr.mxu0 0.0
  %286 = vmatpush1.msra.mxu0 %v266
  %287 = vmatprep.subr.mxu0 0.0
  %288 = vmatpush1.msra.mxu0 0.0
  %289 = vmatprep.subr.mxu0 0.0
  %290 = vmatpush1.msra.mxu0 0.0
  %291 = vmatprep.subr.mxu0 0.0
  %292 = vmatpush1.msra.mxu0 0.0
  %293 = vmatprep.subr.mxu0 0.0
  %294 = vmatpush1.msra.mxu0 0.0
  %295 = vmatprep.subr.mxu0 0.0
  %296 = vmatpush1.msra.mxu0 0.0
  %297 = vmatprep.subr.mxu0 0.0
  %298 = vmatpush1.msra.mxu0 0.0
  %299 = vmatprep.subr.mxu0 0.0
  %300 = vmatpush1.msra.mxu0 0.0
  %301 = vmatprep.subr.mxu0 0.0
  %302 = vmatpush1.msra.mxu0 0.0
  %303 = vmatprep.subr.mxu0 0.0
  %304 = vmatpush1.msra.mxu0 0.0
  %305 = vmatprep.subr.mxu0 0.0
  %306 = vmatpush1.msra.mxu0 0.0
  %307 = vmatprep.subr.mxu0 0.0
  %308 = vmatpush1.msra.mxu0 0.0
  %309 = vmatprep.subr.mxu0 0.0
  %310 = vmatpush1.msra.mxu0 0.0
  %311 = vmatprep.subr.mxu0 0.0
  %312 = vmatpush1.msra.mxu0 0.0
  %313 = vmatprep.subr.mxu0 0.0
  %314 = vmatpush1.msra.mxu0 0.0
  %315 = vmatprep.subr.mxu0 0.0
  %316 = vmatpush1.msra.mxu0 0.0
  %317 = vmatprep.subr.mxu0 0.0
  %318 = vmatpush1.msra.mxu0 0.0
  %319 = vmatprep.subr.mxu0 0.0
  %320 = vmatpush1.msra.mxu0 0.0
  %321 = vmatprep.subr.mxu0 0.0
  %322 = vmatpush1.msra.mxu0 0.0
  %323 = vmatprep.subr.mxu0 0.0
  %324 = vmatpush1.msra.mxu0 0.0
  %325 = vmatprep.subr.mxu0 0.0
  %326 = vmatpush1.msra.mxu0 0.0
  %327 = vmatprep.subr.mxu0 0.0
  %328 = vmatpush1.msra.mxu0 0.0
  %329 = vmatprep.subr.mxu0 0.0
  %330 = vmatpush1.msra.mxu0 0.0
  %331 = vmatprep.subr.mxu0 0.0
  %332 = vmatpush1.msra.mxu0 0.0
  %333 = vmatprep.subr.mxu0 0.0
  %334 = vmatpush1.msra.mxu0 0.0
  %335 = vmatprep.subr.mxu0 0.0
  %336 = vmatpush1.msra.mxu0 0.0
  %337 = vmatprep.subr.mxu0 0.0
  %338 = vmatpush1.msra.mxu0 0.0
  %339 = vmatprep.subr.mxu0 0.0
  %340 = vmatpush1.msra.mxu0 0.0
  %341 = vmatprep.subr.mxu0 0.0
  %342 = vmatpush1.msra.mxu0 0.0
  %343 = vmatprep.mubr.f32.mxu0 0.0
  %344 = vmatmul.mubr.f32.gmra.mrb[0].mxu0 %v268
  %v345 = vpop.f32.mrb[0].mxu0
  %v346 = vadd.f32 0.0, %v345
  %v347 = vpop.f32.mrb[0].mxu0
  %348 = vmatprep.mubr.f32.mxu0 0.0
  %349 = vmatmul.mubr.f32.gmra.mrb[0].mxu0 %v271
  %v350 = vpop.f32.mrb[0].mxu0
  %v351 = vadd.f32 0.0, %v350
  %v352 = vpop.f32.mrb[0].mxu0
  %353 = vmatprep.mubr.f32.mxu0 0.0
  %354 = vmatmul.mubr.f32.gmra.mrb[0].mxu0 %v274
  %v355 = vpop.f32.mrb[0].mxu0
  %v356 = vadd.f32 0.0, %v355
  %v357 = vpop.f32.mrb[0].mxu0
  %358 = vmatprep.mubr.f32.mxu0 0.0
  %359 = vmatmul.mubr.f32.gmra.mrb[0].mxu0 %v277
  %v360 = vpop.f32.mrb[0].mxu0
  %v361 = vadd.f32 0.0, %v360
  %v362 = vpop.f32.mrb[0].mxu0
  %363 = vdwg.mxu0
  %v364 = vadd.f32 %v239, %v346
  %v365 = vadd.f32 %v244, %v351
  %v366 = vadd.f32 %v249, %v356
  %v367 = vadd.f32 %v254, %v361
  %v368 = vld [vmem:[%s3] sm:$0x1]
  %vm369 = vcmask 778240
  %370 = vst.msk [vmem:[#allocation2] sm:$0x1] %vm369, 0.0
  %371 = vst.msk [vmem:[#allocation3 + $0x10] sm:$0x1] %vm369, 0.0
  %v372 = vld [vmem:[%s2] sm:$0xff]
  %v373 = vld [vmem:[%s2 + $0x8] sm:$0xff]
  %v375 = vlaneseq
  %v376 = vshrl.u32 %v375, 7
  %v377 = vsub.s32 0, %v376
  %v378 = vrot.slane %v368, %v377
  %v381 = vsel %vm62, %v372, 0
  %v384 = vsel %vm62, %v373, 0
  %386 = vmatprep.subr.mxu0 0.0
  %387 = vmatpush1.msra.mxu0 %v364
  %388 = vmatprep.subr.mxu0 0.0
  %389 = vmatpush1.msra.mxu0 %v365
  %390 = vmatprep.subr.mxu0 0.0
  %391 = vmatpush1.msra.mxu0 %v366
  %392 = vmatprep.subr.mxu0 0.0
  %393 = vmatpush1.msra.mxu0 %v367
  %394 = vmatprep.subr.mxu0 0.0
  %395 = vmatpush1.msra.mxu0 0.0
  %396 = vmatprep.subr.mxu0 0.0
  %397 = vmatpush1.msra.mxu0 0.0
  %398 = vmatprep.subr.mxu0 0.0
  %399 = vmatpush1.msra.mxu0 0.0
  %400 = vmatprep.subr.mxu0 0.0
  %401 = vmatpush1.msra.mxu0 0.0
  %402 = vmatprep.subr.mxu0 0.0
  %403 = vmatpush1.msra.mxu0 0.0
  %404 = vmatprep.subr.mxu0 0.0
  %405 = vmatpush1.msra.mxu0 0.0
  %406 = vmatprep.subr.mxu0 0.0
  %407 = vmatpush1.msra.mxu0 0.0
  %408 = vmatprep.subr.mxu0 0.0
  %409 = vmatpush1.msra.mxu0 0.0
  %410 = vmatprep.subr.mxu0 0.0
  %411 = vmatpush1.msra.mxu0 0.0
  %412 = vmatprep.subr.mxu0 0.0
  %413 = vmatpush1.msra.mxu0 0.0
  %414 = vmatprep.subr.mxu0 0.0
  %415 = vmatpush1.msra.mxu0 0.0
  %416 = vmatprep.subr.mxu0 0.0
  %417 = vmatpush1.msra.mxu0 0.0
  %418 = vmatprep.subr.mxu0 0.0
  %419 = vmatpush1.msra.mxu0 0.0
  %420 = vmatprep.subr.mxu0 0.0
  %421 = vmatpush1.msra.mxu0 0.0
  %422 = vmatprep.subr.mxu0 0.0
  %423 = vmatpush1.msra.mxu0 0.0
  %424 = vmatprep.subr.mxu0 0.0
  %425 = vmatpush1.msra.mxu0 0.0
  %426 = vmatprep.subr.mxu0 0.0
  %427 = vmatpush1.msra.mxu0 0.0
  %428 = vmatprep.subr.mxu0 0.0
  %429 = vmatpush1.msra.mxu0 0.0
  %430 = vmatprep.subr.mxu0 0.0
  %431 = vmatpush1.msra.mxu0 0.0
  %432 = vmatprep.subr.mxu0 0.0
  %433 = vmatpush1.msra.mxu0 0.0
  %434 = vmatprep.subr.mxu0 0.0
  %435 = vmatpush1.msra.mxu0 0.0
  %436 = vmatprep.subr.mxu0 0.0
  %437 = vmatpush1.msra.mxu0 0.0
  %438 = vmatprep.subr.mxu0 0.0
  %439 = vmatpush1.msra.mxu0 0.0
  %440 = vmatprep.subr.mxu0 0.0
  %441 = vmatpush1.msra.mxu0 0.0
  %442 = vmatprep.subr.mxu0 0.0
  %443 = vmatpush1.msra.mxu0 0.0
  %444 = vmatprep.subr.mxu0 0.0
  %445 = vmatpush1.msra.mxu0 0.0
  %446 = vmatprep.subr.mxu0 0.0
  %447 = vmatpush1.msra.mxu0 0.0
  %448 = vmatprep.subr.mxu0 0.0
  %449 = vmatpush1.msra.mxu0 0.0
  %450 = vmatprep.mubr.f32.mxu0 0.0
  %451 = vmatmul.mubr.f32.gmra.mrb[0].mxu0 %v381
  %v452 = vpop.f32.mrb[0].mxu0
  %v453 = vadd.f32 %v378, %v452
  %v454 = vpop.f32.mrb[0].mxu0
  %455 = vmatprep.mubr.f32.mxu0 0.0
  %456 = vmatmul.mubr.f32.gmra.mrb[0].mxu0 %v384
  %v457 = vpop.f32.mrb[0].mxu0
  %v458 = vadd.f32 %v378, %v457
  %v459 = vpop.f32.mrb[0].mxu0
  %460 = vdwg.mxu0
  %vm461 = vcmask 785408
  %462 = vst.msk [vmem:[#allocation3] sm:$0xff] %vm461, %v453
  %463 = vst.msk [vmem:[#allocation3 + $0x8] sm:$0xff] %vm461, %v458
  %s464 = scalar_lea.vmem %s2, 16
  %v465 = vld [vmem:[%s464] sm:$0xff]
  %v466 = vld [vmem:[%s464 + $0x8] sm:$0xff]
  %v468 = vsel %vm62, %v465, 0
  %v471 = vsel %vm62, %v466, 0
  %473 = vmatprep.subr.mxu0 0.0
  %474 = vmatpush1.msra.mxu0 %v364
  %475 = vmatprep.subr.mxu0 0.0
  %476 = vmatpush1.msra.mxu0 %v365
  %477 = vmatprep.subr.mxu0 0.0
  %478 = vmatpush1.msra.mxu0 %v366
  %479 = vmatprep.subr.mxu0 0.0
  %480 = vmatpush1.msra.mxu0 %v367
  %481 = vmatprep.subr.mxu0 0.0
  %482 = vmatpush1.msra.mxu0 0.0
  %483 = vmatprep.subr.mxu0 0.0
  %484 = vmatpush1.msra.mxu0 0.0
  %485 = vmatprep.subr.mxu0 0.0
  %486 = vmatpush1.msra.mxu0 0.0
  %487 = vmatprep.subr.mxu0 0.0
  %488 = vmatpush1.msra.mxu0 0.0
  %489 = vmatprep.subr.mxu0 0.0
  %490 = vmatpush1.msra.mxu0 0.0
  %491 = vmatprep.subr.mxu0 0.0
  %492 = vmatpush1.msra.mxu0 0.0
  %493 = vmatprep.subr.mxu0 0.0
  %494 = vmatpush1.msra.mxu0 0.0
  %495 = vmatprep.subr.mxu0 0.0
  %496 = vmatpush1.msra.mxu0 0.0
  %497 = vmatprep.subr.mxu0 0.0
  %498 = vmatpush1.msra.mxu0 0.0
  %499 = vmatprep.subr.mxu0 0.0
  %500 = vmatpush1.msra.mxu0 0.0
  %501 = vmatprep.subr.mxu0 0.0
  %502 = vmatpush1.msra.mxu0 0.0
  %503 = vmatprep.subr.mxu0 0.0
  %504 = vmatpush1.msra.mxu0 0.0
  %505 = vmatprep.subr.mxu0 0.0
  %506 = vmatpush1.msra.mxu0 0.0
  %507 = vmatprep.subr.mxu0 0.0
  %508 = vmatpush1.msra.mxu0 0.0
  %509 = vmatprep.subr.mxu0 0.0
  %510 = vmatpush1.msra.mxu0 0.0
  %511 = vmatprep.subr.mxu0 0.0
  %512 = vmatpush1.msra.mxu0 0.0
  %513 = vmatprep.subr.mxu0 0.0
  %514 = vmatpush1.msra.mxu0 0.0
  %515 = vmatprep.subr.mxu0 0.0
  %516 = vmatpush1.msra.mxu0 0.0
  %517 = vmatprep.subr.mxu0 0.0
  %518 = vmatpush1.msra.mxu0 0.0
  %519 = vmatprep.subr.mxu0 0.0
  %520 = vmatpush1.msra.mxu0 0.0
  %521 = vmatprep.subr.mxu0 0.0
  %522 = vmatpush1.msra.mxu0 0.0
  %523 = vmatprep.subr.mxu0 0.0
  %524 = vmatpush1.msra.mxu0 0.0
  %525 = vmatprep.subr.mxu0 0.0
  %526 = vmatpush1.msra.mxu0 0.0
  %527 = vmatprep.subr.mxu0 0.0
  %528 = vmatpush1.msra.mxu0 0.0
  %529 = vmatprep.subr.mxu0 0.0
  %530 = vmatpush1.msra.mxu0 0.0
  %531 = vmatprep.subr.mxu0 0.0
  %532 = vmatpush1.msra.mxu0 0.0
  %533 = vmatprep.subr.mxu0 0.0
  %534 = vmatpush1.msra.mxu0 0.0
  %535 = vmatprep.subr.mxu0 0.0
  %536 = vmatpush1.msra.mxu0 0.0
  %537 = vmatprep.mubr.f32.mxu0 0.0
  %538 = vmatmul.mubr.f32.gmra.mrb[0].mxu0 %v468
  %v539 = vpop.f32.mrb[0].mxu0
  %v540 = vadd.f32 %v378, %v539
  %v541 = vpop.f32.mrb[0].mxu0
  %542 = vmatprep.mubr.f32.mxu0 0.0
  %543 = vmatmul.mubr.f32.gmra.mrb[0].mxu0 %v471
  %v544 = vpop.f32.mrb[0].mxu0
  %v545 = vadd.f32 %v378, %v544
  %v546 = vpop.f32.mrb[0].mxu0
  %547 = vdwg.mxu0
  %548 = vst.msk [vmem:[#allocation2 + $0x1] sm:$0xff] %vm461, %v540
  %549 = vst.msk [vmem:[#allocation2 + $0x9] sm:$0xff] %vm461, %v545
  %v550 = vld [vmem:[#allocation2] sm:$0xff]
  %v551 = vld [vmem:[#allocation2 + $0x8] sm:$0xff]
  %v552 = vpack.c.bf16 %v551, %v550
  %v553 = vld [vmem:[#allocation2 + $0x1] sm:$0xff]
  %v554 = vld [vmem:[#allocation2 + $0x9] sm:$0xff]
  %v555 = vpack.c.bf16 %v554, %v553
  %v556 = vld [vmem:[#allocation3] sm:$0xff]
  %v557 = vld [vmem:[#allocation3 + $0x8] sm:$0xff]
  %v558 = vpack.c.bf16 %v557, %v556
  %v559 = vld [vmem:[#allocation3 + $0x1] sm:$0xff]
  %v560 = vld [vmem:[#allocation3 + $0x9] sm:$0xff]
  %v561 = vpack.c.bf16 %v560, %v559
  %v562 = vld [vmem:[%s5] sm:$0xf]
  %v563 = vld [vmem:[%s4] sm:$0xff]
  %v564 = vld [vmem:[%s4 + $0x8] sm:$0xff]
  %v565 = vld [vmem:[%s4 + $0x10] sm:$0xff]
  %v566 = vld [vmem:[%s4 + $0x18] sm:$0xff]
  %v567 = vld [vmem:[%s4 + $0x20] sm:$0xff]
  %v568 = vld [vmem:[%s4 + $0x28] sm:$0xff]
  %v569 = vld [vmem:[%s4 + $0x30] sm:$0xff]
  %v570 = vld [vmem:[%s4 + $0x38] sm:$0xff]
  %v571 = vld [vmem:[%s4 + $0x40] sm:$0xff]
  %v572 = vld [vmem:[%s4 + $0x48] sm:$0xff]
  %v573 = vld [vmem:[%s4 + $0x50] sm:$0xff]
  %v574 = vld [vmem:[%s4 + $0x58] sm:$0xff]
  %v575 = vld [vmem:[%s4 + $0x60] sm:$0xff]
  %v576 = vld [vmem:[%s4 + $0x68] sm:$0xff]
  %v577 = vld [vmem:[%s4 + $0x70] sm:$0xff]
  %v578 = vld [vmem:[%s4 + $0x78] sm:$0xff]
  %v579 = vld [vmem:[%s4 + $0x80] sm:$0xff]
  %v580 = vld [vmem:[%s4 + $0x88] sm:$0xff]
  %v581 = vld [vmem:[%s4 + $0x90] sm:$0xff]
  %v582 = vld [vmem:[%s4 + $0x98] sm:$0xff]
  %v583 = vld [vmem:[%s4 + $0xa0] sm:$0xff]
  %v584 = vld [vmem:[%s4 + $0xa8] sm:$0xff]
  %v585 = vld [vmem:[%s4 + $0xb0] sm:$0xff]
  %v586 = vld [vmem:[%s4 + $0xb8] sm:$0xff]
  %s587 = scalar_lea.vmem %s4, 192
  %v588 = vld [vmem:[%s587] sm:$0xff]
  %v589 = vld [vmem:[%s587 + $0x8] sm:$0xff]
  %v590 = vld [vmem:[%s587 + $0x10] sm:$0xff]
  %v591 = vld [vmem:[%s587 + $0x18] sm:$0xff]
  %v592 = vld [vmem:[%s587 + $0x20] sm:$0xff]
  %v593 = vld [vmem:[%s587 + $0x28] sm:$0xff]
  %v594 = vld [vmem:[%s587 + $0x30] sm:$0xff]
  %v595 = vld [vmem:[%s587 + $0x38] sm:$0xff]
  %v596 = vld [vmem:[%s587 + $0x40] sm:$0xff]
  %v597 = vld [vmem:[%s587 + $0x48] sm:$0xff]
  %v598 = vld [vmem:[%s587 + $0x50] sm:$0xff]
  %v599 = vld [vmem:[%s587 + $0x58] sm:$0xff]
  %v600 = vld [vmem:[%s587 + $0x60] sm:$0xff]
  %v601 = vld [vmem:[%s587 + $0x68] sm:$0xff]
  %v602 = vld [vmem:[%s587 + $0x70] sm:$0xff]
  %v603 = vld [vmem:[%s587 + $0x78] sm:$0xff]
  %v604 = vld [vmem:[%s587 + $0x80] sm:$0xff]
  %v605 = vld [vmem:[%s587 + $0x88] sm:$0xff]
  %v606 = vld [vmem:[%s587 + $0x90] sm:$0xff]
  %v607 = vld [vmem:[%s587 + $0x98] sm:$0xff]
  %v608 = vld [vmem:[%s587 + $0xa0] sm:$0xff]
  %v609 = vld [vmem:[%s587 + $0xa8] sm:$0xff]
  %v610 = vld [vmem:[%s587 + $0xb0] sm:$0xff]
  %v611 = vld [vmem:[%s587 + $0xb8] sm:$0xff]
  %v636 = vunpack.c.l.b16 %v588
  %v637 = vunpack.c.h.b16 %v588
  %v638 = vunpack.c.l.b16 %v589
  %v639 = vunpack.c.h.b16 %v589
  %v640 = vunpack.c.l.b16 %v590
  %v641 = vunpack.c.h.b16 %v590
  %v642 = vunpack.c.l.b16 %v591
  %v643 = vunpack.c.h.b16 %v591
  %v644 = vunpack.c.l.b16 %v592
  %v645 = vunpack.c.h.b16 %v592
  %v646 = vunpack.c.l.b16 %v593
  %v647 = vunpack.c.h.b16 %v593
  %v648 = vunpack.c.l.b16 %v594
  %v649 = vunpack.c.h.b16 %v594
  %v650 = vunpack.c.l.b16 %v595
  %v651 = vunpack.c.h.b16 %v595
  %v652 = vunpack.c.l.b16 %v596
  %v653 = vunpack.c.h.b16 %v596
  %v654 = vunpack.c.l.b16 %v597
  %v655 = vunpack.c.h.b16 %v597
  %v656 = vunpack.c.l.b16 %v598
  %v657 = vunpack.c.h.b16 %v598
  %v658 = vunpack.c.l.b16 %v599
  %v659 = vunpack.c.h.b16 %v599
  %v660 = vunpack.c.l.b16 %v600
  %v661 = vunpack.c.h.b16 %v600
  %v662 = vunpack.c.l.b16 %v601
  %v663 = vunpack.c.h.b16 %v601
  %v664 = vunpack.c.l.b16 %v602
  %v665 = vunpack.c.h.b16 %v602
  %v666 = vunpack.c.l.b16 %v603
  %v667 = vunpack.c.h.b16 %v603
  %v668 = vunpack.c.l.b16 %v604
  %v669 = vunpack.c.h.b16 %v604
  %v670 = vunpack.c.l.b16 %v605
  %v671 = vunpack.c.h.b16 %v605
  %v672 = vunpack.c.l.b16 %v606
  %v673 = vunpack.c.h.b16 %v606
  %v674 = vunpack.c.l.b16 %v607
  %v675 = vunpack.c.h.b16 %v607
  %v676 = vunpack.c.l.b16 %v608
  %v677 = vunpack.c.h.b16 %v608
  %v678 = vunpack.c.l.b16 %v609
  %v679 = vunpack.c.h.b16 %v609
  %v680 = vunpack.c.l.b16 %v610
  %v681 = vunpack.c.h.b16 %v610
  %v682 = vunpack.c.l.b16 %v611
  %v683 = vunpack.c.h.b16 %v611
  %v684 = vpack.c.b16 %v640, %v636
  %v685 = vpack.c.b16 %v641, %v637
  %v686 = vpack.c.b16 %v642, %v638
  %v687 = vpack.c.b16 %v643, %v639
  %v688 = vpack.c.b16 %v648, %v644
  %v689 = vpack.c.b16 %v649, %v645
  %v690 = vpack.c.b16 %v650, %v646
  %v691 = vpack.c.b16 %v651, %v647
  %v692 = vpack.c.b16 %v656, %v652
  %v693 = vpack.c.b16 %v657, %v653
  %v694 = vpack.c.b16 %v658, %v654
  %v695 = vpack.c.b16 %v659, %v655
  %v696 = vpack.c.b16 %v664, %v660
  %v697 = vpack.c.b16 %v665, %v661
  %v698 = vpack.c.b16 %v666, %v662
  %v699 = vpack.c.b16 %v667, %v663
  %v700 = vpack.c.b16 %v672, %v668
  %v701 = vpack.c.b16 %v673, %v669
  %v702 = vpack.c.b16 %v674, %v670
  %v703 = vpack.c.b16 %v675, %v671
  %v704 = vpack.c.b16 %v680, %v676
  %v705 = vpack.c.b16 %v681, %v677
  %v706 = vpack.c.b16 %v682, %v678
  %v707 = vpack.c.b16 %v683, %v679
  %v733 = vsel %vm461, %v558, 0
  %735 = vmatprep.subr.bf16.mxu0 %v685
  %736 = vmatpush1.bf16.msra.mxu0 %v684
  %737 = vmatprep.subr.bf16.mxu0 %v689
  %738 = vmatpush1.bf16.msra.mxu0 %v688
  %739 = vmatprep.subr.bf16.mxu0 %v693
  %740 = vmatpush1.bf16.msra.mxu0 %v692
  %741 = vmatprep.subr.bf16.mxu0 %v697
  %742 = vmatpush1.bf16.msra.mxu0 %v696
  %743 = vmatprep.subr.bf16.mxu0 %v701
  %744 = vmatpush1.bf16.msra.mxu0 %v700
  %745 = vmatprep.subr.bf16.mxu0 %v705
  %746 = vmatpush1.bf16.msra.mxu0 %v704
  %747 = vmatprep.subr.bf16.mxu0 0
  %748 = vmatpush1.bf16.msra.mxu0 0
  %749 = vmatprep.subr.bf16.mxu0 0
  %750 = vmatpush1.bf16.msra.mxu0 0
  %751 = vmatprep.subr.bf16.mxu0 0
  %752 = vmatpush1.bf16.msra.mxu0 0
  %753 = vmatprep.subr.bf16.mxu0 0
  %754 = vmatpush1.bf16.msra.mxu0 0
  %755 = vmatprep.subr.bf16.mxu0 0
  %756 = vmatpush1.bf16.msra.mxu0 0
  %757 = vmatprep.subr.bf16.mxu0 0
  %758 = vmatpush1.bf16.msra.mxu0 0
  %759 = vmatprep.subr.bf16.mxu0 0
  %760 = vmatpush1.bf16.msra.mxu0 0
  %761 = vmatprep.subr.bf16.mxu0 0
  %762 = vmatpush1.bf16.msra.mxu0 0
  %763 = vmatprep.subr.bf16.mxu0 0
  %764 = vmatpush1.bf16.msra.mxu0 0
  %765 = vmatprep.subr.bf16.mxu0 0
  %766 = vmatpush1.bf16.msra.mxu0 0
  %767 = vmatprep.mubr.bf16.mxu0 0
  %768 = vmatmul.mubr.bf16.gmra.mrb[0].mxu0 %v733
  %v769 = vpop.f32.mrb[0].mxu0
  %v770 = vadd.f32 0.0, %v769
  %v771 = vpop.f32.mrb[0].mxu0
  %v772 = vadd.f32 0.0, %v771
  %v773 = vpop.f32.mrb[0].mxu0
  %v774 = vadd.f32 0.0, %v773
  %v775 = vpop.f32.mrb[0].mxu0
  %v776 = vadd.f32 0.0, %v775
  %777 = vdwg.mxu0
  %778 = vmatprep.subr.bf16.mxu0 %v687
  %779 = vmatpush1.bf16.msra.mxu0 %v686
  %780 = vmatprep.subr.bf16.mxu0 %v691
  %781 = vmatpush1.bf16.msra.mxu0 %v690
  %782 = vmatprep.subr.bf16.mxu0 %v695
  %783 = vmatpush1.bf16.msra.mxu0 %v694
  %784 = vmatprep.subr.bf16.mxu0 %v699
  %785 = vmatpush1.bf16.msra.mxu0 %v698
  %786 = vmatprep.subr.bf16.mxu0 %v703
  %787 = vmatpush1.bf16.msra.mxu0 %v702
  %788 = vmatprep.subr.bf16.mxu0 %v707
  %789 = vmatpush1.bf16.msra.mxu0 %v706
  %790 = vmatprep.subr.bf16.mxu0 0
  %791 = vmatpush1.bf16.msra.mxu0 0
  %792 = vmatprep.subr.bf16.mxu0 0
  %793 = vmatpush1.bf16.msra.mxu0 0
  %794 = vmatprep.subr.bf16.mxu0 0
  %795 = vmatpush1.bf16.msra.mxu0 0
  %796 = vmatprep.subr.bf16.mxu0 0
  %797 = vmatpush1.bf16.msra.mxu0 0
  %798 = vmatprep.subr.bf16.mxu0 0
  %799 = vmatpush1.bf16.msra.mxu0 0
  %800 = vmatprep.subr.bf16.mxu0 0
  %801 = vmatpush1.bf16.msra.mxu0 0
  %802 = vmatprep.subr.bf16.mxu0 0
  %803 = vmatpush1.bf16.msra.mxu0 0
  %804 = vmatprep.subr.bf16.mxu0 0
  %805 = vmatpush1.bf16.msra.mxu0 0
  %806 = vmatprep.subr.bf16.mxu0 0
  %807 = vmatpush1.bf16.msra.mxu0 0
  %808 = vmatprep.subr.bf16.mxu0 0
  %809 = vmatpush1.bf16.msra.mxu0 0
  %810 = vmatprep.mubr.bf16.mxu0 0
  %811 = vmatmul.mubr.bf16.gmra.mrb[0].mxu0 %v733
  %v812 = vpop.f32.mrb[0].mxu0
  %v813 = vadd.f32 0.0, %v812
  %v814 = vpop.f32.mrb[0].mxu0
  %v815 = vadd.f32 0.0, %v814
  %v816 = vpop.f32.mrb[0].mxu0
  %v817 = vadd.f32 0.0, %v816
  %v818 = vpop.f32.mrb[0].mxu0
  %v819 = vadd.f32 0.0, %v818
  %820 = vdwg.mxu0
  %v845 = vunpack.c.l.b16 %v563
  %v846 = vunpack.c.h.b16 %v563
  %v847 = vunpack.c.l.b16 %v564
  %v848 = vunpack.c.h.b16 %v564
  %v849 = vunpack.c.l.b16 %v565
  %v850 = vunpack.c.h.b16 %v565
  %v851 = vunpack.c.l.b16 %v566
  %v852 = vunpack.c.h.b16 %v566
  %v853 = vunpack.c.l.b16 %v567
  %v854 = vunpack.c.h.b16 %v567
  %v855 = vunpack.c.l.b16 %v568
  %v856 = vunpack.c.h.b16 %v568
  %v857 = vunpack.c.l.b16 %v569
  %v858 = vunpack.c.h.b16 %v569
  %v859 = vunpack.c.l.b16 %v570
  %v860 = vunpack.c.h.b16 %v570
  %v861 = vunpack.c.l.b16 %v571
  %v862 = vunpack.c.h.b16 %v571
  %v863 = vunpack.c.l.b16 %v572
  %v864 = vunpack.c.h.b16 %v572
  %v865 = vunpack.c.l.b16 %v573
  %v866 = vunpack.c.h.b16 %v573
  %v867 = vunpack.c.l.b16 %v574
  %v868 = vunpack.c.h.b16 %v574
  %v869 = vunpack.c.l.b16 %v575
  %v870 = vunpack.c.h.b16 %v575
  %v871 = vunpack.c.l.b16 %v576
  %v872 = vunpack.c.h.b16 %v576
  %v873 = vunpack.c.l.b16 %v577
  %v874 = vunpack.c.h.b16 %v577
  %v875 = vunpack.c.l.b16 %v578
  %v876 = vunpack.c.h.b16 %v578
  %v877 = vunpack.c.l.b16 %v579
  %v878 = vunpack.c.h.b16 %v579
  %v879 = vunpack.c.l.b16 %v580
  %v880 = vunpack.c.h.b16 %v580
  %v881 = vunpack.c.l.b16 %v581
  %v882 = vunpack.c.h.b16 %v581
  %v883 = vunpack.c.l.b16 %v582
  %v884 = vunpack.c.h.b16 %v582
  %v885 = vunpack.c.l.b16 %v583
  %v886 = vunpack.c.h.b16 %v583
  %v887 = vunpack.c.l.b16 %v584
  %v888 = vunpack.c.h.b16 %v584
  %v889 = vunpack.c.l.b16 %v585
  %v890 = vunpack.c.h.b16 %v585
  %v891 = vunpack.c.l.b16 %v586
  %v892 = vunpack.c.h.b16 %v586
  %v893 = vpack.c.b16 %v849, %v845
  %v894 = vpack.c.b16 %v850, %v846
  %v895 = vpack.c.b16 %v851, %v847
  %v896 = vpack.c.b16 %v852, %v848
  %v897 = vpack.c.b16 %v857, %v853
  %v898 = vpack.c.b16 %v858, %v854
  %v899 = vpack.c.b16 %v859, %v855
  %v900 = vpack.c.b16 %v860, %v856
  %v901 = vpack.c.b16 %v865, %v861
  %v902 = vpack.c.b16 %v866, %v862
  %v903 = vpack.c.b16 %v867, %v863
  %v904 = vpack.c.b16 %v868, %v864
  %v905 = vpack.c.b16 %v873, %v869
  %v906 = vpack.c.b16 %v874, %v870
  %v907 = vpack.c.b16 %v875, %v871
  %v908 = vpack.c.b16 %v876, %v872
  %v909 = vpack.c.b16 %v881, %v877
  %v910 = vpack.c.b16 %v882, %v878
  %v911 = vpack.c.b16 %v883, %v879
  %v912 = vpack.c.b16 %v884, %v880
  %v913 = vpack.c.b16 %v889, %v885
  %v914 = vpack.c.b16 %v890, %v886
  %v915 = vpack.c.b16 %v891, %v887
  %v916 = vpack.c.b16 %v892, %v888
  %v942 = vsel %vm461, %v552, 0
  %944 = vmatprep.subr.bf16.mxu0 %v894
  %945 = vmatpush1.bf16.msra.mxu0 %v893
  %946 = vmatprep.subr.bf16.mxu0 %v898
  %947 = vmatpush1.bf16.msra.mxu0 %v897
  %948 = vmatprep.subr.bf16.mxu0 %v902
  %949 = vmatpush1.bf16.msra.mxu0 %v901
  %950 = vmatprep.subr.bf16.mxu0 %v906
  %951 = vmatpush1.bf16.msra.mxu0 %v905
  %952 = vmatprep.subr.bf16.mxu0 %v910
  %953 = vmatpush1.bf16.msra.mxu0 %v909
  %954 = vmatprep.subr.bf16.mxu0 %v914
  %955 = vmatpush1.bf16.msra.mxu0 %v913
  %956 = vmatprep.subr.bf16.mxu0 0
  %957 = vmatpush1.bf16.msra.mxu0 0
  %958 = vmatprep.subr.bf16.mxu0 0
  %959 = vmatpush1.bf16.msra.mxu0 0
  %960 = vmatprep.subr.bf16.mxu0 0
  %961 = vmatpush1.bf16.msra.mxu0 0
  %962 = vmatprep.subr.bf16.mxu0 0
  %963 = vmatpush1.bf16.msra.mxu0 0
  %964 = vmatprep.subr.bf16.mxu0 0
  %965 = vmatpush1.bf16.msra.mxu0 0
  %966 = vmatprep.subr.bf16.mxu0 0
  %967 = vmatpush1.bf16.msra.mxu0 0
  %968 = vmatprep.subr.bf16.mxu0 0
  %969 = vmatpush1.bf16.msra.mxu0 0
  %970 = vmatprep.subr.bf16.mxu0 0
  %971 = vmatpush1.bf16.msra.mxu0 0
  %972 = vmatprep.subr.bf16.mxu0 0
  %973 = vmatpush1.bf16.msra.mxu0 0
  %974 = vmatprep.subr.bf16.mxu0 0
  %975 = vmatpush1.bf16.msra.mxu0 0
  %976 = vmatprep.mubr.bf16.mxu0 0
  %977 = vmatmul.mubr.bf16.gmra.mrb[0].mxu0 %v942
  %v978 = vpop.f32.mrb[0].mxu0
  %v979 = vadd.f32 %v770, %v978
  %v980 = vpop.f32.mrb[0].mxu0
  %v981 = vadd.f32 %v772, %v980
  %v982 = vpop.f32.mrb[0].mxu0
  %v983 = vadd.f32 %v774, %v982
  %v984 = vpop.f32.mrb[0].mxu0
  %v985 = vadd.f32 %v776, %v984
  %986 = vdwg.mxu0
  %987 = vmatprep.subr.bf16.mxu0 %v896
  %988 = vmatpush1.bf16.msra.mxu0 %v895
  %989 = vmatprep.subr.bf16.mxu0 %v900
  %990 = vmatpush1.bf16.msra.mxu0 %v899
  %991 = vmatprep.subr.bf16.mxu0 %v904
  %992 = vmatpush1.bf16.msra.mxu0 %v903
  %993 = vmatprep.subr.bf16.mxu0 %v908
  %994 = vmatpush1.bf16.msra.mxu0 %v907
  %995 = vmatprep.subr.bf16.mxu0 %v912
  %996 = vmatpush1.bf16.msra.mxu0 %v911
  %997 = vmatprep.subr.bf16.mxu0 %v916
  %998 = vmatpush1.bf16.msra.mxu0 %v915
  %999 = vmatprep.subr.bf16.mxu0 0
  %1000 = vmatpush1.bf16.msra.mxu0 0
  %1001 = vmatprep.subr.bf16.mxu0 0
  %1002 = vmatpush1.bf16.msra.mxu0 0
  %1003 = vmatprep.subr.bf16.mxu0 0
  %1004 = vmatpush1.bf16.msra.mxu0 0
  %1005 = vmatprep.subr.bf16.mxu0 0
  %1006 = vmatpush1.bf16.msra.mxu0 0
  %1007 = vmatprep.subr.bf16.mxu0 0
  %1008 = vmatpush1.bf16.msra.mxu0 0
  %1009 = vmatprep.subr.bf16.mxu0 0
  %1010 = vmatpush1.bf16.msra.mxu0 0
  %1011 = vmatprep.subr.bf16.mxu0 0
  %1012 = vmatpush1.bf16.msra.mxu0 0
  %1013 = vmatprep.subr.bf16.mxu0 0
  %1014 = vmatpush1.bf16.msra.mxu0 0
  %1015 = vmatprep.subr.bf16.mxu0 0
  %1016 = vmatpush1.bf16.msra.mxu0 0
  %1017 = vmatprep.subr.bf16.mxu0 0
  %1018 = vmatpush1.bf16.msra.mxu0 0
  %1019 = vmatprep.mubr.bf16.mxu0 0
  %1020 = vmatmul.mubr.bf16.gmra.mrb[0].mxu0 %v942
  %v1021 = vpop.f32.mrb[0].mxu0
  %v1022 = vadd.f32 %v813, %v1021
  %v1023 = vpop.f32.mrb[0].mxu0
  %v1024 = vadd.f32 %v815, %v1023
  %v1025 = vpop.f32.mrb[0].mxu0
  %v1026 = vadd.f32 %v817, %v1025
  %v1027 = vpop.f32.mrb[0].mxu0
  %v1028 = vadd.f32 %v819, %v1027
  %1029 = vdwg.mxu0
  %s1030 = scalar_lea.vmem %s4, 384
  %v1031 = vld [vmem:[%s1030] sm:$0xff]
  %v1032 = vld [vmem:[%s1030 + $0x8] sm:$0xff]
  %v1033 = vld [vmem:[%s1030 + $0x10] sm:$0xff]
  %v1034 = vld [vmem:[%s1030 + $0x18] sm:$0xff]
  %v1035 = vld [vmem:[%s1030 + $0x20] sm:$0xff]
  %v1036 = vld [vmem:[%s1030 + $0x28] sm:$0xff]
  %v1037 = vld [vmem:[%s1030 + $0x30] sm:$0xff]
  %v1038 = vld [vmem:[%s1030 + $0x38] sm:$0xff]
  %v1039 = vld [vmem:[%s1030 + $0x40] sm:$0xff]
  %v1040 = vld [vmem:[%s1030 + $0x48] sm:$0xff]
  %v1041 = vld [vmem:[%s1030 + $0x50] sm:$0xff]
  %v1042 = vld [vmem:[%s1030 + $0x58] sm:$0xff]
  %v1043 = vld [vmem:[%s1030 + $0x60] sm:$0xff]
  %v1044 = vld [vmem:[%s1030 + $0x68] sm:$0xff]
  %v1045 = vld [vmem:[%s1030 + $0x70] sm:$0xff]
  %v1046 = vld [vmem:[%s1030 + $0x78] sm:$0xff]
  %v1047 = vld [vmem:[%s1030 + $0x80] sm:$0xff]
  %v1048 = vld [vmem:[%s1030 + $0x88] sm:$0xff]
  %v1049 = vld [vmem:[%s1030 + $0x90] sm:$0xff]
  %v1050 = vld [vmem:[%s1030 + $0x98] sm:$0xff]
  %v1051 = vld [vmem:[%s1030 + $0xa0] sm:$0xff]
  %v1052 = vld [vmem:[%s1030 + $0xa8] sm:$0xff]
  %v1053 = vld [vmem:[%s1030 + $0xb0] sm:$0xff]
  %v1054 = vld [vmem:[%s1030 + $0xb8] sm:$0xff]
  %v1079 = vunpack.c.l.b16 %v1031
  %v1080 = vunpack.c.h.b16 %v1031
  %v1081 = vunpack.c.l.b16 %v1032
  %v1082 = vunpack.c.h.b16 %v1032
  %v1083 = vunpack.c.l.b16 %v1033
  %v1084 = vunpack.c.h.b16 %v1033
  %v1085 = vunpack.c.l.b16 %v1034
  %v1086 = vunpack.c.h.b16 %v1034
  %v1087 = vunpack.c.l.b16 %v1035
  %v1088 = vunpack.c.h.b16 %v1035
  %v1089 = vunpack.c.l.b16 %v1036
  %v1090 = vunpack.c.h.b16 %v1036
  %v1091 = vunpack.c.l.b16 %v1037
  %v1092 = vunpack.c.h.b16 %v1037
  %v1093 = vunpack.c.l.b16 %v1038
  %v1094 = vunpack.c.h.b16 %v1038
  %v1095 = vunpack.c.l.b16 %v1039
  %v1096 = vunpack.c.h.b16 %v1039
  %v1097 = vunpack.c.l.b16 %v1040
  %v1098 = vunpack.c.h.b16 %v1040
  %v1099 = vunpack.c.l.b16 %v1041
  %v1100 = vunpack.c.h.b16 %v1041
  %v1101 = vunpack.c.l.b16 %v1042
  %v1102 = vunpack.c.h.b16 %v1042
  %v1103 = vunpack.c.l.b16 %v1043
  %v1104 = vunpack.c.h.b16 %v1043
  %v1105 = vunpack.c.l.b16 %v1044
  %v1106 = vunpack.c.h.b16 %v1044
  %v1107 = vunpack.c.l.b16 %v1045
  %v1108 = vunpack.c.h.b16 %v1045
  %v1109 = vunpack.c.l.b16 %v1046
  %v1110 = vunpack.c.h.b16 %v1046
  %v1111 = vunpack.c.l.b16 %v1047
  %v1112 = vunpack.c.h.b16 %v1047
  %v1113 = vunpack.c.l.b16 %v1048
  %v1114 = vunpack.c.h.b16 %v1048
  %v1115 = vunpack.c.l.b16 %v1049
  %v1116 = vunpack.c.h.b16 %v1049
  %v1117 = vunpack.c.l.b16 %v1050
  %v1118 = vunpack.c.h.b16 %v1050
  %v1119 = vunpack.c.l.b16 %v1051
  %v1120 = vunpack.c.h.b16 %v1051
  %v1121 = vunpack.c.l.b16 %v1052
  %v1122 = vunpack.c.h.b16 %v1052
  %v1123 = vunpack.c.l.b16 %v1053
  %v1124 = vunpack.c.h.b16 %v1053
  %v1125 = vunpack.c.l.b16 %v1054
  %v1126 = vunpack.c.h.b16 %v1054
  %v1127 = vpack.c.b16 %v1083, %v1079
  %v1128 = vpack.c.b16 %v1084, %v1080
  %v1129 = vpack.c.b16 %v1085, %v1081
  %v1130 = vpack.c.b16 %v1086, %v1082
  %v1131 = vpack.c.b16 %v1091, %v1087
  %v1132 = vpack.c.b16 %v1092, %v1088
  %v1133 = vpack.c.b16 %v1093, %v1089
  %v1134 = vpack.c.b16 %v1094, %v1090
  %v1135 = vpack.c.b16 %v1099, %v1095
  %v1136 = vpack.c.b16 %v1100, %v1096
  %v1137 = vpack.c.b16 %v1101, %v1097
  %v1138 = vpack.c.b16 %v1102, %v1098
  %v1139 = vpack.c.b16 %v1107, %v1103
  %v1140 = vpack.c.b16 %v1108, %v1104
  %v1141 = vpack.c.b16 %v1109, %v1105
  %v1142 = vpack.c.b16 %v1110, %v1106
  %v1143 = vpack.c.b16 %v1115, %v1111
  %v1144 = vpack.c.b16 %v1116, %v1112
  %v1145 = vpack.c.b16 %v1117, %v1113
  %v1146 = vpack.c.b16 %v1118, %v1114
  %v1147 = vpack.c.b16 %v1123, %v1119
  %v1148 = vpack.c.b16 %v1124, %v1120
  %v1149 = vpack.c.b16 %v1125, %v1121
  %v1150 = vpack.c.b16 %v1126, %v1122
  %v1176 = vsel %vm461, %v555, 0
  %1178 = vmatprep.subr.bf16.mxu0 %v1128
  %1179 = vmatpush1.bf16.msra.mxu0 %v1127
  %1180 = vmatprep.subr.bf16.mxu0 %v1132
  %1181 = vmatpush1.bf16.msra.mxu0 %v1131
  %1182 = vmatprep.subr.bf16.mxu0 %v1136
  %1183 = vmatpush1.bf16.msra.mxu0 %v1135
  %1184 = vmatprep.subr.bf16.mxu0 %v1140
  %1185 = vmatpush1.bf16.msra.mxu0 %v1139
  %1186 = vmatprep.subr.bf16.mxu0 %v1144
  %1187 = vmatpush1.bf16.msra.mxu0 %v1143
  %1188 = vmatprep.subr.bf16.mxu0 %v1148
  %1189 = vmatpush1.bf16.msra.mxu0 %v1147
  %1190 = vmatprep.subr.bf16.mxu0 0
  %1191 = vmatpush1.bf16.msra.mxu0 0
  %1192 = vmatprep.subr.bf16.mxu0 0
  %1193 = vmatpush1.bf16.msra.mxu0 0
  %1194 = vmatprep.subr.bf16.mxu0 0
  %1195 = vmatpush1.bf16.msra.mxu0 0
  %1196 = vmatprep.subr.bf16.mxu0 0
  %1197 = vmatpush1.bf16.msra.mxu0 0
  %1198 = vmatprep.subr.bf16.mxu0 0
  %1199 = vmatpush1.bf16.msra.mxu0 0
  %1200 = vmatprep.subr.bf16.mxu0 0
  %1201 = vmatpush1.bf16.msra.mxu0 0
  %1202 = vmatprep.subr.bf16.mxu0 0
  %1203 = vmatpush1.bf16.msra.mxu0 0
  %1204 = vmatprep.subr.bf16.mxu0 0
  %1205 = vmatpush1.bf16.msra.mxu0 0
  %1206 = vmatprep.subr.bf16.mxu0 0
  %1207 = vmatpush1.bf16.msra.mxu0 0
  %1208 = vmatprep.subr.bf16.mxu0 0
  %1209 = vmatpush1.bf16.msra.mxu0 0
  %1210 = vmatprep.mubr.bf16.mxu0 0
  %1211 = vmatmul.mubr.bf16.gmra.mrb[0].mxu0 %v1176
  %v1212 = vpop.f32.mrb[0].mxu0
  %v1213 = vadd.f32 0.0, %v1212
  %v1214 = vpop.f32.mrb[0].mxu0
  %v1215 = vadd.f32 0.0, %v1214
  %v1216 = vpop.f32.mrb[0].mxu0
  %v1217 = vadd.f32 0.0, %v1216
  %v1218 = vpop.f32.mrb[0].mxu0
  %v1219 = vadd.f32 0.0, %v1218
  %1220 = vdwg.mxu0
  %1221 = vmatprep.subr.bf16.mxu0 %v1130
  %1222 = vmatpush1.bf16.msra.mxu0 %v1129
  %1223 = vmatprep.subr.bf16.mxu0 %v1134
  %1224 = vmatpush1.bf16.msra.mxu0 %v1133
  %1225 = vmatprep.subr.bf16.mxu0 %v1138
  %1226 = vmatpush1.bf16.msra.mxu0 %v1137
  %1227 = vmatprep.subr.bf16.mxu0 %v1142
  %1228 = vmatpush1.bf16.msra.mxu0 %v1141
  %1229 = vmatprep.subr.bf16.mxu0 %v1146
  %1230 = vmatpush1.bf16.msra.mxu0 %v1145
  %1231 = vmatprep.subr.bf16.mxu0 %v1150
  %1232 = vmatpush1.bf16.msra.mxu0 %v1149
  %1233 = vmatprep.subr.bf16.mxu0 0
  %1234 = vmatpush1.bf16.msra.mxu0 0
  %1235 = vmatprep.subr.bf16.mxu0 0
  %1236 = vmatpush1.bf16.msra.mxu0 0
  %1237 = vmatprep.subr.bf16.mxu0 0
  %1238 = vmatpush1.bf16.msra.mxu0 0
  %1239 = vmatprep.subr.bf16.mxu0 0
  %1240 = vmatpush1.bf16.msra.mxu0 0
  %1241 = vmatprep.subr.bf16.mxu0 0
  %1242 = vmatpush1.bf16.msra.mxu0 0
  %1243 = vmatprep.subr.bf16.mxu0 0
  %1244 = vmatpush1.bf16.msra.mxu0 0
  %1245 = vmatprep.subr.bf16.mxu0 0
  %1246 = vmatpush1.bf16.msra.mxu0 0
  %1247 = vmatprep.subr.bf16.mxu0 0
  %1248 = vmatpush1.bf16.msra.mxu0 0
  %1249 = vmatprep.subr.bf16.mxu0 0
  %1250 = vmatpush1.bf16.msra.mxu0 0
  %1251 = vmatprep.subr.bf16.mxu0 0
  %1252 = vmatpush1.bf16.msra.mxu0 0
  %1253 = vmatprep.mubr.bf16.mxu0 0
  %1254 = vmatmul.mubr.bf16.gmra.mrb[0].mxu0 %v1176
  %v1255 = vpop.f32.mrb[0].mxu0
  %v1256 = vadd.f32 0.0, %v1255
  %v1257 = vpop.f32.mrb[0].mxu0
  %v1258 = vadd.f32 0.0, %v1257
  %v1259 = vpop.f32.mrb[0].mxu0
  %v1260 = vadd.f32 0.0, %v1259
  %v1261 = vpop.f32.mrb[0].mxu0
  %v1262 = vadd.f32 0.0, %v1261
  %1263 = vdwg.mxu0
  %v1264 = vadd.f32 %v979, %v1213
  %v1265 = vadd.f32 %v981, %v1215
  %v1266 = vadd.f32 %v1022, %v1256
  %v1267 = vadd.f32 %v1024, %v1258
  %v1268 = vadd.f32 %v983, %v1217
  %v1269 = vadd.f32 %v985, %v1219
  %v1270 = vadd.f32 %v1026, %v1260
  %v1271 = vadd.f32 %v1028, %v1262
  %v1273 = vlaneseq
  %v1274 = vshrl.u32 %v1273, 7
  %v1275 = vsub.s32 0, %v1274
  %v1276 = vrot.slane %v562, %v1275
  %v1277 = vlaneseq
  %v1278 = vshrl.u32 %v1277, 7
  %v1279 = vsub.s32 1, %v1278
  %v1280 = vrot.slane %v562, %v1279
  %v1281 = vlaneseq
  %v1282 = vshrl.u32 %v1281, 7
  %v1283 = vsub.s32 2, %v1282
  %v1284 = vrot.slane %v562, %v1283
  %v1285 = vlaneseq
  %v1286 = vshrl.u32 %v1285, 7
  %v1287 = vsub.s32 3, %v1286
  %v1288 = vrot.slane %v562, %v1287
  %v1293 = vadd.f32 %v1264, %v1276
  %v1294 = vadd.f32 %v1265, %v1280
  %v1295 = vadd.f32 %v1266, %v1284
  %v1296 = vadd.f32 %v1267, %v1288
  %v1297 = vadd.f32 %v1268, %v1276
  %v1298 = vadd.f32 %v1269, %v1280
  %v1299 = vadd.f32 %v1270, %v1284
  %v1300 = vadd.f32 %v1271, %v1288
  %v1301 = vmax.f32 %v1293, 0.0
  %v1302 = vmax.f32 %v1294, 0.0
  %v1303 = vmax.f32 %v1295, 0.0
  %v1304 = vmax.f32 %v1296, 0.0
  %v1305 = vmax.f32 %v1297, 0.0
  %v1306 = vmax.f32 %v1298, 0.0
  %v1307 = vmax.f32 %v1299, 0.0
  %v1308 = vmax.f32 %v1300, 0.0
  %1309 = vmatprep.subr.bf16.mxu0 %v685
  %1310 = vmatpush1.bf16.msra.mxu0 %v684
  %1311 = vmatprep.subr.bf16.mxu0 %v689
  %1312 = vmatpush1.bf16.msra.mxu0 %v688
  %1313 = vmatprep.subr.bf16.mxu0 %v693
  %1314 = vmatpush1.bf16.msra.mxu0 %v692
  %1315 = vmatprep.subr.bf16.mxu0 %v697
  %1316 = vmatpush1.bf16.msra.mxu0 %v696
  %1317 = vmatprep.subr.bf16.mxu0 %v701
  %1318 = vmatpush1.bf16.msra.mxu0 %v700
  %1319 = vmatprep.subr.bf16.mxu0 %v705
  %1320 = vmatpush1.bf16.msra.mxu0 %v704
  %1321 = vmatprep.subr.bf16.mxu0 0
  %1322 = vmatpush1.bf16.msra.mxu0 0
  %1323 = vmatprep.subr.bf16.mxu0 0
  %1324 = vmatpush1.bf16.msra.mxu0 0
  %1325 = vmatprep.subr.bf16.mxu0 0
  %1326 = vmatpush1.bf16.msra.mxu0 0
  %1327 = vmatprep.subr.bf16.mxu0 0
  %1328 = vmatpush1.bf16.msra.mxu0 0
  %1329 = vmatprep.subr.bf16.mxu0 0
  %1330 = vmatpush1.bf16.msra.mxu0 0
  %1331 = vmatprep.subr.bf16.mxu0 0
  %1332 = vmatpush1.bf16.msra.mxu0 0
  %1333 = vmatprep.subr.bf16.mxu0 0
  %1334 = vmatpush1.bf16.msra.mxu0 0
  %1335 = vmatprep.subr.bf16.mxu0 0
  %1336 = vmatpush1.bf16.msra.mxu0 0
  %1337 = vmatprep.subr.bf16.mxu0 0
  %1338 = vmatpush1.bf16.msra.mxu0 0
  %1339 = vmatprep.subr.bf16.mxu0 0
  %1340 = vmatpush1.bf16.msra.mxu0 0
  %1341 = vmatprep.mubr.bf16.mxu0 0
  %1342 = vmatmul.mubr.bf16.gmra.mrb[0].mxu0 %v1176
  %v1343 = vpop.f32.mrb[0].mxu0
  %v1344 = vadd.f32 0.0, %v1343
  %v1345 = vpop.f32.mrb[0].mxu0
  %v1346 = vadd.f32 0.0, %v1345
  %v1347 = vpop.f32.mrb[0].mxu0
  %v1348 = vadd.f32 0.0, %v1347
  %v1349 = vpop.f32.mrb[0].mxu0
  %v1350 = vadd.f32 0.0, %v1349
  %1351 = vdwg.mxu0
  %1352 = vmatprep.subr.bf16.mxu0 %v687
  %1353 = vmatpush1.bf16.msra.mxu0 %v686
  %1354 = vmatprep.subr.bf16.mxu0 %v691
  %1355 = vmatpush1.bf16.msra.mxu0 %v690
  %1356 = vmatprep.subr.bf16.mxu0 %v695
  %1357 = vmatpush1.bf16.msra.mxu0 %v694
  %1358 = vmatprep.subr.bf16.mxu0 %v699
  %1359 = vmatpush1.bf16.msra.mxu0 %v698
  %1360 = vmatprep.subr.bf16.mxu0 %v703
  %1361 = vmatpush1.bf16.msra.mxu0 %v702
  %1362 = vmatprep.subr.bf16.mxu0 %v707
  %1363 = vmatpush1.bf16.msra.mxu0 %v706
  %1364 = vmatprep.subr.bf16.mxu0 0
  %1365 = vmatpush1.bf16.msra.mxu0 0
  %1366 = vmatprep.subr.bf16.mxu0 0
  %1367 = vmatpush1.bf16.msra.mxu0 0
  %1368 = vmatprep.subr.bf16.mxu0 0
  %1369 = vmatpush1.bf16.msra.mxu0 0
  %1370 = vmatprep.subr.bf16.mxu0 0
  %1371 = vmatpush1.bf16.msra.mxu0 0
  %1372 = vmatprep.subr.bf16.mxu0 0
  %1373 = vmatpush1.bf16.msra.mxu0 0
  %1374 = vmatprep.subr.bf16.mxu0 0
  %1375 = vmatpush1.bf16.msra.mxu0 0
  %1376 = vmatprep.subr.bf16.mxu0 0
  %1377 = vmatpush1.bf16.msra.mxu0 0
  %1378 = vmatprep.subr.bf16.mxu0 0
  %1379 = vmatpush1.bf16.msra.mxu0 0
  %1380 = vmatprep.subr.bf16.mxu0 0
  %1381 = vmatpush1.bf16.msra.mxu0 0
  %1382 = vmatprep.subr.bf16.mxu0 0
  %1383 = vmatpush1.bf16.msra.mxu0 0
  %1384 = vmatprep.mubr.bf16.mxu0 0
  %1385 = vmatmul.mubr.bf16.gmra.mrb[0].mxu0 %v1176
  %v1386 = vpop.f32.mrb[0].mxu0
  %v1387 = vadd.f32 0.0, %v1386
  %v1388 = vpop.f32.mrb[0].mxu0
  %v1389 = vadd.f32 0.0, %v1388
  %v1390 = vpop.f32.mrb[0].mxu0
  %v1391 = vadd.f32 0.0, %v1390
  %v1392 = vpop.f32.mrb[0].mxu0
  %v1393 = vadd.f32 0.0, %v1392
  %1394 = vdwg.mxu0
  %1395 = vmatprep.subr.bf16.mxu0 %v894
  %1396 = vmatpush1.bf16.msra.mxu0 %v893
  %1397 = vmatprep.subr.bf16.mxu0 %v898
  %1398 = vmatpush1.bf16.msra.mxu0 %v897
  %1399 = vmatprep.subr.bf16.mxu0 %v902
  %1400 = vmatpush1.bf16.msra.mxu0 %v901
  %1401 = vmatprep.subr.bf16.mxu0 %v906
  %1402 = vmatpush1.bf16.msra.mxu0 %v905
  %1403 = vmatprep.subr.bf16.mxu0 %v910
  %1404 = vmatpush1.bf16.msra.mxu0 %v909
  %1405 = vmatprep.subr.bf16.mxu0 %v914
  %1406 = vmatpush1.bf16.msra.mxu0 %v913
  %1407 = vmatprep.subr.bf16.mxu0 0
  %1408 = vmatpush1.bf16.msra.mxu0 0
  %1409 = vmatprep.subr.bf16.mxu0 0
  %1410 = vmatpush1.bf16.msra.mxu0 0
  %1411 = vmatprep.subr.bf16.mxu0 0
  %1412 = vmatpush1.bf16.msra.mxu0 0
  %1413 = vmatprep.subr.bf16.mxu0 0
  %1414 = vmatpush1.bf16.msra.mxu0 0
  %1415 = vmatprep.subr.bf16.mxu0 0
  %1416 = vmatpush1.bf16.msra.mxu0 0
  %1417 = vmatprep.subr.bf16.mxu0 0
  %1418 = vmatpush1.bf16.msra.mxu0 0
  %1419 = vmatprep.subr.bf16.mxu0 0
  %1420 = vmatpush1.bf16.msra.mxu0 0
  %1421 = vmatprep.subr.bf16.mxu0 0
  %1422 = vmatpush1.bf16.msra.mxu0 0
  %1423 = vmatprep.subr.bf16.mxu0 0
  %1424 = vmatpush1.bf16.msra.mxu0 0
  %1425 = vmatprep.subr.bf16.mxu0 0
  %1426 = vmatpush1.bf16.msra.mxu0 0
  %1427 = vmatprep.mubr.bf16.mxu0 0
  %1428 = vmatmul.mubr.bf16.gmra.mrb[0].mxu0 %v733
  %v1429 = vpop.f32.mrb[0].mxu0
  %v1430 = vadd.f32 %v1344, %v1429
  %v1431 = vpop.f32.mrb[0].mxu0
  %v1432 = vadd.f32 %v1346, %v1431
  %v1433 = vpop.f32.mrb[0].mxu0
  %v1434 = vadd.f32 %v1348, %v1433
  %v1435 = vpop.f32.mrb[0].mxu0
  %v1436 = vadd.f32 %v1350, %v1435
  %1437 = vdwg.mxu0
  %1438 = vmatprep.subr.bf16.mxu0 %v896
  %1439 = vmatpush1.bf16.msra.mxu0 %v895
  %1440 = vmatprep.subr.bf16.mxu0 %v900
  %1441 = vmatpush1.bf16.msra.mxu0 %v899
  %1442 = vmatprep.subr.bf16.mxu0 %v904
  %1443 = vmatpush1.bf16.msra.mxu0 %v903
  %1444 = vmatprep.subr.bf16.mxu0 %v908
  %1445 = vmatpush1.bf16.msra.mxu0 %v907
  %1446 = vmatprep.subr.bf16.mxu0 %v912
  %1447 = vmatpush1.bf16.msra.mxu0 %v911
  %1448 = vmatprep.subr.bf16.mxu0 %v916
  %1449 = vmatpush1.bf16.msra.mxu0 %v915
  %1450 = vmatprep.subr.bf16.mxu0 0
  %1451 = vmatpush1.bf16.msra.mxu0 0
  %1452 = vmatprep.subr.bf16.mxu0 0
  %1453 = vmatpush1.bf16.msra.mxu0 0
  %1454 = vmatprep.subr.bf16.mxu0 0
  %1455 = vmatpush1.bf16.msra.mxu0 0
  %1456 = vmatprep.subr.bf16.mxu0 0
  %1457 = vmatpush1.bf16.msra.mxu0 0
  %1458 = vmatprep.subr.bf16.mxu0 0
  %1459 = vmatpush1.bf16.msra.mxu0 0
  %1460 = vmatprep.subr.bf16.mxu0 0
  %1461 = vmatpush1.bf16.msra.mxu0 0
  %1462 = vmatprep.subr.bf16.mxu0 0
  %1463 = vmatpush1.bf16.msra.mxu0 0
  %1464 = vmatprep.subr.bf16.mxu0 0
  %1465 = vmatpush1.bf16.msra.mxu0 0
  %1466 = vmatprep.subr.bf16.mxu0 0
  %1467 = vmatpush1.bf16.msra.mxu0 0
  %1468 = vmatprep.subr.bf16.mxu0 0
  %1469 = vmatpush1.bf16.msra.mxu0 0
  %1470 = vmatprep.mubr.bf16.mxu0 0
  %1471 = vmatmul.mubr.bf16.gmra.mrb[0].mxu0 %v733
  %v1472 = vpop.f32.mrb[0].mxu0
  %v1473 = vadd.f32 %v1387, %v1472
  %v1474 = vpop.f32.mrb[0].mxu0
  %v1475 = vadd.f32 %v1389, %v1474
  %v1476 = vpop.f32.mrb[0].mxu0
  %v1477 = vadd.f32 %v1391, %v1476
  %v1478 = vpop.f32.mrb[0].mxu0
  %v1479 = vadd.f32 %v1393, %v1478
  %1480 = vdwg.mxu0
  %v1482 = vsel %vm461, %v561, 0
  %1484 = vmatprep.subr.bf16.mxu0 %v1128
  %1485 = vmatpush1.bf16.msra.mxu0 %v1127
  %1486 = vmatprep.subr.bf16.mxu0 %v1132
  %1487 = vmatpush1.bf16.msra.mxu0 %v1131
  %1488 = vmatprep.subr.bf16.mxu0 %v1136
  %1489 = vmatpush1.bf16.msra.mxu0 %v1135
  %1490 = vmatprep.subr.bf16.mxu0 %v1140
  %1491 = vmatpush1.bf16.msra.mxu0 %v1139
  %1492 = vmatprep.subr.bf16.mxu0 %v1144
  %1493 = vmatpush1.bf16.msra.mxu0 %v1143
  %1494 = vmatprep.subr.bf16.mxu0 %v1148
  %1495 = vmatpush1.bf16.msra.mxu0 %v1147
  %1496 = vmatprep.subr.bf16.mxu0 0
  %1497 = vmatpush1.bf16.msra.mxu0 0
  %1498 = vmatprep.subr.bf16.mxu0 0
  %1499 = vmatpush1.bf16.msra.mxu0 0
  %1500 = vmatprep.subr.bf16.mxu0 0
  %1501 = vmatpush1.bf16.msra.mxu0 0
  %1502 = vmatprep.subr.bf16.mxu0 0
  %1503 = vmatpush1.bf16.msra.mxu0 0
  %1504 = vmatprep.subr.bf16.mxu0 0
  %1505 = vmatpush1.bf16.msra.mxu0 0
  %1506 = vmatprep.subr.bf16.mxu0 0
  %1507 = vmatpush1.bf16.msra.mxu0 0
  %1508 = vmatprep.subr.bf16.mxu0 0
  %1509 = vmatpush1.bf16.msra.mxu0 0
  %1510 = vmatprep.subr.bf16.mxu0 0
  %1511 = vmatpush1.bf16.msra.mxu0 0
  %1512 = vmatprep.subr.bf16.mxu0 0
  %1513 = vmatpush1.bf16.msra.mxu0 0
  %1514 = vmatprep.subr.bf16.mxu0 0
  %1515 = vmatpush1.bf16.msra.mxu0 0
  %1516 = vmatprep.mubr.bf16.mxu0 0
  %1517 = vmatmul.mubr.bf16.gmra.mrb[0].mxu0 %v1482
  %v1518 = vpop.f32.mrb[0].mxu0
  %v1519 = vadd.f32 0.0, %v1518
  %v1520 = vpop.f32.mrb[0].mxu0
  %v1521 = vadd.f32 0.0, %v1520
  %v1522 = vpop.f32.mrb[0].mxu0
  %v1523 = vadd.f32 0.0, %v1522
  %v1524 = vpop.f32.mrb[0].mxu0
  %v1525 = vadd.f32 0.0, %v1524
  %1526 = vdwg.mxu0
  %1527 = vmatprep.subr.bf16.mxu0 %v1130
  %1528 = vmatpush1.bf16.msra.mxu0 %v1129
  %1529 = vmatprep.subr.bf16.mxu0 %v1134
  %1530 = vmatpush1.bf16.msra.mxu0 %v1133
  %1531 = vmatprep.subr.bf16.mxu0 %v1138
  %1532 = vmatpush1.bf16.msra.mxu0 %v1137
  %1533 = vmatprep.subr.bf16.mxu0 %v1142
  %1534 = vmatpush1.bf16.msra.mxu0 %v1141
  %1535 = vmatprep.subr.bf16.mxu0 %v1146
  %1536 = vmatpush1.bf16.msra.mxu0 %v1145
  %1537 = vmatprep.subr.bf16.mxu0 %v1150
  %1538 = vmatpush1.bf16.msra.mxu0 %v1149
  %1539 = vmatprep.subr.bf16.mxu0 0
  %1540 = vmatpush1.bf16.msra.mxu0 0
  %1541 = vmatprep.subr.bf16.mxu0 0
  %1542 = vmatpush1.bf16.msra.mxu0 0
  %1543 = vmatprep.subr.bf16.mxu0 0
  %1544 = vmatpush1.bf16.msra.mxu0 0
  %1545 = vmatprep.subr.bf16.mxu0 0
  %1546 = vmatpush1.bf16.msra.mxu0 0
  %1547 = vmatprep.subr.bf16.mxu0 0
  %1548 = vmatpush1.bf16.msra.mxu0 0
  %1549 = vmatprep.subr.bf16.mxu0 0
  %1550 = vmatpush1.bf16.msra.mxu0 0
  %1551 = vmatprep.subr.bf16.mxu0 0
  %1552 = vmatpush1.bf16.msra.mxu0 0
  %1553 = vmatprep.subr.bf16.mxu0 0
  %1554 = vmatpush1.bf16.msra.mxu0 0
  %1555 = vmatprep.subr.bf16.mxu0 0
  %1556 = vmatpush1.bf16.msra.mxu0 0
  %1557 = vmatprep.subr.bf16.mxu0 0
  %1558 = vmatpush1.bf16.msra.mxu0 0
  %1559 = vmatprep.mubr.bf16.mxu0 0
  %1560 = vmatmul.mubr.bf16.gmra.mrb[0].mxu0 %v1482
  %v1561 = vpop.f32.mrb[0].mxu0
  %v1562 = vadd.f32 0.0, %v1561
  %v1563 = vpop.f32.mrb[0].mxu0
  %v1564 = vadd.f32 0.0, %v1563
  %v1565 = vpop.f32.mrb[0].mxu0
  %v1566 = vadd.f32 0.0, %v1565
  %v1567 = vpop.f32.mrb[0].mxu0
  %v1568 = vadd.f32 0.0, %v1567
  %1569 = vdwg.mxu0
  %v1570 = vadd.f32 %v1430, %v1519
  %v1571 = vadd.f32 %v1432, %v1521
  %v1572 = vadd.f32 %v1473, %v1562
  %v1573 = vadd.f32 %v1475, %v1564
  %v1574 = vadd.f32 %v1434, %v1523
  %v1575 = vadd.f32 %v1436, %v1525
  %v1576 = vadd.f32 %v1477, %v1566
  %v1577 = vadd.f32 %v1479, %v1568
  %v1578 = vadd.f32 %v1570, %v1276
  %v1579 = vadd.f32 %v1571, %v1280
  %v1580 = vadd.f32 %v1572, %v1284
  %v1581 = vadd.f32 %v1573, %v1288
  %v1582 = vadd.f32 %v1574, %v1276
  %v1583 = vadd.f32 %v1575, %v1280
  %v1584 = vadd.f32 %v1576, %v1284
  %v1585 = vadd.f32 %v1577, %v1288
  %v1586 = vmax.f32 %v1578, 0.0
  %v1587 = vmax.f32 %v1579, 0.0
  %v1588 = vmax.f32 %v1580, 0.0
  %v1589 = vmax.f32 %v1581, 0.0
  %v1590 = vmax.f32 %v1582, 0.0
  %v1591 = vmax.f32 %v1583, 0.0
  %v1592 = vmax.f32 %v1584, 0.0
  %v1593 = vmax.f32 %v1585, 0.0
  %v1594 = vlaneseq
  %vm1595 = vcmp.ge.s32.totalorder %v1594, 0
  %vm1596 = vcmp.lt.s32.totalorder %v1594, 512
  %vm1597 = vmand %vm1595, %vm1596
  %1598 = vst.msk [vmem:[#allocation4] ss:$8 sm:$0xf] %vm1597, 0.0
  %1599 = vst.msk [vmem:[#allocation4] ss:$8 sm:$0x0] %vm1597, 0.0
  %vm1608 = vcmask 1040384
  %v1609 = vrot.slane %v1586, 7
  %v1610 = vrot.slane %v1587, 7
  %v1611 = vrot.slane %v1588, 7
  %v1612 = vrot.slane %v1589, 7
  %v1613 = vrot.slane %v1590, 7
  %v1614 = vsel %vm1608, %v1609, %v1613
  %v1615 = vrot.slane %v1591, 7
  %v1616 = vsel %vm1608, %v1610, %v1615
  %v1617 = vrot.slane %v1592, 7
  %v1618 = vsel %vm1608, %v1611, %v1617
  %v1619 = vrot.slane %v1593, 7
  %v1620 = vsel %vm1608, %v1612, %v1619
  %1633 = vst [vmem:[#allocation4] sm:$0xfe] %v1609
  %1634 = vst [vmem:[#allocation4 + $0x8] sm:$0xfe] %v1610
  %1635 = vst [vmem:[#allocation4 + $0x10] sm:$0xfe] %v1611
  %1636 = vst [vmem:[#allocation4 + $0x18] sm:$0xfe] %v1612
  %1637 = vst [vmem:[#allocation4 + $0x20] sm:$0xff] %v1614
  %1638 = vst [vmem:[#allocation4 + $0x28] sm:$0xff] %v1616
  %1639 = vst [vmem:[#allocation4 + $0x30] sm:$0xff] %v1618
  %1640 = vst [vmem:[#allocation4 + $0x38] sm:$0xff] %v1620
  %1641 = vst [vmem:[#allocation4 + $0x40] sm:$0x1] %v1613
  %1642 = vst [vmem:[#allocation4 + $0x48] sm:$0x1] %v1615
  %1643 = vst [vmem:[#allocation4 + $0x50] sm:$0x1] %v1617
  %1644 = vst [vmem:[#allocation4 + $0x58] sm:$0x1] %v1619
  %1645 = vst [vmem:[#allocation5] sm:$0xff] %v1301
  %1646 = vst [vmem:[#allocation5 + $0x8] sm:$0xff] %v1302
  %1647 = vst [vmem:[#allocation5 + $0x10] sm:$0xff] %v1303
  %1648 = vst [vmem:[#allocation5 + $0x18] sm:$0xff] %v1304
  %1649 = vst [vmem:[#allocation5 + $0x20] sm:$0xff] %v1305
  %1650 = vst [vmem:[#allocation5 + $0x28] sm:$0xff] %v1306
  %1651 = vst [vmem:[#allocation5 + $0x30] sm:$0xff] %v1307
  %1652 = vst [vmem:[#allocation5 + $0x38] sm:$0xff] %v1308
  %v1653 = vld [vmem:[#allocation4] sm:$0xff]
  %v1654 = vld [vmem:[#allocation4 + $0x8] sm:$0xff]
  %v1655 = vld [vmem:[#allocation4 + $0x10] sm:$0xff]
  %v1656 = vld [vmem:[#allocation4 + $0x18] sm:$0xff]
  %v1657 = vld [vmem:[#allocation4 + $0x20] sm:$0xff]
  %v1658 = vld [vmem:[#allocation4 + $0x28] sm:$0xff]
  %v1659 = vld [vmem:[#allocation4 + $0x30] sm:$0xff]
  %v1660 = vld [vmem:[#allocation4 + $0x38] sm:$0xff]
  %v1661 = vpack.c.bf16 %v1657, %v1653
  %v1662 = vpack.c.bf16 %v1658, %v1654
  %v1663 = vpack.c.bf16 %v1659, %v1655
  %v1664 = vpack.c.bf16 %v1660, %v1656
  %v1665 = vld [vmem:[#allocation5] sm:$0xff]
  %v1666 = vld [vmem:[#allocation5 + $0x8] sm:$0xff]
  %v1667 = vld [vmem:[#allocation5 + $0x10] sm:$0xff]
  %v1668 = vld [vmem:[#allocation5 + $0x18] sm:$0xff]
  %v1669 = vld [vmem:[#allocation5 + $0x20] sm:$0xff]
  %v1670 = vld [vmem:[#allocation5 + $0x28] sm:$0xff]
  %v1671 = vld [vmem:[#allocation5 + $0x30] sm:$0xff]
  %v1672 = vld [vmem:[#allocation5 + $0x38] sm:$0xff]
  %v1673 = vpack.c.bf16 %v1669, %v1665
  %v1674 = vpack.c.bf16 %v1670, %v1666
  %v1675 = vpack.c.bf16 %v1671, %v1667
  %v1676 = vpack.c.bf16 %v1672, %v1668
  %v1677 = vld [vmem:[#allocation4] sm:$0xfe]
  %v1678 = vld [vmem:[#allocation4 + $0x8] sm:$0xfe]
  %v1679 = vld [vmem:[#allocation4 + $0x10] sm:$0xfe]
  %v1680 = vld [vmem:[#allocation4 + $0x18] sm:$0xfe]
  %v1681 = vld [vmem:[#allocation4 + $0x40] sm:$0x1]
  %v1682 = vld [vmem:[#allocation4 + $0x48] sm:$0x1]
  %v1683 = vld [vmem:[#allocation4 + $0x50] sm:$0x1]
  %v1684 = vld [vmem:[#allocation4 + $0x58] sm:$0x1]
  %v1685 = vpack.c.bf16 %v1657, %v1677
  %v1686 = vpack.c.bf16 %v1658, %v1678
  %v1687 = vpack.c.bf16 %v1659, %v1679
  %v1688 = vpack.c.bf16 %v1660, %v1680
  %v1689 = vpack.c.bf16 %v1681, %v1681
  %v1690 = vpack.c.bf16 %v1682, %v1682
  %v1691 = vpack.c.bf16 %v1683, %v1683
  %v1692 = vpack.c.bf16 %v1684, %v1684
  %v1693 = vld [vmem:[%s6] sm:$0xff]
  %v1694 = vld [vmem:[%s6 + $0x8] sm:$0xff]
  %v1695 = vld [vmem:[%s6 + $0x10] sm:$0xff]
  %v1696 = vld [vmem:[%s6 + $0x18] sm:$0xff]
  %v1697 = vld [vmem:[%s6 + $0x20] sm:$0xff]
  %v1698 = vld [vmem:[%s6 + $0x28] sm:$0xff]
  %v1699 = vld [vmem:[%s6 + $0x30] sm:$0xff]
  %v1700 = vld [vmem:[%s6 + $0x38] sm:$0xff]
  %v1701 = vld [vmem:[%s6 + $0x40] sm:$0xff]
  %v1702 = vld [vmem:[%s6 + $0x48] sm:$0xff]
  %v1703 = vld [vmem:[%s6 + $0x50] sm:$0xff]
  %v1704 = vld [vmem:[%s6 + $0x58] sm:$0xff]
  %v1705 = vld [vmem:[%s6 + $0x60] sm:$0xff]
  %v1706 = vld [vmem:[%s6 + $0x68] sm:$0xff]
  %v1707 = vld [vmem:[%s6 + $0x70] sm:$0xff]
  %v1708 = vld [vmem:[%s6 + $0x78] sm:$0xff]
  %v1709 = vld [vmem:[%s6 + $0x80] sm:$0xff]
  %v1710 = vld [vmem:[%s6 + $0x88] sm:$0xff]
  %v1711 = vld [vmem:[%s6 + $0x90] sm:$0xff]
  %v1712 = vld [vmem:[%s6 + $0x98] sm:$0xff]
  %v1713 = vld [vmem:[%s6 + $0xa0] sm:$0xff]
  %v1714 = vld [vmem:[%s6 + $0xa8] sm:$0xff]
  %v1715 = vld [vmem:[%s6 + $0xb0] sm:$0xff]
  %v1716 = vld [vmem:[%s6 + $0xb8] sm:$0xff]
  %v1717 = vld [vmem:[%s6 + $0xc0] sm:$0xff]
  %v1718 = vld [vmem:[%s6 + $0xc8] sm:$0xff]
  %v1719 = vld [vmem:[%s6 + $0xd0] sm:$0xff]
  %v1720 = vld [vmem:[%s6 + $0xd8] sm:$0xff]
  %v1721 = vld [vmem:[%s6 + $0xe0] sm:$0xff]
  %v1722 = vld [vmem:[%s6 + $0xe8] sm:$0xff]
  %v1723 = vld [vmem:[%s6 + $0xf0] sm:$0xff]
  %v1724 = vld [vmem:[%s6 + $0xf8] sm:$0xff]
  %v1725 = vld [vmem:[%s6 + $0x100] sm:$0xff]
  %v1726 = vld [vmem:[%s6 + $0x108] sm:$0xff]
  %v1727 = vld [vmem:[%s6 + $0x110] sm:$0xff]
  %v1728 = vld [vmem:[%s6 + $0x118] sm:$0xff]
  %v1729 = vld [vmem:[%s6 + $0x120] sm:$0xff]
  %v1730 = vld [vmem:[%s6 + $0x128] sm:$0xff]
  %v1731 = vld [vmem:[%s6 + $0x130] sm:$0xff]
  %v1732 = vld [vmem:[%s6 + $0x138] sm:$0xff]
  %v1733 = vld [vmem:[%s6 + $0x140] sm:$0xff]
  %v1734 = vld [vmem:[%s6 + $0x148] sm:$0xff]
  %v1735 = vld [vmem:[%s6 + $0x150] sm:$0xff]
  %v1736 = vld [vmem:[%s6 + $0x158] sm:$0xff]
  %v1737 = vld [vmem:[%s6 + $0x160] sm:$0xff]
  %v1738 = vld [vmem:[%s6 + $0x168] sm:$0xff]
  %v1739 = vld [vmem:[%s6 + $0x170] sm:$0xff]
  %v1740 = vld [vmem:[%s6 + $0x178] sm:$0xff]
  %v1741 = vld [vmem:[%s6 + $0x180] sm:$0xff]
  %v1742 = vld [vmem:[%s6 + $0x188] sm:$0xff]
  %v1743 = vld [vmem:[%s6 + $0x190] sm:$0xff]
  %v1744 = vld [vmem:[%s6 + $0x198] sm:$0xff]
  %v1745 = vld [vmem:[%s6 + $0x1a0] sm:$0xff]
  %v1746 = vld [vmem:[%s6 + $0x1a8] sm:$0xff]
  %v1747 = vld [vmem:[%s6 + $0x1b0] sm:$0xff]
  %v1748 = vld [vmem:[%s6 + $0x1b8] sm:$0xff]
  %v1749 = vld [vmem:[%s6 + $0x1c0] sm:$0xff]
  %v1750 = vld [vmem:[%s6 + $0x1c8] sm:$0xff]
  %v1751 = vld [vmem:[%s6 + $0x1d0] sm:$0xff]
  %v1752 = vld [vmem:[%s6 + $0x1d8] sm:$0xff]
  %v1753 = vld [vmem:[%s6 + $0x1e0] sm:$0xff]
  %v1754 = vld [vmem:[%s6 + $0x1e8] sm:$0xff]
  %v1755 = vld [vmem:[%s6 + $0x1f0] sm:$0xff]
  %v1756 = vld [vmem:[%s6 + $0x1f8] sm:$0xff]
  %v1757 = vld [vmem:[%s6 + $0x200] sm:$0xff]
  %v1758 = vld [vmem:[%s6 + $0x208] sm:$0xff]
  %v1759 = vld [vmem:[%s6 + $0x210] sm:$0xff]
  %v1760 = vld [vmem:[%s6 + $0x218] sm:$0xff]
  %v1761 = vld [vmem:[%s6 + $0x220] sm:$0xff]
  %v1762 = vld [vmem:[%s6 + $0x228] sm:$0xff]
  %v1763 = vld [vmem:[%s6 + $0x230] sm:$0xff]
  %v1764 = vld [vmem:[%s6 + $0x238] sm:$0xff]
  %v1765 = vld [vmem:[%s6 + $0x240] sm:$0xff]
  %v1766 = vld [vmem:[%s6 + $0x248] sm:$0xff]
  %v1767 = vld [vmem:[%s6 + $0x250] sm:$0xff]
  %v1768 = vld [vmem:[%s6 + $0x258] sm:$0xff]
  %v1769 = vld [vmem:[%s6 + $0x260] sm:$0xff]
  %v1770 = vld [vmem:[%s6 + $0x268] sm:$0xff]
  %v1771 = vld [vmem:[%s6 + $0x270] sm:$0xff]
  %v1772 = vld [vmem:[%s6 + $0x278] sm:$0xff]
  %v1773 = vld [vmem:[%s6 + $0x280] sm:$0xff]
  %v1774 = vld [vmem:[%s6 + $0x288] sm:$0xff]
  %v1775 = vld [vmem:[%s6 + $0x290] sm:$0xff]
  %v1776 = vld [vmem:[%s6 + $0x298] sm:$0xff]
  %v1777 = vld [vmem:[%s6 + $0x2a0] sm:$0xff]
  %v1778 = vld [vmem:[%s6 + $0x2a8] sm:$0xff]
  %v1779 = vld [vmem:[%s6 + $0x2b0] sm:$0xff]
  %v1780 = vld [vmem:[%s6 + $0x2b8] sm:$0xff]
  %v1781 = vld [vmem:[%s6 + $0x2c0] sm:$0xff]
  %v1782 = vld [vmem:[%s6 + $0x2c8] sm:$0xff]
  %v1783 = vld [vmem:[%s6 + $0x2d0] sm:$0xff]
  %v1784 = vld [vmem:[%s6 + $0x2d8] sm:$0xff]
  %v1785 = vld [vmem:[%s6 + $0x2e0] sm:$0xff]
  %v1786 = vld [vmem:[%s6 + $0x2e8] sm:$0xff]
  %v1787 = vld [vmem:[%s6 + $0x2f0] sm:$0xff]
  %v1788 = vld [vmem:[%s6 + $0x2f8] sm:$0xff]
  %v1789 = vld [vmem:[%s6 + $0x300] sm:$0xff]
  %v1790 = vld [vmem:[%s6 + $0x308] sm:$0xff]
  %v1791 = vld [vmem:[%s6 + $0x310] sm:$0xff]
  %v1792 = vld [vmem:[%s6 + $0x318] sm:$0xff]
  %v1793 = vld [vmem:[%s6 + $0x320] sm:$0xff]
  %v1794 = vld [vmem:[%s6 + $0x328] sm:$0xff]
  %v1795 = vld [vmem:[%s6 + $0x330] sm:$0xff]
  %v1796 = vld [vmem:[%s6 + $0x338] sm:$0xff]
  %v1797 = vld [vmem:[%s6 + $0x340] sm:$0xff]
  %v1798 = vld [vmem:[%s6 + $0x348] sm:$0xff]
  %v1799 = vld [vmem:[%s6 + $0x350] sm:$0xff]
  %v1800 = vld [vmem:[%s6 + $0x358] sm:$0xff]
  %v1801 = vld [vmem:[%s6 + $0x360] sm:$0xff]
  %v1802 = vld [vmem:[%s6 + $0x368] sm:$0xff]
  %v1803 = vld [vmem:[%s6 + $0x370] sm:$0xff]
  %v1804 = vld [vmem:[%s6 + $0x378] sm:$0xff]
  %v1805 = vld [vmem:[%s6 + $0x380] sm:$0xff]
  %v1806 = vld [vmem:[%s6 + $0x388] sm:$0xff]
  %v1807 = vld [vmem:[%s6 + $0x390] sm:$0xff]
  %v1808 = vld [vmem:[%s6 + $0x398] sm:$0xff]
  %v1809 = vld [vmem:[%s6 + $0x3a0] sm:$0xff]
  %v1810 = vld [vmem:[%s6 + $0x3a8] sm:$0xff]
  %v1811 = vld [vmem:[%s6 + $0x3b0] sm:$0xff]
  %v1812 = vld [vmem:[%s6 + $0x3b8] sm:$0xff]
  %v1813 = vld [vmem:[%s6 + $0x3c0] sm:$0xff]
  %v1814 = vld [vmem:[%s6 + $0x3c8] sm:$0xff]
  %v1815 = vld [vmem:[%s6 + $0x3d0] sm:$0xff]
  %v1816 = vld [vmem:[%s6 + $0x3d8] sm:$0xff]
  %v1817 = vld [vmem:[%s6 + $0x3e0] sm:$0xff]
  %v1818 = vld [vmem:[%s6 + $0x3e8] sm:$0xff]
  %v1819 = vld [vmem:[%s6 + $0x3f0] sm:$0xff]
  %v1820 = vld [vmem:[%s6 + $0x3f8] sm:$0xff]
  %s1821 = scalar_lea.vmem %s6, 1024
  %v1822 = vld [vmem:[%s1821] sm:$0xff]
  %v1823 = vld [vmem:[%s1821 + $0x8] sm:$0xff]
  %v1824 = vld [vmem:[%s1821 + $0x10] sm:$0xff]
  %v1825 = vld [vmem:[%s1821 + $0x18] sm:$0xff]
  %v1826 = vld [vmem:[%s1821 + $0x20] sm:$0xff]
  %v1827 = vld [vmem:[%s1821 + $0x28] sm:$0xff]
  %v1828 = vld [vmem:[%s1821 + $0x30] sm:$0xff]
  %v1829 = vld [vmem:[%s1821 + $0x38] sm:$0xff]
  %v1830 = vld [vmem:[%s1821 + $0x40] sm:$0xff]
  %v1831 = vld [vmem:[%s1821 + $0x48] sm:$0xff]
  %v1832 = vld [vmem:[%s1821 + $0x50] sm:$0xff]
  %v1833 = vld [vmem:[%s1821 + $0x58] sm:$0xff]
  %v1834 = vld [vmem:[%s1821 + $0x60] sm:$0xff]
  %v1835 = vld [vmem:[%s1821 + $0x68] sm:$0xff]
  %v1836 = vld [vmem:[%s1821 + $0x70] sm:$0xff]
  %v1837 = vld [vmem:[%s1821 + $0x78] sm:$0xff]
  %v1838 = vld [vmem:[%s1821 + $0x80] sm:$0xff]
  %v1839 = vld [vmem:[%s1821 + $0x88] sm:$0xff]
  %v1840 = vld [vmem:[%s1821 + $0x90] sm:$0xff]
  %v1841 = vld [vmem:[%s1821 + $0x98] sm:$0xff]
  %v1842 = vld [vmem:[%s1821 + $0xa0] sm:$0xff]
  %v1843 = vld [vmem:[%s1821 + $0xa8] sm:$0xff]
  %v1844 = vld [vmem:[%s1821 + $0xb0] sm:$0xff]
  %v1845 = vld [vmem:[%s1821 + $0xb8] sm:$0xff]
  %v1846 = vld [vmem:[%s1821 + $0xc0] sm:$0xff]
  %v1847 = vld [vmem:[%s1821 + $0xc8] sm:$0xff]
  %v1848 = vld [vmem:[%s1821 + $0xd0] sm:$0xff]
  %v1849 = vld [vmem:[%s1821 + $0xd8] sm:$0xff]
  %v1850 = vld [vmem:[%s1821 + $0xe0] sm:$0xff]
  %v1851 = vld [vmem:[%s1821 + $0xe8] sm:$0xff]
  %v1852 = vld [vmem:[%s1821 + $0xf0] sm:$0xff]
  %v1853 = vld [vmem:[%s1821 + $0xf8] sm:$0xff]
  %v1854 = vld [vmem:[%s1821 + $0x100] sm:$0xff]
  %v1855 = vld [vmem:[%s1821 + $0x108] sm:$0xff]
  %v1856 = vld [vmem:[%s1821 + $0x110] sm:$0xff]
  %v1857 = vld [vmem:[%s1821 + $0x118] sm:$0xff]
  %v1858 = vld [vmem:[%s1821 + $0x120] sm:$0xff]
  %v1859 = vld [vmem:[%s1821 + $0x128] sm:$0xff]
  %v1860 = vld [vmem:[%s1821 + $0x130] sm:$0xff]
  %v1861 = vld [vmem:[%s1821 + $0x138] sm:$0xff]
  %v1862 = vld [vmem:[%s1821 + $0x140] sm:$0xff]
  %v1863 = vld [vmem:[%s1821 + $0x148] sm:$0xff]
  %v1864 = vld [vmem:[%s1821 + $0x150] sm:$0xff]
  %v1865 = vld [vmem:[%s1821 + $0x158] sm:$0xff]
  %v1866 = vld [vmem:[%s1821 + $0x160] sm:$0xff]
  %v1867 = vld [vmem:[%s1821 + $0x168] sm:$0xff]
  %v1868 = vld [vmem:[%s1821 + $0x170] sm:$0xff]
  %v1869 = vld [vmem:[%s1821 + $0x178] sm:$0xff]
  %v1870 = vld [vmem:[%s1821 + $0x180] sm:$0xff]
  %v1871 = vld [vmem:[%s1821 + $0x188] sm:$0xff]
  %v1872 = vld [vmem:[%s1821 + $0x190] sm:$0xff]
  %v1873 = vld [vmem:[%s1821 + $0x198] sm:$0xff]
  %v1874 = vld [vmem:[%s1821 + $0x1a0] sm:$0xff]
  %v1875 = vld [vmem:[%s1821 + $0x1a8] sm:$0xff]
  %v1876 = vld [vmem:[%s1821 + $0x1b0] sm:$0xff]
  %v1877 = vld [vmem:[%s1821 + $0x1b8] sm:$0xff]
  %v1878 = vld [vmem:[%s1821 + $0x1c0] sm:$0xff]
  %v1879 = vld [vmem:[%s1821 + $0x1c8] sm:$0xff]
  %v1880 = vld [vmem:[%s1821 + $0x1d0] sm:$0xff]
  %v1881 = vld [vmem:[%s1821 + $0x1d8] sm:$0xff]
  %v1882 = vld [vmem:[%s1821 + $0x1e0] sm:$0xff]
  %v1883 = vld [vmem:[%s1821 + $0x1e8] sm:$0xff]
  %v1884 = vld [vmem:[%s1821 + $0x1f0] sm:$0xff]
  %v1885 = vld [vmem:[%s1821 + $0x1f8] sm:$0xff]
  %v1886 = vld [vmem:[%s1821 + $0x200] sm:$0xff]
  %v1887 = vld [vmem:[%s1821 + $0x208] sm:$0xff]
  %v1888 = vld [vmem:[%s1821 + $0x210] sm:$0xff]
  %v1889 = vld [vmem:[%s1821 + $0x218] sm:$0xff]
  %v1890 = vld [vmem:[%s1821 + $0x220] sm:$0xff]
  %v1891 = vld [vmem:[%s1821 + $0x228] sm:$0xff]
  %v1892 = vld [vmem:[%s1821 + $0x230] sm:$0xff]
  %v1893 = vld [vmem:[%s1821 + $0x238] sm:$0xff]
  %v1894 = vld [vmem:[%s1821 + $0x240] sm:$0xff]
  %v1895 = vld [vmem:[%s1821 + $0x248] sm:$0xff]
  %v1896 = vld [vmem:[%s1821 + $0x250] sm:$0xff]
  %v1897 = vld [vmem:[%s1821 + $0x258] sm:$0xff]
  %v1898 = vld [vmem:[%s1821 + $0x260] sm:$0xff]
  %v1899 = vld [vmem:[%s1821 + $0x268] sm:$0xff]
  %v1900 = vld [vmem:[%s1821 + $0x270] sm:$0xff]
  %v1901 = vld [vmem:[%s1821 + $0x278] sm:$0xff]
  %v1902 = vld [vmem:[%s1821 + $0x280] sm:$0xff]
  %v1903 = vld [vmem:[%s1821 + $0x288] sm:$0xff]
  %v1904 = vld [vmem:[%s1821 + $0x290] sm:$0xff]
  %v1905 = vld [vmem:[%s1821 + $0x298] sm:$0xff]
  %v1906 = vld [vmem:[%s1821 + $0x2a0] sm:$0xff]
  %v1907 = vld [vmem:[%s1821 + $0x2a8] sm:$0xff]
  %v1908 = vld [vmem:[%s1821 + $0x2b0] sm:$0xff]
  %v1909 = vld [vmem:[%s1821 + $0x2b8] sm:$0xff]
  %v1910 = vld [vmem:[%s1821 + $0x2c0] sm:$0xff]
  %v1911 = vld [vmem:[%s1821 + $0x2c8] sm:$0xff]
  %v1912 = vld [vmem:[%s1821 + $0x2d0] sm:$0xff]
  %v1913 = vld [vmem:[%s1821 + $0x2d8] sm:$0xff]
  %v1914 = vld [vmem:[%s1821 + $0x2e0] sm:$0xff]
  %v1915 = vld [vmem:[%s1821 + $0x2e8] sm:$0xff]
  %v1916 = vld [vmem:[%s1821 + $0x2f0] sm:$0xff]
  %v1917 = vld [vmem:[%s1821 + $0x2f8] sm:$0xff]
  %v1918 = vld [vmem:[%s1821 + $0x300] sm:$0xff]
  %v1919 = vld [vmem:[%s1821 + $0x308] sm:$0xff]
  %v1920 = vld [vmem:[%s1821 + $0x310] sm:$0xff]
  %v1921 = vld [vmem:[%s1821 + $0x318] sm:$0xff]
  %v1922 = vld [vmem:[%s1821 + $0x320] sm:$0xff]
  %v1923 = vld [vmem:[%s1821 + $0x328] sm:$0xff]
  %v1924 = vld [vmem:[%s1821 + $0x330] sm:$0xff]
  %v1925 = vld [vmem:[%s1821 + $0x338] sm:$0xff]
  %v1926 = vld [vmem:[%s1821 + $0x340] sm:$0xff]
  %v1927 = vld [vmem:[%s1821 + $0x348] sm:$0xff]
  %v1928 = vld [vmem:[%s1821 + $0x350] sm:$0xff]
  %v1929 = vld [vmem:[%s1821 + $0x358] sm:$0xff]
  %v1930 = vld [vmem:[%s1821 + $0x360] sm:$0xff]
  %v1931 = vld [vmem:[%s1821 + $0x368] sm:$0xff]
  %v1932 = vld [vmem:[%s1821 + $0x370] sm:$0xff]
  %v1933 = vld [vmem:[%s1821 + $0x378] sm:$0xff]
  %v1934 = vld [vmem:[%s1821 + $0x380] sm:$0xff]
  %v1935 = vld [vmem:[%s1821 + $0x388] sm:$0xff]
  %v1936 = vld [vmem:[%s1821 + $0x390] sm:$0xff]
  %v1937 = vld [vmem:[%s1821 + $0x398] sm:$0xff]
  %v1938 = vld [vmem:[%s1821 + $0x3a0] sm:$0xff]
  %v1939 = vld [vmem:[%s1821 + $0x3a8] sm:$0xff]
  %v1940 = vld [vmem:[%s1821 + $0x3b0] sm:$0xff]
  %v1941 = vld [vmem:[%s1821 + $0x3b8] sm:$0xff]
  %v1942 = vld [vmem:[%s1821 + $0x3c0] sm:$0xff]
  %v1943 = vld [vmem:[%s1821 + $0x3c8] sm:$0xff]
  %v1944 = vld [vmem:[%s1821 + $0x3d0] sm:$0xff]
  %v1945 = vld [vmem:[%s1821 + $0x3d8] sm:$0xff]
  %v1946 = vld [vmem:[%s1821 + $0x3e0] sm:$0xff]
  %v1947 = vld [vmem:[%s1821 + $0x3e8] sm:$0xff]
  %v1948 = vld [vmem:[%s1821 + $0x3f0] sm:$0xff]
  %v1949 = vld [vmem:[%s1821 + $0x3f8] sm:$0xff]
  %v2078 = vunpack.c.l.b16 %v1822
  %v2079 = vunpack.c.h.b16 %v1822
  %v2080 = vunpack.c.l.b16 %v1823
  %v2081 = vunpack.c.h.b16 %v1823
  %v2082 = vunpack.c.l.b16 %v1824
  %v2083 = vunpack.c.h.b16 %v1824
  %v2084 = vunpack.c.l.b16 %v1825
  %v2085 = vunpack.c.h.b16 %v1825
  %v2086 = vunpack.c.l.b16 %v1826
  %v2087 = vunpack.c.h.b16 %v1826
  %v2088 = vunpack.c.l.b16 %v1827
  %v2089 = vunpack.c.h.b16 %v1827
  %v2090 = vunpack.c.l.b16 %v1828
  %v2091 = vunpack.c.h.b16 %v1828
  %v2092 = vunpack.c.l.b16 %v1829
  %v2093 = vunpack.c.h.b16 %v1829
  %v2094 = vunpack.c.l.b16 %v1830
  %v2095 = vunpack.c.h.b16 %v1830
  %v2096 = vunpack.c.l.b16 %v1831
  %v2097 = vunpack.c.h.b16 %v1831
  %v2098 = vunpack.c.l.b16 %v1832
  %v2099 = vunpack.c.h.b16 %v1832
  %v2100 = vunpack.c.l.b16 %v1833
  %v2101 = vunpack.c.h.b16 %v1833
  %v2102 = vunpack.c.l.b16 %v1834
  %v2103 = vunpack.c.h.b16 %v1834
  %v2104 = vunpack.c.l.b16 %v1835
  %v2105 = vunpack.c.h.b16 %v1835
  %v2106 = vunpack.c.l.b16 %v1836
  %v2107 = vunpack.c.h.b16 %v1836
  %v2108 = vunpack.c.l.b16 %v1837
  %v2109 = vunpack.c.h.b16 %v1837
  %v2110 = vunpack.c.l.b16 %v1838
  %v2111 = vunpack.c.h.b16 %v1838
  %v2112 = vunpack.c.l.b16 %v1839
  %v2113 = vunpack.c.h.b16 %v1839
  %v2114 = vunpack.c.l.b16 %v1840
  %v2115 = vunpack.c.h.b16 %v1840
  %v2116 = vunpack.c.l.b16 %v1841
  %v2117 = vunpack.c.h.b16 %v1841
  %v2118 = vunpack.c.l.b16 %v1842
  %v2119 = vunpack.c.h.b16 %v1842
  %v2120 = vunpack.c.l.b16 %v1843
  %v2121 = vunpack.c.h.b16 %v1843
  %v2122 = vunpack.c.l.b16 %v1844
  %v2123 = vunpack.c.h.b16 %v1844
  %v2124 = vunpack.c.l.b16 %v1845
  %v2125 = vunpack.c.h.b16 %v1845
  %v2126 = vunpack.c.l.b16 %v1846
  %v2127 = vunpack.c.h.b16 %v1846
  %v2128 = vunpack.c.l.b16 %v1847
  %v2129 = vunpack.c.h.b16 %v1847
  %v2130 = vunpack.c.l.b16 %v1848
  %v2131 = vunpack.c.h.b16 %v1848
  %v2132 = vunpack.c.l.b16 %v1849
  %v2133 = vunpack.c.h.b16 %v1849
  %v2134 = vunpack.c.l.b16 %v1850
  %v2135 = vunpack.c.h.b16 %v1850
  %v2136 = vunpack.c.l.b16 %v1851
  %v2137 = vunpack.c.h.b16 %v1851
  %v2138 = vunpack.c.l.b16 %v1852
  %v2139 = vunpack.c.h.b16 %v1852
  %v2140 = vunpack.c.l.b16 %v1853
  %v2141 = vunpack.c.h.b16 %v1853
  %v2142 = vunpack.c.l.b16 %v1854
  %v2143 = vunpack.c.h.b16 %v1854
  %v2144 = vunpack.c.l.b16 %v1855
  %v2145 = vunpack.c.h.b16 %v1855
  %v2146 = vunpack.c.l.b16 %v1856
  %v2147 = vunpack.c.h.b16 %v1856
  %v2148 = vunpack.c.l.b16 %v1857
  %v2149 = vunpack.c.h.b16 %v1857
  %v2150 = vunpack.c.l.b16 %v1858
  %v2151 = vunpack.c.h.b16 %v1858
  %v2152 = vunpack.c.l.b16 %v1859
  %v2153 = vunpack.c.h.b16 %v1859
  %v2154 = vunpack.c.l.b16 %v1860
  %v2155 = vunpack.c.h.b16 %v1860
  %v2156 = vunpack.c.l.b16 %v1861
  %v2157 = vunpack.c.h.b16 %v1861
  %v2158 = vunpack.c.l.b16 %v1862
  %v2159 = vunpack.c.h.b16 %v1862
  %v2160 = vunpack.c.l.b16 %v1863
  %v2161 = vunpack.c.h.b16 %v1863
  %v2162 = vunpack.c.l.b16 %v1864
  %v2163 = vunpack.c.h.b16 %v1864
  %v2164 = vunpack.c.l.b16 %v1865
  %v2165 = vunpack.c.h.b16 %v1865
  %v2166 = vunpack.c.l.b16 %v1866
  %v2167 = vunpack.c.h.b16 %v1866
  %v2168 = vunpack.c.l.b16 %v1867
  %v2169 = vunpack.c.h.b16 %v1867
  %v2170 = vunpack.c.l.b16 %v1868
  %v2171 = vunpack.c.h.b16 %v1868
  %v2172 = vunpack.c.l.b16 %v1869
  %v2173 = vunpack.c.h.b16 %v1869
  %v2174 = vunpack.c.l.b16 %v1870
  %v2175 = vunpack.c.h.b16 %v1870
  %v2176 = vunpack.c.l.b16 %v1871
  %v2177 = vunpack.c.h.b16 %v1871
  %v2178 = vunpack.c.l.b16 %v1872
  %v2179 = vunpack.c.h.b16 %v1872
  %v2180 = vunpack.c.l.b16 %v1873
  %v2181 = vunpack.c.h.b16 %v1873
  %v2182 = vunpack.c.l.b16 %v1874
  %v2183 = vunpack.c.h.b16 %v1874
  %v2184 = vunpack.c.l.b16 %v1875
  %v2185 = vunpack.c.h.b16 %v1875
  %v2186 = vunpack.c.l.b16 %v1876
  %v2187 = vunpack.c.h.b16 %v1876
  %v2188 = vunpack.c.l.b16 %v1877
  %v2189 = vunpack.c.h.b16 %v1877
  %v2190 = vunpack.c.l.b16 %v1878
  %v2191 = vunpack.c.h.b16 %v1878
  %v2192 = vunpack.c.l.b16 %v1879
  %v2193 = vunpack.c.h.b16 %v1879
  %v2194 = vunpack.c.l.b16 %v1880
  %v2195 = vunpack.c.h.b16 %v1880
  %v2196 = vunpack.c.l.b16 %v1881
  %v2197 = vunpack.c.h.b16 %v1881
  %v2198 = vunpack.c.l.b16 %v1882
  %v2199 = vunpack.c.h.b16 %v1882
  %v2200 = vunpack.c.l.b16 %v1883
  %v2201 = vunpack.c.h.b16 %v1883
  %v2202 = vunpack.c.l.b16 %v1884
  %v2203 = vunpack.c.h.b16 %v1884
  %v2204 = vunpack.c.l.b16 %v1885
  %v2205 = vunpack.c.h.b16 %v1885
  %v2206 = vunpack.c.l.b16 %v1886
  %v2207 = vunpack.c.h.b16 %v1886
  %v2208 = vunpack.c.l.b16 %v1887
  %v2209 = vunpack.c.h.b16 %v1887
  %v2210 = vunpack.c.l.b16 %v1888
  %v2211 = vunpack.c.h.b16 %v1888
  %v2212 = vunpack.c.l.b16 %v1889
  %v2213 = vunpack.c.h.b16 %v1889
  %v2214 = vunpack.c.l.b16 %v1890
  %v2215 = vunpack.c.h.b16 %v1890
  %v2216 = vunpack.c.l.b16 %v1891
  %v2217 = vunpack.c.h.b16 %v1891
  %v2218 = vunpack.c.l.b16 %v1892
  %v2219 = vunpack.c.h.b16 %v1892
  %v2220 = vunpack.c.l.b16 %v1893
  %v2221 = vunpack.c.h.b16 %v1893
  %v2222 = vunpack.c.l.b16 %v1894
  %v2223 = vunpack.c.h.b16 %v1894
  %v2224 = vunpack.c.l.b16 %v1895
  %v2225 = vunpack.c.h.b16 %v1895
  %v2226 = vunpack.c.l.b16 %v1896
  %v2227 = vunpack.c.h.b16 %v1896
  %v2228 = vunpack.c.l.b16 %v1897
  %v2229 = vunpack.c.h.b16 %v1897
  %v2230 = vunpack.c.l.b16 %v1898
  %v2231 = vunpack.c.h.b16 %v1898
  %v2232 = vunpack.c.l.b16 %v1899
  %v2233 = vunpack.c.h.b16 %v1899
  %v2234 = vunpack.c.l.b16 %v1900
  %v2235 = vunpack.c.h.b16 %v1900
  %v2236 = vunpack.c.l.b16 %v1901
  %v2237 = vunpack.c.h.b16 %v1901
  %v2238 = vunpack.c.l.b16 %v1902
  %v2239 = vunpack.c.h.b16 %v1902
  %v2240 = vunpack.c.l.b16 %v1903
  %v2241 = vunpack.c.h.b16 %v1903
  %v2242 = vunpack.c.l.b16 %v1904
  %v2243 = vunpack.c.h.b16 %v1904
  %v2244 = vunpack.c.l.b16 %v1905
  %v2245 = vunpack.c.h.b16 %v1905
  %v2246 = vunpack.c.l.b16 %v1906
  %v2247 = vunpack.c.h.b16 %v1906
  %v2248 = vunpack.c.l.b16 %v1907
  %v2249 = vunpack.c.h.b16 %v1907
  %v2250 = vunpack.c.l.b16 %v1908
  %v2251 = vunpack.c.h.b16 %v1908
  %v2252 = vunpack.c.l.b16 %v1909
  %v2253 = vunpack.c.h.b16 %v1909
  %v2254 = vunpack.c.l.b16 %v1910
  %v2255 = vunpack.c.h.b16 %v1910
  %v2256 = vunpack.c.l.b16 %v1911
  %v2257 = vunpack.c.h.b16 %v1911
  %v2258 = vunpack.c.l.b16 %v1912
  %v2259 = vunpack.c.h.b16 %v1912
  %v2260 = vunpack.c.l.b16 %v1913
  %v2261 = vunpack.c.h.b16 %v1913
  %v2262 = vunpack.c.l.b16 %v1914
  %v2263 = vunpack.c.h.b16 %v1914
  %v2264 = vunpack.c.l.b16 %v1915
  %v2265 = vunpack.c.h.b16 %v1915
  %v2266 = vunpack.c.l.b16 %v1916
  %v2267 = vunpack.c.h.b16 %v1916
  %v2268 = vunpack.c.l.b16 %v1917
  %v2269 = vunpack.c.h.b16 %v1917
  %v2270 = vunpack.c.l.b16 %v1918
  %v2271 = vunpack.c.h.b16 %v1918
  %v2272 = vunpack.c.l.b16 %v1919
  %v2273 = vunpack.c.h.b16 %v1919
  %v2274 = vunpack.c.l.b16 %v1920
  %v2275 = vunpack.c.h.b16 %v1920
  %v2276 = vunpack.c.l.b16 %v1921
  %v2277 = vunpack.c.h.b16 %v1921
  %v2278 = vunpack.c.l.b16 %v1922
  %v2279 = vunpack.c.h.b16 %v1922
  %v2280 = vunpack.c.l.b16 %v1923
  %v2281 = vunpack.c.h.b16 %v1923
  %v2282 = vunpack.c.l.b16 %v1924
  %v2283 = vunpack.c.h.b16 %v1924
  %v2284 = vunpack.c.l.b16 %v1925
  %v2285 = vunpack.c.h.b16 %v1925
  %v2286 = vunpack.c.l.b16 %v1926
  %v2287 = vunpack.c.h.b16 %v1926
  %v2288 = vunpack.c.l.b16 %v1927
  %v2289 = vunpack.c.h.b16 %v1927
  %v2290 = vunpack.c.l.b16 %v1928
  %v2291 = vunpack.c.h.b16 %v1928
  %v2292 = vunpack.c.l.b16 %v1929
  %v2293 = vunpack.c.h.b16 %v1929
  %v2294 = vunpack.c.l.b16 %v1930
  %v2295 = vunpack.c.h.b16 %v1930
  %v2296 = vunpack.c.l.b16 %v1931
  %v2297 = vunpack.c.h.b16 %v1931
  %v2298 = vunpack.c.l.b16 %v1932
  %v2299 = vunpack.c.h.b16 %v1932
  %v2300 = vunpack.c.l.b16 %v1933
  %v2301 = vunpack.c.h.b16 %v1933
  %v2302 = vunpack.c.l.b16 %v1934
  %v2303 = vunpack.c.h.b16 %v1934
  %v2304 = vunpack.c.l.b16 %v1935
  %v2305 = vunpack.c.h.b16 %v1935
  %v2306 = vunpack.c.l.b16 %v1936
  %v2307 = vunpack.c.h.b16 %v1936
  %v2308 = vunpack.c.l.b16 %v1937
  %v2309 = vunpack.c.h.b16 %v1937
  %v2310 = vunpack.c.l.b16 %v1938
  %v2311 = vunpack.c.h.b16 %v1938
  %v2312 = vunpack.c.l.b16 %v1939
  %v2313 = vunpack.c.h.b16 %v1939
  %v2314 = vunpack.c.l.b16 %v1940
  %v2315 = vunpack.c.h.b16 %v1940
  %v2316 = vunpack.c.l.b16 %v1941
  %v2317 = vunpack.c.h.b16 %v1941
  %v2318 = vunpack.c.l.b16 %v1942
  %v2319 = vunpack.c.h.b16 %v1942
  %v2320 = vunpack.c.l.b16 %v1943
  %v2321 = vunpack.c.h.b16 %v1943
  %v2322 = vunpack.c.l.b16 %v1944
  %v2323 = vunpack.c.h.b16 %v1944
  %v2324 = vunpack.c.l.b16 %v1945
  %v2325 = vunpack.c.h.b16 %v1945
  %v2326 = vunpack.c.l.b16 %v1946
  %v2327 = vunpack.c.h.b16 %v1946
  %v2328 = vunpack.c.l.b16 %v1947
  %v2329 = vunpack.c.h.b16 %v1947
  %v2330 = vunpack.c.l.b16 %v1948
  %v2331 = vunpack.c.h.b16 %v1948
  %v2332 = vunpack.c.l.b16 %v1949
  %v2333 = vunpack.c.h.b16 %v1949
  %v2334 = vpack.c.b16 %v2082, %v2078
  %v2335 = vpack.c.b16 %v2083, %v2079
  %v2336 = vpack.c.b16 %v2084, %v2080
  %v2337 = vpack.c.b16 %v2085, %v2081
  %v2338 = vpack.c.b16 %v2090, %v2086
  %v2339 = vpack.c.b16 %v2091, %v2087
  %v2340 = vpack.c.b16 %v2092, %v2088
  %v2341 = vpack.c.b16 %v2093, %v2089
  %v2342 = vpack.c.b16 %v2098, %v2094
  %v2343 = vpack.c.b16 %v2099, %v2095
  %v2344 = vpack.c.b16 %v2100, %v2096
  %v2345 = vpack.c.b16 %v2101, %v2097
  %v2346 = vpack.c.b16 %v2106, %v2102
  %v2347 = vpack.c.b16 %v2107, %v2103
  %v2348 = vpack.c.b16 %v2108, %v2104
  %v2349 = vpack.c.b16 %v2109, %v2105
  %v2350 = vpack.c.b16 %v2114, %v2110
  %v2351 = vpack.c.b16 %v2115, %v2111
  %v2352 = vpack.c.b16 %v2116, %v2112
  %v2353 = vpack.c.b16 %v2117, %v2113
  %v2354 = vpack.c.b16 %v2122, %v2118
  %v2355 = vpack.c.b16 %v2123, %v2119
  %v2356 = vpack.c.b16 %v2124, %v2120
  %v2357 = vpack.c.b16 %v2125, %v2121
  %v2358 = vpack.c.b16 %v2130, %v2126
  %v2359 = vpack.c.b16 %v2131, %v2127
  %v2360 = vpack.c.b16 %v2132, %v2128
  %v2361 = vpack.c.b16 %v2133, %v2129
  %v2362 = vpack.c.b16 %v2138, %v2134
  %v2363 = vpack.c.b16 %v2139, %v2135
  %v2364 = vpack.c.b16 %v2140, %v2136
  %v2365 = vpack.c.b16 %v2141, %v2137
  %v2366 = vpack.c.b16 %v2146, %v2142
  %v2367 = vpack.c.b16 %v2147, %v2143
  %v2368 = vpack.c.b16 %v2148, %v2144
  %v2369 = vpack.c.b16 %v2149, %v2145
  %v2370 = vpack.c.b16 %v2154, %v2150
  %v2371 = vpack.c.b16 %v2155, %v2151
  %v2372 = vpack.c.b16 %v2156, %v2152
  %v2373 = vpack.c.b16 %v2157, %v2153
  %v2374 = vpack.c.b16 %v2162, %v2158
  %v2375 = vpack.c.b16 %v2163, %v2159
  %v2376 = vpack.c.b16 %v2164, %v2160
  %v2377 = vpack.c.b16 %v2165, %v2161
  %v2378 = vpack.c.b16 %v2170, %v2166
  %v2379 = vpack.c.b16 %v2171, %v2167
  %v2380 = vpack.c.b16 %v2172, %v2168
  %v2381 = vpack.c.b16 %v2173, %v2169
  %v2382 = vpack.c.b16 %v2178, %v2174
  %v2383 = vpack.c.b16 %v2179, %v2175
  %v2384 = vpack.c.b16 %v2180, %v2176
  %v2385 = vpack.c.b16 %v2181, %v2177
  %v2386 = vpack.c.b16 %v2186, %v2182
  %v2387 = vpack.c.b16 %v2187, %v2183
  %v2388 = vpack.c.b16 %v2188, %v2184
  %v2389 = vpack.c.b16 %v2189, %v2185
  %v2390 = vpack.c.b16 %v2194, %v2190
  %v2391 = vpack.c.b16 %v2195, %v2191
  %v2392 = vpack.c.b16 %v2196, %v2192
  %v2393 = vpack.c.b16 %v2197, %v2193
  %v2394 = vpack.c.b16 %v2202, %v2198
  %v2395 = vpack.c.b16 %v2203, %v2199
  %v2396 = vpack.c.b16 %v2204, %v2200
  %v2397 = vpack.c.b16 %v2205, %v2201
  %v2398 = vpack.c.b16 %v2210, %v2206
  %v2399 = vpack.c.b16 %v2211, %v2207
  %v2400 = vpack.c.b16 %v2212, %v2208
  %v2401 = vpack.c.b16 %v2213, %v2209
  %v2402 = vpack.c.b16 %v2218, %v2214
  %v2403 = vpack.c.b16 %v2219, %v2215
  %v2404 = vpack.c.b16 %v2220, %v2216
  %v2405 = vpack.c.b16 %v2221, %v2217
  %v2406 = vpack.c.b16 %v2226, %v2222
  %v2407 = vpack.c.b16 %v2227, %v2223
  %v2408 = vpack.c.b16 %v2228, %v2224
  %v2409 = vpack.c.b16 %v2229, %v2225
  %v2410 = vpack.c.b16 %v2234, %v2230
  %v2411 = vpack.c.b16 %v2235, %v2231
  %v2412 = vpack.c.b16 %v2236, %v2232
  %v2413 = vpack.c.b16 %v2237, %v2233
  %v2414 = vpack.c.b16 %v2242, %v2238
  %v2415 = vpack.c.b16 %v2243, %v2239
  %v2416 = vpack.c.b16 %v2244, %v2240
  %v2417 = vpack.c.b16 %v2245, %v2241
  %v2418 = vpack.c.b16 %v2250, %v2246
  %v2419 = vpack.c.b16 %v2251, %v2247
  %v2420 = vpack.c.b16 %v2252, %v2248
  %v2421 = vpack.c.b16 %v2253, %v2249
  %v2422 = vpack.c.b16 %v2258, %v2254
  %v2423 = vpack.c.b16 %v2259, %v2255
  %v2424 = vpack.c.b16 %v2260, %v2256
  %v2425 = vpack.c.b16 %v2261, %v2257
  %v2426 = vpack.c.b16 %v2266, %v2262
  %v2427 = vpack.c.b16 %v2267, %v2263
  %v2428 = vpack.c.b16 %v2268, %v2264
  %v2429 = vpack.c.b16 %v2269, %v2265
  %v2430 = vpack.c.b16 %v2274, %v2270
  %v2431 = vpack.c.b16 %v2275, %v2271
  %v2432 = vpack.c.b16 %v2276, %v2272
  %v2433 = vpack.c.b16 %v2277, %v2273
  %v2434 = vpack.c.b16 %v2282, %v2278
  %v2435 = vpack.c.b16 %v2283, %v2279
  %v2436 = vpack.c.b16 %v2284, %v2280
  %v2437 = vpack.c.b16 %v2285, %v2281
  %v2438 = vpack.c.b16 %v2290, %v2286
  %v2439 = vpack.c.b16 %v2291, %v2287
  %v2440 = vpack.c.b16 %v2292, %v2288
  %v2441 = vpack.c.b16 %v2293, %v2289
  %v2442 = vpack.c.b16 %v2298, %v2294
  %v2443 = vpack.c.b16 %v2299, %v2295
  %v2444 = vpack.c.b16 %v2300, %v2296
  %v2445 = vpack.c.b16 %v2301, %v2297
  %v2446 = vpack.c.b16 %v2306, %v2302
  %v2447 = vpack.c.b16 %v2307, %v2303
  %v2448 = vpack.c.b16 %v2308, %v2304
  %v2449 = vpack.c.b16 %v2309, %v2305
  %v2450 = vpack.c.b16 %v2314, %v2310
  %v2451 = vpack.c.b16 %v2315, %v2311
  %v2452 = vpack.c.b16 %v2316, %v2312
  %v2453 = vpack.c.b16 %v2317, %v2313
  %v2454 = vpack.c.b16 %v2322, %v2318
  %v2455 = vpack.c.b16 %v2323, %v2319
  %v2456 = vpack.c.b16 %v2324, %v2320
  %v2457 = vpack.c.b16 %v2325, %v2321
  %v2458 = vpack.c.b16 %v2330, %v2326
  %v2459 = vpack.c.b16 %v2331, %v2327
  %v2460 = vpack.c.b16 %v2332, %v2328
  %v2461 = vpack.c.b16 %v2333, %v2329
  %2590 = vmatprep.subr.bf16.mxu0 %v2335
  %2591 = vmatpush1.bf16.msra.mxu0 %v2334
  %2592 = vmatprep.subr.bf16.mxu0 %v2339
  %2593 = vmatpush1.bf16.msra.mxu0 %v2338
  %2594 = vmatprep.subr.bf16.mxu0 %v2343
  %2595 = vmatpush1.bf16.msra.mxu0 %v2342
  %2596 = vmatprep.subr.bf16.mxu0 %v2347
  %2597 = vmatpush1.bf16.msra.mxu0 %v2346
  %2598 = vmatprep.subr.bf16.mxu0 %v2351
  %2599 = vmatpush1.bf16.msra.mxu0 %v2350
  %2600 = vmatprep.subr.bf16.mxu0 %v2355
  %2601 = vmatpush1.bf16.msra.mxu0 %v2354
  %2602 = vmatprep.subr.bf16.mxu0 %v2359
  %2603 = vmatpush1.bf16.msra.mxu0 %v2358
  %2604 = vmatprep.subr.bf16.mxu0 %v2363
  %2605 = vmatpush1.bf16.msra.mxu0 %v2362
  %2606 = vmatprep.subr.bf16.mxu0 %v2367
  %2607 = vmatpush1.bf16.msra.mxu0 %v2366
  %2608 = vmatprep.subr.bf16.mxu0 %v2371
  %2609 = vmatpush1.bf16.msra.mxu0 %v2370
  %2610 = vmatprep.subr.bf16.mxu0 %v2375
  %2611 = vmatpush1.bf16.msra.mxu0 %v2374
  %2612 = vmatprep.subr.bf16.mxu0 %v2379
  %2613 = vmatpush1.bf16.msra.mxu0 %v2378
  %2614 = vmatprep.subr.bf16.mxu0 %v2383
  %2615 = vmatpush1.bf16.msra.mxu0 %v2382
  %2616 = vmatprep.subr.bf16.mxu0 %v2387
  %2617 = vmatpush1.bf16.msra.mxu0 %v2386
  %2618 = vmatprep.subr.bf16.mxu0 %v2391
  %2619 = vmatpush1.bf16.msra.mxu0 %v2390
  %2620 = vmatprep.subr.bf16.mxu0 %v2395
  %2621 = vmatpush1.bf16.msra.mxu0 %v2394
  %2622 = vmatprep.mubr.bf16.mxu0 %v1674
  %2623 = vmatmul.mubr.bf16.gmra.mrb[0].mxu0 %v1673
  %v2624 = vpop.f32.mrb[0].mxu0
  %v2625 = vadd.f32 0.0, %v2624
  %v2626 = vpop.f32.mrb[0].mxu0
  %v2627 = vadd.f32 0.0, %v2626
  %v2628 = vpop.f32.mrb[0].mxu0
  %v2629 = vadd.f32 0.0, %v2628
  %v2630 = vpop.f32.mrb[0].mxu0
  %v2631 = vadd.f32 0.0, %v2630
  %2632 = vdwg.mxu0
  %2633 = vmatprep.subr.bf16.mxu0 %v2399
  %2634 = vmatpush1.bf16.msra.mxu0 %v2398
  %2635 = vmatprep.subr.bf16.mxu0 %v2403
  %2636 = vmatpush1.bf16.msra.mxu0 %v2402
  %2637 = vmatprep.subr.bf16.mxu0 %v2407
  %2638 = vmatpush1.bf16.msra.mxu0 %v2406
  %2639 = vmatprep.subr.bf16.mxu0 %v2411
  %2640 = vmatpush1.bf16.msra.mxu0 %v2410
  %2641 = vmatprep.subr.bf16.mxu0 %v2415
  %2642 = vmatpush1.bf16.msra.mxu0 %v2414
  %2643 = vmatprep.subr.bf16.mxu0 %v2419
  %2644 = vmatpush1.bf16.msra.mxu0 %v2418
  %2645 = vmatprep.subr.bf16.mxu0 %v2423
  %2646 = vmatpush1.bf16.msra.mxu0 %v2422
  %2647 = vmatprep.subr.bf16.mxu0 %v2427
  %2648 = vmatpush1.bf16.msra.mxu0 %v2426
  %2649 = vmatprep.subr.bf16.mxu0 %v2431
  %2650 = vmatpush1.bf16.msra.mxu0 %v2430
  %2651 = vmatprep.subr.bf16.mxu0 %v2435
  %2652 = vmatpush1.bf16.msra.mxu0 %v2434
  %2653 = vmatprep.subr.bf16.mxu0 %v2439
  %2654 = vmatpush1.bf16.msra.mxu0 %v2438
  %2655 = vmatprep.subr.bf16.mxu0 %v2443
  %2656 = vmatpush1.bf16.msra.mxu0 %v2442
  %2657 = vmatprep.subr.bf16.mxu0 %v2447
  %2658 = vmatpush1.bf16.msra.mxu0 %v2446
  %2659 = vmatprep.subr.bf16.mxu0 %v2451
  %2660 = vmatpush1.bf16.msra.mxu0 %v2450
  %2661 = vmatprep.subr.bf16.mxu0 %v2455
  %2662 = vmatpush1.bf16.msra.mxu0 %v2454
  %2663 = vmatprep.subr.bf16.mxu0 %v2459
  %2664 = vmatpush1.bf16.msra.mxu0 %v2458
  %2665 = vmatprep.mubr.bf16.mxu0 %v1676
  %2666 = vmatmul.mubr.bf16.gmra.mrb[0].mxu0 %v1675
  %v2667 = vpop.f32.mrb[0].mxu0
  %v2668 = vadd.f32 %v2625, %v2667
  %v2669 = vpop.f32.mrb[0].mxu0
  %v2670 = vadd.f32 %v2627, %v2669
  %v2671 = vpop.f32.mrb[0].mxu0
  %v2672 = vadd.f32 %v2629, %v2671
  %v2673 = vpop.f32.mrb[0].mxu0
  %v2674 = vadd.f32 %v2631, %v2673
  %2675 = vdwg.mxu0
  %2676 = vmatprep.subr.bf16.mxu0 %v2337
  %2677 = vmatpush1.bf16.msra.mxu0 %v2336
  %2678 = vmatprep.subr.bf16.mxu0 %v2341
  %2679 = vmatpush1.bf16.msra.mxu0 %v2340
  %2680 = vmatprep.subr.bf16.mxu0 %v2345
  %2681 = vmatpush1.bf16.msra.mxu0 %v2344
  %2682 = vmatprep.subr.bf16.mxu0 %v2349
  %2683 = vmatpush1.bf16.msra.mxu0 %v2348
  %2684 = vmatprep.subr.bf16.mxu0 %v2353
  %2685 = vmatpush1.bf16.msra.mxu0 %v2352
  %2686 = vmatprep.subr.bf16.mxu0 %v2357
  %2687 = vmatpush1.bf16.msra.mxu0 %v2356
  %2688 = vmatprep.subr.bf16.mxu0 %v2361
  %2689 = vmatpush1.bf16.msra.mxu0 %v2360
  %2690 = vmatprep.subr.bf16.mxu0 %v2365
  %2691 = vmatpush1.bf16.msra.mxu0 %v2364
  %2692 = vmatprep.subr.bf16.mxu0 %v2369
  %2693 = vmatpush1.bf16.msra.mxu0 %v2368
  %2694 = vmatprep.subr.bf16.mxu0 %v2373
  %2695 = vmatpush1.bf16.msra.mxu0 %v2372
  %2696 = vmatprep.subr.bf16.mxu0 %v2377
  %2697 = vmatpush1.bf16.msra.mxu0 %v2376
  %2698 = vmatprep.subr.bf16.mxu0 %v2381
  %2699 = vmatpush1.bf16.msra.mxu0 %v2380
  %2700 = vmatprep.subr.bf16.mxu0 %v2385
  %2701 = vmatpush1.bf16.msra.mxu0 %v2384
  %2702 = vmatprep.subr.bf16.mxu0 %v2389
  %2703 = vmatpush1.bf16.msra.mxu0 %v2388
  %2704 = vmatprep.subr.bf16.mxu0 %v2393
  %2705 = vmatpush1.bf16.msra.mxu0 %v2392
  %2706 = vmatprep.subr.bf16.mxu0 %v2397
  %2707 = vmatpush1.bf16.msra.mxu0 %v2396
  %2708 = vmatprep.mubr.bf16.mxu0 %v1674
  %2709 = vmatmul.mubr.bf16.gmra.mrb[0].mxu0 %v1673
  %v2710 = vpop.f32.mrb[0].mxu0
  %v2711 = vadd.f32 0.0, %v2710
  %v2712 = vpop.f32.mrb[0].mxu0
  %v2713 = vadd.f32 0.0, %v2712
  %v2714 = vpop.f32.mrb[0].mxu0
  %v2715 = vadd.f32 0.0, %v2714
  %v2716 = vpop.f32.mrb[0].mxu0
  %v2717 = vadd.f32 0.0, %v2716
  %2718 = vdwg.mxu0
  %2719 = vmatprep.subr.bf16.mxu0 %v2401
  %2720 = vmatpush1.bf16.msra.mxu0 %v2400
  %2721 = vmatprep.subr.bf16.mxu0 %v2405
  %2722 = vmatpush1.bf16.msra.mxu0 %v2404
  %2723 = vmatprep.subr.bf16.mxu0 %v2409
  %2724 = vmatpush1.bf16.msra.mxu0 %v2408
  %2725 = vmatprep.subr.bf16.mxu0 %v2413
  %2726 = vmatpush1.bf16.msra.mxu0 %v2412
  %2727 = vmatprep.subr.bf16.mxu0 %v2417
  %2728 = vmatpush1.bf16.msra.mxu0 %v2416
  %2729 = vmatprep.subr.bf16.mxu0 %v2421
  %2730 = vmatpush1.bf16.msra.mxu0 %v2420
  %2731 = vmatprep.subr.bf16.mxu0 %v2425
  %2732 = vmatpush1.bf16.msra.mxu0 %v2424
  %2733 = vmatprep.subr.bf16.mxu0 %v2429
  %2734 = vmatpush1.bf16.msra.mxu0 %v2428
  %2735 = vmatprep.subr.bf16.mxu0 %v2433
  %2736 = vmatpush1.bf16.msra.mxu0 %v2432
  %2737 = vmatprep.subr.bf16.mxu0 %v2437
  %2738 = vmatpush1.bf16.msra.mxu0 %v2436
  %2739 = vmatprep.subr.bf16.mxu0 %v2441
  %2740 = vmatpush1.bf16.msra.mxu0 %v2440
  %2741 = vmatprep.subr.bf16.mxu0 %v2445
  %2742 = vmatpush1.bf16.msra.mxu0 %v2444
  %2743 = vmatprep.subr.bf16.mxu0 %v2449
  %2744 = vmatpush1.bf16.msra.mxu0 %v2448
  %2745 = vmatprep.subr.bf16.mxu0 %v2453
  %2746 = vmatpush1.bf16.msra.mxu0 %v2452
  %2747 = vmatprep.subr.bf16.mxu0 %v2457
  %2748 = vmatpush1.bf16.msra.mxu0 %v2456
  %2749 = vmatprep.subr.bf16.mxu0 %v2461
  %2750 = vmatpush1.bf16.msra.mxu0 %v2460
  %2751 = vmatprep.mubr.bf16.mxu0 %v1676
  %2752 = vmatmul.mubr.bf16.gmra.mrb[0].mxu0 %v1675
  %v2753 = vpop.f32.mrb[0].mxu0
  %v2754 = vadd.f32 %v2711, %v2753
  %v2755 = vpop.f32.mrb[0].mxu0
  %v2756 = vadd.f32 %v2713, %v2755
  %v2757 = vpop.f32.mrb[0].mxu0
  %v2758 = vadd.f32 %v2715, %v2757
  %v2759 = vpop.f32.mrb[0].mxu0
  %v2760 = vadd.f32 %v2717, %v2759
  %2761 = vdwg.mxu0
  %v2890 = vunpack.c.l.b16 %v1693
  %v2891 = vunpack.c.h.b16 %v1693
  %v2892 = vunpack.c.l.b16 %v1694
  %v2893 = vunpack.c.h.b16 %v1694
  %v2894 = vunpack.c.l.b16 %v1695
  %v2895 = vunpack.c.h.b16 %v1695
  %v2896 = vunpack.c.l.b16 %v1696
  %v2897 = vunpack.c.h.b16 %v1696
  %v2898 = vunpack.c.l.b16 %v1697
  %v2899 = vunpack.c.h.b16 %v1697
  %v2900 = vunpack.c.l.b16 %v1698
  %v2901 = vunpack.c.h.b16 %v1698
  %v2902 = vunpack.c.l.b16 %v1699
  %v2903 = vunpack.c.h.b16 %v1699
  %v2904 = vunpack.c.l.b16 %v1700
  %v2905 = vunpack.c.h.b16 %v1700
  %v2906 = vunpack.c.l.b16 %v1701
  %v2907 = vunpack.c.h.b16 %v1701
  %v2908 = vunpack.c.l.b16 %v1702
  %v2909 = vunpack.c.h.b16 %v1702
  %v2910 = vunpack.c.l.b16 %v1703
  %v2911 = vunpack.c.h.b16 %v1703
  %v2912 = vunpack.c.l.b16 %v1704
  %v2913 = vunpack.c.h.b16 %v1704
  %v2914 = vunpack.c.l.b16 %v1705
  %v2915 = vunpack.c.h.b16 %v1705
  %v2916 = vunpack.c.l.b16 %v1706
  %v2917 = vunpack.c.h.b16 %v1706
  %v2918 = vunpack.c.l.b16 %v1707
  %v2919 = vunpack.c.h.b16 %v1707
  %v2920 = vunpack.c.l.b16 %v1708
  %v2921 = vunpack.c.h.b16 %v1708
  %v2922 = vunpack.c.l.b16 %v1709
  %v2923 = vunpack.c.h.b16 %v1709
  %v2924 = vunpack.c.l.b16 %v1710
  %v2925 = vunpack.c.h.b16 %v1710
  %v2926 = vunpack.c.l.b16 %v1711
  %v2927 = vunpack.c.h.b16 %v1711
  %v2928 = vunpack.c.l.b16 %v1712
  %v2929 = vunpack.c.h.b16 %v1712
  %v2930 = vunpack.c.l.b16 %v1713
  %v2931 = vunpack.c.h.b16 %v1713
  %v2932 = vunpack.c.l.b16 %v1714
  %v2933 = vunpack.c.h.b16 %v1714
  %v2934 = vunpack.c.l.b16 %v1715
  %v2935 = vunpack.c.h.b16 %v1715
  %v2936 = vunpack.c.l.b16 %v1716
  %v2937 = vunpack.c.h.b16 %v1716
  %v2938 = vunpack.c.l.b16 %v1717
  %v2939 = vunpack.c.h.b16 %v1717
  %v2940 = vunpack.c.l.b16 %v1718
  %v2941 = vunpack.c.h.b16 %v1718
  %v2942 = vunpack.c.l.b16 %v1719
  %v2943 = vunpack.c.h.b16 %v1719
  %v2944 = vunpack.c.l.b16 %v1720
  %v2945 = vunpack.c.h.b16 %v1720
  %v2946 = vunpack.c.l.b16 %v1721
  %v2947 = vunpack.c.h.b16 %v1721
  %v2948 = vunpack.c.l.b16 %v1722
  %v2949 = vunpack.c.h.b16 %v1722
  %v2950 = vunpack.c.l.b16 %v1723
  %v2951 = vunpack.c.h.b16 %v1723
  %v2952 = vunpack.c.l.b16 %v1724
  %v2953 = vunpack.c.h.b16 %v1724
  %v2954 = vunpack.c.l.b16 %v1725
  %v2955 = vunpack.c.h.b16 %v1725
  %v2956 = vunpack.c.l.b16 %v1726
  %v2957 = vunpack.c.h.b16 %v1726
  %v2958 = vunpack.c.l.b16 %v1727
  %v2959 = vunpack.c.h.b16 %v1727
  %v2960 = vunpack.c.l.b16 %v1728
  %v2961 = vunpack.c.h.b16 %v1728
  %v2962 = vunpack.c.l.b16 %v1729
  %v2963 = vunpack.c.h.b16 %v1729
  %v2964 = vunpack.c.l.b16 %v1730
  %v2965 = vunpack.c.h.b16 %v1730
  %v2966 = vunpack.c.l.b16 %v1731
  %v2967 = vunpack.c.h.b16 %v1731
  %v2968 = vunpack.c.l.b16 %v1732
  %v2969 = vunpack.c.h.b16 %v1732
  %v2970 = vunpack.c.l.b16 %v1733
  %v2971 = vunpack.c.h.b16 %v1733
  %v2972 = vunpack.c.l.b16 %v1734
  %v2973 = vunpack.c.h.b16 %v1734
  %v2974 = vunpack.c.l.b16 %v1735
  %v2975 = vunpack.c.h.b16 %v1735
  %v2976 = vunpack.c.l.b16 %v1736
  %v2977 = vunpack.c.h.b16 %v1736
  %v2978 = vunpack.c.l.b16 %v1737
  %v2979 = vunpack.c.h.b16 %v1737
  %v2980 = vunpack.c.l.b16 %v1738
  %v2981 = vunpack.c.h.b16 %v1738
  %v2982 = vunpack.c.l.b16 %v1739
  %v2983 = vunpack.c.h.b16 %v1739
  %v2984 = vunpack.c.l.b16 %v1740
  %v2985 = vunpack.c.h.b16 %v1740
  %v2986 = vunpack.c.l.b16 %v1741
  %v2987 = vunpack.c.h.b16 %v1741
  %v2988 = vunpack.c.l.b16 %v1742
  %v2989 = vunpack.c.h.b16 %v1742
  %v2990 = vunpack.c.l.b16 %v1743
  %v2991 = vunpack.c.h.b16 %v1743
  %v2992 = vunpack.c.l.b16 %v1744
  %v2993 = vunpack.c.h.b16 %v1744
  %v2994 = vunpack.c.l.b16 %v1745
  %v2995 = vunpack.c.h.b16 %v1745
  %v2996 = vunpack.c.l.b16 %v1746
  %v2997 = vunpack.c.h.b16 %v1746
  %v2998 = vunpack.c.l.b16 %v1747
  %v2999 = vunpack.c.h.b16 %v1747
  %v3000 = vunpack.c.l.b16 %v1748
  %v3001 = vunpack.c.h.b16 %v1748
  %v3002 = vunpack.c.l.b16 %v1749
  %v3003 = vunpack.c.h.b16 %v1749
  %v3004 = vunpack.c.l.b16 %v1750
  %v3005 = vunpack.c.h.b16 %v1750
  %v3006 = vunpack.c.l.b16 %v1751
  %v3007 = vunpack.c.h.b16 %v1751
  %v3008 = vunpack.c.l.b16 %v1752
  %v3009 = vunpack.c.h.b16 %v1752
  %v3010 = vunpack.c.l.b16 %v1753
  %v3011 = vunpack.c.h.b16 %v1753
  %v3012 = vunpack.c.l.b16 %v1754
  %v3013 = vunpack.c.h.b16 %v1754
  %v3014 = vunpack.c.l.b16 %v1755
  %v3015 = vunpack.c.h.b16 %v1755
  %v3016 = vunpack.c.l.b16 %v1756
  %v3017 = vunpack.c.h.b16 %v1756
  %v3018 = vunpack.c.l.b16 %v1757
  %v3019 = vunpack.c.h.b16 %v1757
  %v3020 = vunpack.c.l.b16 %v1758
  %v3021 = vunpack.c.h.b16 %v1758
  %v3022 = vunpack.c.l.b16 %v1759
  %v3023 = vunpack.c.h.b16 %v1759
  %v3024 = vunpack.c.l.b16 %v1760
  %v3025 = vunpack.c.h.b16 %v1760
  %v3026 = vunpack.c.l.b16 %v1761
  %v3027 = vunpack.c.h.b16 %v1761
  %v3028 = vunpack.c.l.b16 %v1762
  %v3029 = vunpack.c.h.b16 %v1762
  %v3030 = vunpack.c.l.b16 %v1763
  %v3031 = vunpack.c.h.b16 %v1763
  %v3032 = vunpack.c.l.b16 %v1764
  %v3033 = vunpack.c.h.b16 %v1764
  %v3034 = vunpack.c.l.b16 %v1765
  %v3035 = vunpack.c.h.b16 %v1765
  %v3036 = vunpack.c.l.b16 %v1766
  %v3037 = vunpack.c.h.b16 %v1766
  %v3038 = vunpack.c.l.b16 %v1767
  %v3039 = vunpack.c.h.b16 %v1767
  %v3040 = vunpack.c.l.b16 %v1768
  %v3041 = vunpack.c.h.b16 %v1768
  %v3042 = vunpack.c.l.b16 %v1769
  %v3043 = vunpack.c.h.b16 %v1769
  %v3044 = vunpack.c.l.b16 %v1770
  %v3045 = vunpack.c.h.b16 %v1770
  %v3046 = vunpack.c.l.b16 %v1771
  %v3047 = vunpack.c.h.b16 %v1771
  %v3048 = vunpack.c.l.b16 %v1772
  %v3049 = vunpack.c.h.b16 %v1772
  %v3050 = vunpack.c.l.b16 %v1773
  %v3051 = vunpack.c.h.b16 %v1773
  %v3052 = vunpack.c.l.b16 %v1774
  %v3053 = vunpack.c.h.b16 %v1774
  %v3054 = vunpack.c.l.b16 %v1775
  %v3055 = vunpack.c.h.b16 %v1775
  %v3056 = vunpack.c.l.b16 %v1776
  %v3057 = vunpack.c.h.b16 %v1776
  %v3058 = vunpack.c.l.b16 %v1777
  %v3059 = vunpack.c.h.b16 %v1777
  %v3060 = vunpack.c.l.b16 %v1778
  %v3061 = vunpack.c.h.b16 %v1778
  %v3062 = vunpack.c.l.b16 %v1779
  %v3063 = vunpack.c.h.b16 %v1779
  %v3064 = vunpack.c.l.b16 %v1780
  %v3065 = vunpack.c.h.b16 %v1780
  %v3066 = vunpack.c.l.b16 %v1781
  %v3067 = vunpack.c.h.b16 %v1781
  %v3068 = vunpack.c.l.b16 %v1782
  %v3069 = vunpack.c.h.b16 %v1782
  %v3070 = vunpack.c.l.b16 %v1783
  %v3071 = vunpack.c.h.b16 %v1783
  %v3072 = vunpack.c.l.b16 %v1784
  %v3073 = vunpack.c.h.b16 %v1784
  %v3074 = vunpack.c.l.b16 %v1785
  %v3075 = vunpack.c.h.b16 %v1785
  %v3076 = vunpack.c.l.b16 %v1786
  %v3077 = vunpack.c.h.b16 %v1786
  %v3078 = vunpack.c.l.b16 %v1787
  %v3079 = vunpack.c.h.b16 %v1787
  %v3080 = vunpack.c.l.b16 %v1788
  %v3081 = vunpack.c.h.b16 %v1788
  %v3082 = vunpack.c.l.b16 %v1789
  %v3083 = vunpack.c.h.b16 %v1789
  %v3084 = vunpack.c.l.b16 %v1790
  %v3085 = vunpack.c.h.b16 %v1790
  %v3086 = vunpack.c.l.b16 %v1791
  %v3087 = vunpack.c.h.b16 %v1791
  %v3088 = vunpack.c.l.b16 %v1792
  %v3089 = vunpack.c.h.b16 %v1792
  %v3090 = vunpack.c.l.b16 %v1793
  %v3091 = vunpack.c.h.b16 %v1793
  %v3092 = vunpack.c.l.b16 %v1794
  %v3093 = vunpack.c.h.b16 %v1794
  %v3094 = vunpack.c.l.b16 %v1795
  %v3095 = vunpack.c.h.b16 %v1795
  %v3096 = vunpack.c.l.b16 %v1796
  %v3097 = vunpack.c.h.b16 %v1796
  %v3098 = vunpack.c.l.b16 %v1797
  %v3099 = vunpack.c.h.b16 %v1797
  %v3100 = vunpack.c.l.b16 %v1798
  %v3101 = vunpack.c.h.b16 %v1798
  %v3102 = vunpack.c.l.b16 %v1799
  %v3103 = vunpack.c.h.b16 %v1799
  %v3104 = vunpack.c.l.b16 %v1800
  %v3105 = vunpack.c.h.b16 %v1800
  %v3106 = vunpack.c.l.b16 %v1801
  %v3107 = vunpack.c.h.b16 %v1801
  %v3108 = vunpack.c.l.b16 %v1802
  %v3109 = vunpack.c.h.b16 %v1802
  %v3110 = vunpack.c.l.b16 %v1803
  %v3111 = vunpack.c.h.b16 %v1803
  %v3112 = vunpack.c.l.b16 %v1804
  %v3113 = vunpack.c.h.b16 %v1804
  %v3114 = vunpack.c.l.b16 %v1805
  %v3115 = vunpack.c.h.b16 %v1805
  %v3116 = vunpack.c.l.b16 %v1806
  %v3117 = vunpack.c.h.b16 %v1806
  %v3118 = vunpack.c.l.b16 %v1807
  %v3119 = vunpack.c.h.b16 %v1807
  %v3120 = vunpack.c.l.b16 %v1808
  %v3121 = vunpack.c.h.b16 %v1808
  %v3122 = vunpack.c.l.b16 %v1809
  %v3123 = vunpack.c.h.b16 %v1809
  %v3124 = vunpack.c.l.b16 %v1810
  %v3125 = vunpack.c.h.b16 %v1810
  %v3126 = vunpack.c.l.b16 %v1811
  %v3127 = vunpack.c.h.b16 %v1811
  %v3128 = vunpack.c.l.b16 %v1812
  %v3129 = vunpack.c.h.b16 %v1812
  %v3130 = vunpack.c.l.b16 %v1813
  %v3131 = vunpack.c.h.b16 %v1813
  %v3132 = vunpack.c.l.b16 %v1814
  %v3133 = vunpack.c.h.b16 %v1814
  %v3134 = vunpack.c.l.b16 %v1815
  %v3135 = vunpack.c.h.b16 %v1815
  %v3136 = vunpack.c.l.b16 %v1816
  %v3137 = vunpack.c.h.b16 %v1816
  %v3138 = vunpack.c.l.b16 %v1817
  %v3139 = vunpack.c.h.b16 %v1817
  %v3140 = vunpack.c.l.b16 %v1818
  %v3141 = vunpack.c.h.b16 %v1818
  %v3142 = vunpack.c.l.b16 %v1819
  %v3143 = vunpack.c.h.b16 %v1819
  %v3144 = vunpack.c.l.b16 %v1820
  %v3145 = vunpack.c.h.b16 %v1820
  %v3146 = vpack.c.b16 %v2894, %v2890
  %v3147 = vpack.c.b16 %v2895, %v2891
  %v3148 = vpack.c.b16 %v2896, %v2892
  %v3149 = vpack.c.b16 %v2897, %v2893
  %v3150 = vpack.c.b16 %v2902, %v2898
  %v3151 = vpack.c.b16 %v2903, %v2899
  %v3152 = vpack.c.b16 %v2904, %v2900
  %v3153 = vpack.c.b16 %v2905, %v2901
  %v3154 = vpack.c.b16 %v2910, %v2906
  %v3155 = vpack.c.b16 %v2911, %v2907
  %v3156 = vpack.c.b16 %v2912, %v2908
  %v3157 = vpack.c.b16 %v2913, %v2909
  %v3158 = vpack.c.b16 %v2918, %v2914
  %v3159 = vpack.c.b16 %v2919, %v2915
  %v3160 = vpack.c.b16 %v2920, %v2916
  %v3161 = vpack.c.b16 %v2921, %v2917
  %v3162 = vpack.c.b16 %v2926, %v2922
  %v3163 = vpack.c.b16 %v2927, %v2923
  %v3164 = vpack.c.b16 %v2928, %v2924
  %v3165 = vpack.c.b16 %v2929, %v2925
  %v3166 = vpack.c.b16 %v2934, %v2930
  %v3167 = vpack.c.b16 %v2935, %v2931
  %v3168 = vpack.c.b16 %v2936, %v2932
  %v3169 = vpack.c.b16 %v2937, %v2933
  %v3170 = vpack.c.b16 %v2942, %v2938
  %v3171 = vpack.c.b16 %v2943, %v2939
  %v3172 = vpack.c.b16 %v2944, %v2940
  %v3173 = vpack.c.b16 %v2945, %v2941
  %v3174 = vpack.c.b16 %v2950, %v2946
  %v3175 = vpack.c.b16 %v2951, %v2947
  %v3176 = vpack.c.b16 %v2952, %v2948
  %v3177 = vpack.c.b16 %v2953, %v2949
  %v3178 = vpack.c.b16 %v2958, %v2954
  %v3179 = vpack.c.b16 %v2959, %v2955
  %v3180 = vpack.c.b16 %v2960, %v2956
  %v3181 = vpack.c.b16 %v2961, %v2957
  %v3182 = vpack.c.b16 %v2966, %v2962
  %v3183 = vpack.c.b16 %v2967, %v2963
  %v3184 = vpack.c.b16 %v2968, %v2964
  %v3185 = vpack.c.b16 %v2969, %v2965
  %v3186 = vpack.c.b16 %v2974, %v2970
  %v3187 = vpack.c.b16 %v2975, %v2971
  %v3188 = vpack.c.b16 %v2976, %v2972
  %v3189 = vpack.c.b16 %v2977, %v2973
  %v3190 = vpack.c.b16 %v2982, %v2978
  %v3191 = vpack.c.b16 %v2983, %v2979
  %v3192 = vpack.c.b16 %v2984, %v2980
  %v3193 = vpack.c.b16 %v2985, %v2981
  %v3194 = vpack.c.b16 %v2990, %v2986
  %v3195 = vpack.c.b16 %v2991, %v2987
  %v3196 = vpack.c.b16 %v2992, %v2988
  %v3197 = vpack.c.b16 %v2993, %v2989
  %v3198 = vpack.c.b16 %v2998, %v2994
  %v3199 = vpack.c.b16 %v2999, %v2995
  %v3200 = vpack.c.b16 %v3000, %v2996
  %v3201 = vpack.c.b16 %v3001, %v2997
  %v3202 = vpack.c.b16 %v3006, %v3002
  %v3203 = vpack.c.b16 %v3007, %v3003
  %v3204 = vpack.c.b16 %v3008, %v3004
  %v3205 = vpack.c.b16 %v3009, %v3005
  %v3206 = vpack.c.b16 %v3014, %v3010
  %v3207 = vpack.c.b16 %v3015, %v3011
  %v3208 = vpack.c.b16 %v3016, %v3012
  %v3209 = vpack.c.b16 %v3017, %v3013
  %v3210 = vpack.c.b16 %v3022, %v3018
  %v3211 = vpack.c.b16 %v3023, %v3019
  %v3212 = vpack.c.b16 %v3024, %v3020
  %v3213 = vpack.c.b16 %v3025, %v3021
  %v3214 = vpack.c.b16 %v3030, %v3026
  %v3215 = vpack.c.b16 %v3031, %v3027
  %v3216 = vpack.c.b16 %v3032, %v3028
  %v3217 = vpack.c.b16 %v3033, %v3029
  %v3218 = vpack.c.b16 %v3038, %v3034
  %v3219 = vpack.c.b16 %v3039, %v3035
  %v3220 = vpack.c.b16 %v3040, %v3036
  %v3221 = vpack.c.b16 %v3041, %v3037
  %v3222 = vpack.c.b16 %v3046, %v3042
  %v3223 = vpack.c.b16 %v3047, %v3043
  %v3224 = vpack.c.b16 %v3048, %v3044
  %v3225 = vpack.c.b16 %v3049, %v3045
  %v3226 = vpack.c.b16 %v3054, %v3050
  %v3227 = vpack.c.b16 %v3055, %v3051
  %v3228 = vpack.c.b16 %v3056, %v3052
  %v3229 = vpack.c.b16 %v3057, %v3053
  %v3230 = vpack.c.b16 %v3062, %v3058
  %v3231 = vpack.c.b16 %v3063, %v3059
  %v3232 = vpack.c.b16 %v3064, %v3060
  %v3233 = vpack.c.b16 %v3065, %v3061
  %v3234 = vpack.c.b16 %v3070, %v3066
  %v3235 = vpack.c.b16 %v3071, %v3067
  %v3236 = vpack.c.b16 %v3072, %v3068
  %v3237 = vpack.c.b16 %v3073, %v3069
  %v3238 = vpack.c.b16 %v3078, %v3074
  %v3239 = vpack.c.b16 %v3079, %v3075
  %v3240 = vpack.c.b16 %v3080, %v3076
  %v3241 = vpack.c.b16 %v3081, %v3077
  %v3242 = vpack.c.b16 %v3086, %v3082
  %v3243 = vpack.c.b16 %v3087, %v3083
  %v3244 = vpack.c.b16 %v3088, %v3084
  %v3245 = vpack.c.b16 %v3089, %v3085
  %v3246 = vpack.c.b16 %v3094, %v3090
  %v3247 = vpack.c.b16 %v3095, %v3091
  %v3248 = vpack.c.b16 %v3096, %v3092
  %v3249 = vpack.c.b16 %v3097, %v3093
  %v3250 = vpack.c.b16 %v3102, %v3098
  %v3251 = vpack.c.b16 %v3103, %v3099
  %v3252 = vpack.c.b16 %v3104, %v3100
  %v3253 = vpack.c.b16 %v3105, %v3101
  %v3254 = vpack.c.b16 %v3110, %v3106
  %v3255 = vpack.c.b16 %v3111, %v3107
  %v3256 = vpack.c.b16 %v3112, %v3108
  %v3257 = vpack.c.b16 %v3113, %v3109
  %v3258 = vpack.c.b16 %v3118, %v3114
  %v3259 = vpack.c.b16 %v3119, %v3115
  %v3260 = vpack.c.b16 %v3120, %v3116
  %v3261 = vpack.c.b16 %v3121, %v3117
  %v3262 = vpack.c.b16 %v3126, %v3122
  %v3263 = vpack.c.b16 %v3127, %v3123
  %v3264 = vpack.c.b16 %v3128, %v3124
  %v3265 = vpack.c.b16 %v3129, %v3125
  %v3266 = vpack.c.b16 %v3134, %v3130
  %v3267 = vpack.c.b16 %v3135, %v3131
  %v3268 = vpack.c.b16 %v3136, %v3132
  %v3269 = vpack.c.b16 %v3137, %v3133
  %v3270 = vpack.c.b16 %v3142, %v3138
  %v3271 = vpack.c.b16 %v3143, %v3139
  %v3272 = vpack.c.b16 %v3144, %v3140
  %v3273 = vpack.c.b16 %v3145, %v3141
  %3402 = vmatprep.subr.bf16.mxu0 %v3147
  %3403 = vmatpush1.bf16.msra.mxu0 %v3146
  %3404 = vmatprep.subr.bf16.mxu0 %v3151
  %3405 = vmatpush1.bf16.msra.mxu0 %v3150
  %3406 = vmatprep.subr.bf16.mxu0 %v3155
  %3407 = vmatpush1.bf16.msra.mxu0 %v3154
  %3408 = vmatprep.subr.bf16.mxu0 %v3159
  %3409 = vmatpush1.bf16.msra.mxu0 %v3158
  %3410 = vmatprep.subr.bf16.mxu0 %v3163
  %3411 = vmatpush1.bf16.msra.mxu0 %v3162
  %3412 = vmatprep.subr.bf16.mxu0 %v3167
  %3413 = vmatpush1.bf16.msra.mxu0 %v3166
  %3414 = vmatprep.subr.bf16.mxu0 %v3171
  %3415 = vmatpush1.bf16.msra.mxu0 %v3170
  %3416 = vmatprep.subr.bf16.mxu0 %v3175
  %3417 = vmatpush1.bf16.msra.mxu0 %v3174
  %3418 = vmatprep.subr.bf16.mxu0 %v3179
  %3419 = vmatpush1.bf16.msra.mxu0 %v3178
  %3420 = vmatprep.subr.bf16.mxu0 %v3183
  %3421 = vmatpush1.bf16.msra.mxu0 %v3182
  %3422 = vmatprep.subr.bf16.mxu0 %v3187
  %3423 = vmatpush1.bf16.msra.mxu0 %v3186
  %3424 = vmatprep.subr.bf16.mxu0 %v3191
  %3425 = vmatpush1.bf16.msra.mxu0 %v3190
  %3426 = vmatprep.subr.bf16.mxu0 %v3195
  %3427 = vmatpush1.bf16.msra.mxu0 %v3194
  %3428 = vmatprep.subr.bf16.mxu0 %v3199
  %3429 = vmatpush1.bf16.msra.mxu0 %v3198
  %3430 = vmatprep.subr.bf16.mxu0 %v3203
  %3431 = vmatpush1.bf16.msra.mxu0 %v3202
  %3432 = vmatprep.subr.bf16.mxu0 %v3207
  %3433 = vmatpush1.bf16.msra.mxu0 %v3206
  %3434 = vmatprep.mubr.bf16.mxu0 %v1662
  %3435 = vmatmul.mubr.bf16.gmra.mrb[0].mxu0 %v1661
  %v3436 = vpop.f32.mrb[0].mxu0
  %v3437 = vadd.f32 %v2668, %v3436
  %v3438 = vpop.f32.mrb[0].mxu0
  %v3439 = vadd.f32 %v2670, %v3438
  %v3440 = vpop.f32.mrb[0].mxu0
  %v3441 = vadd.f32 %v2672, %v3440
  %v3442 = vpop.f32.mrb[0].mxu0
  %v3443 = vadd.f32 %v2674, %v3442
  %3444 = vdwg.mxu0
  %3445 = vmatprep.subr.bf16.mxu0 %v3211
  %3446 = vmatpush1.bf16.msra.mxu0 %v3210
  %3447 = vmatprep.subr.bf16.mxu0 %v3215
  %3448 = vmatpush1.bf16.msra.mxu0 %v3214
  %3449 = vmatprep.subr.bf16.mxu0 %v3219
  %3450 = vmatpush1.bf16.msra.mxu0 %v3218
  %3451 = vmatprep.subr.bf16.mxu0 %v3223
  %3452 = vmatpush1.bf16.msra.mxu0 %v3222
  %3453 = vmatprep.subr.bf16.mxu0 %v3227
  %3454 = vmatpush1.bf16.msra.mxu0 %v3226
  %3455 = vmatprep.subr.bf16.mxu0 %v3231
  %3456 = vmatpush1.bf16.msra.mxu0 %v3230
  %3457 = vmatprep.subr.bf16.mxu0 %v3235
  %3458 = vmatpush1.bf16.msra.mxu0 %v3234
  %3459 = vmatprep.subr.bf16.mxu0 %v3239
  %3460 = vmatpush1.bf16.msra.mxu0 %v3238
  %3461 = vmatprep.subr.bf16.mxu0 %v3243
  %3462 = vmatpush1.bf16.msra.mxu0 %v3242
  %3463 = vmatprep.subr.bf16.mxu0 %v3247
  %3464 = vmatpush1.bf16.msra.mxu0 %v3246
  %3465 = vmatprep.subr.bf16.mxu0 %v3251
  %3466 = vmatpush1.bf16.msra.mxu0 %v3250
  %3467 = vmatprep.subr.bf16.mxu0 %v3255
  %3468 = vmatpush1.bf16.msra.mxu0 %v3254
  %3469 = vmatprep.subr.bf16.mxu0 %v3259
  %3470 = vmatpush1.bf16.msra.mxu0 %v3258
  %3471 = vmatprep.subr.bf16.mxu0 %v3263
  %3472 = vmatpush1.bf16.msra.mxu0 %v3262
  %3473 = vmatprep.subr.bf16.mxu0 %v3267
  %3474 = vmatpush1.bf16.msra.mxu0 %v3266
  %3475 = vmatprep.subr.bf16.mxu0 %v3271
  %3476 = vmatpush1.bf16.msra.mxu0 %v3270
  %3477 = vmatprep.mubr.bf16.mxu0 %v1664
  %3478 = vmatmul.mubr.bf16.gmra.mrb[0].mxu0 %v1663
  %v3479 = vpop.f32.mrb[0].mxu0
  %v3480 = vadd.f32 %v3437, %v3479
  %v3481 = vpop.f32.mrb[0].mxu0
  %v3482 = vadd.f32 %v3439, %v3481
  %v3483 = vpop.f32.mrb[0].mxu0
  %v3484 = vadd.f32 %v3441, %v3483
  %v3485 = vpop.f32.mrb[0].mxu0
  %v3486 = vadd.f32 %v3443, %v3485
  %3487 = vdwg.mxu0
  %3488 = vmatprep.subr.bf16.mxu0 %v3149
  %3489 = vmatpush1.bf16.msra.mxu0 %v3148
  %3490 = vmatprep.subr.bf16.mxu0 %v3153
  %3491 = vmatpush1.bf16.msra.mxu0 %v3152
  %3492 = vmatprep.subr.bf16.mxu0 %v3157
  %3493 = vmatpush1.bf16.msra.mxu0 %v3156
  %3494 = vmatprep.subr.bf16.mxu0 %v3161
  %3495 = vmatpush1.bf16.msra.mxu0 %v3160
  %3496 = vmatprep.subr.bf16.mxu0 %v3165
  %3497 = vmatpush1.bf16.msra.mxu0 %v3164
  %3498 = vmatprep.subr.bf16.mxu0 %v3169
  %3499 = vmatpush1.bf16.msra.mxu0 %v3168
  %3500 = vmatprep.subr.bf16.mxu0 %v3173
  %3501 = vmatpush1.bf16.msra.mxu0 %v3172
  %3502 = vmatprep.subr.bf16.mxu0 %v3177
  %3503 = vmatpush1.bf16.msra.mxu0 %v3176
  %3504 = vmatprep.subr.bf16.mxu0 %v3181
  %3505 = vmatpush1.bf16.msra.mxu0 %v3180
  %3506 = vmatprep.subr.bf16.mxu0 %v3185
  %3507 = vmatpush1.bf16.msra.mxu0 %v3184
  %3508 = vmatprep.subr.bf16.mxu0 %v3189
  %3509 = vmatpush1.bf16.msra.mxu0 %v3188
  %3510 = vmatprep.subr.bf16.mxu0 %v3193
  %3511 = vmatpush1.bf16.msra.mxu0 %v3192
  %3512 = vmatprep.subr.bf16.mxu0 %v3197
  %3513 = vmatpush1.bf16.msra.mxu0 %v3196
  %3514 = vmatprep.subr.bf16.mxu0 %v3201
  %3515 = vmatpush1.bf16.msra.mxu0 %v3200
  %3516 = vmatprep.subr.bf16.mxu0 %v3205
  %3517 = vmatpush1.bf16.msra.mxu0 %v3204
  %3518 = vmatprep.subr.bf16.mxu0 %v3209
  %3519 = vmatpush1.bf16.msra.mxu0 %v3208
  %3520 = vmatprep.mubr.bf16.mxu0 %v1662
  %3521 = vmatmul.mubr.bf16.gmra.mrb[0].mxu0 %v1661
  %v3522 = vpop.f32.mrb[0].mxu0
  %v3523 = vadd.f32 %v2754, %v3522
  %v3524 = vpop.f32.mrb[0].mxu0
  %v3525 = vadd.f32 %v2756, %v3524
  %v3526 = vpop.f32.mrb[0].mxu0
  %v3527 = vadd.f32 %v2758, %v3526
  %v3528 = vpop.f32.mrb[0].mxu0
  %v3529 = vadd.f32 %v2760, %v3528
  %3530 = vdwg.mxu0
  %3531 = vmatprep.subr.bf16.mxu0 %v3213
  %3532 = vmatpush1.bf16.msra.mxu0 %v3212
  %3533 = vmatprep.subr.bf16.mxu0 %v3217
  %3534 = vmatpush1.bf16.msra.mxu0 %v3216
  %3535 = vmatprep.subr.bf16.mxu0 %v3221
  %3536 = vmatpush1.bf16.msra.mxu0 %v3220
  %3537 = vmatprep.subr.bf16.mxu0 %v3225
  %3538 = vmatpush1.bf16.msra.mxu0 %v3224
  %3539 = vmatprep.subr.bf16.mxu0 %v3229
  %3540 = vmatpush1.bf16.msra.mxu0 %v3228
  %3541 = vmatprep.subr.bf16.mxu0 %v3233
  %3542 = vmatpush1.bf16.msra.mxu0 %v3232
  %3543 = vmatprep.subr.bf16.mxu0 %v3237
  %3544 = vmatpush1.bf16.msra.mxu0 %v3236
  %3545 = vmatprep.subr.bf16.mxu0 %v3241
  %3546 = vmatpush1.bf16.msra.mxu0 %v3240
  %3547 = vmatprep.subr.bf16.mxu0 %v3245
  %3548 = vmatpush1.bf16.msra.mxu0 %v3244
  %3549 = vmatprep.subr.bf16.mxu0 %v3249
  %3550 = vmatpush1.bf16.msra.mxu0 %v3248
  %3551 = vmatprep.subr.bf16.mxu0 %v3253
  %3552 = vmatpush1.bf16.msra.mxu0 %v3252
  %3553 = vmatprep.subr.bf16.mxu0 %v3257
  %3554 = vmatpush1.bf16.msra.mxu0 %v3256
  %3555 = vmatprep.subr.bf16.mxu0 %v3261
  %3556 = vmatpush1.bf16.msra.mxu0 %v3260
  %3557 = vmatprep.subr.bf16.mxu0 %v3265
  %3558 = vmatpush1.bf16.msra.mxu0 %v3264
  %3559 = vmatprep.subr.bf16.mxu0 %v3269
  %3560 = vmatpush1.bf16.msra.mxu0 %v3268
  %3561 = vmatprep.subr.bf16.mxu0 %v3273
  %3562 = vmatpush1.bf16.msra.mxu0 %v3272
  %3563 = vmatprep.mubr.bf16.mxu0 %v1664
  %3564 = vmatmul.mubr.bf16.gmra.mrb[0].mxu0 %v1663
  %v3565 = vpop.f32.mrb[0].mxu0
  %v3566 = vadd.f32 %v3523, %v3565
  %v3567 = vpop.f32.mrb[0].mxu0
  %v3568 = vadd.f32 %v3525, %v3567
  %v3569 = vpop.f32.mrb[0].mxu0
  %v3570 = vadd.f32 %v3527, %v3569
  %v3571 = vpop.f32.mrb[0].mxu0
  %v3572 = vadd.f32 %v3529, %v3571
  %3573 = vdwg.mxu0
  %s3574 = scalar_lea.vmem %s6, 2048
  %v3575 = vld [vmem:[%s3574] sm:$0xff]
  %v3576 = vld [vmem:[%s3574 + $0x8] sm:$0xff]
  %v3577 = vld [vmem:[%s3574 + $0x10] sm:$0xff]
  %v3578 = vld [vmem:[%s3574 + $0x18] sm:$0xff]
  %v3579 = vld [vmem:[%s3574 + $0x20] sm:$0xff]
  %v3580 = vld [vmem:[%s3574 + $0x28] sm:$0xff]
  %v3581 = vld [vmem:[%s3574 + $0x30] sm:$0xff]
  %v3582 = vld [vmem:[%s3574 + $0x38] sm:$0xff]
  %v3583 = vld [vmem:[%s3574 + $0x40] sm:$0xff]
  %v3584 = vld [vmem:[%s3574 + $0x48] sm:$0xff]
  %v3585 = vld [vmem:[%s3574 + $0x50] sm:$0xff]
  %v3586 = vld [vmem:[%s3574 + $0x58] sm:$0xff]
  %v3587 = vld [vmem:[%s3574 + $0x60] sm:$0xff]
  %v3588 = vld [vmem:[%s3574 + $0x68] sm:$0xff]
  %v3589 = vld [vmem:[%s3574 + $0x70] sm:$0xff]
  %v3590 = vld [vmem:[%s3574 + $0x78] sm:$0xff]
  %v3591 = vld [vmem:[%s3574 + $0x80] sm:$0xff]
  %v3592 = vld [vmem:[%s3574 + $0x88] sm:$0xff]
  %v3593 = vld [vmem:[%s3574 + $0x90] sm:$0xff]
  %v3594 = vld [vmem:[%s3574 + $0x98] sm:$0xff]
  %v3595 = vld [vmem:[%s3574 + $0xa0] sm:$0xff]
  %v3596 = vld [vmem:[%s3574 + $0xa8] sm:$0xff]
  %v3597 = vld [vmem:[%s3574 + $0xb0] sm:$0xff]
  %v3598 = vld [vmem:[%s3574 + $0xb8] sm:$0xff]
  %v3599 = vld [vmem:[%s3574 + $0xc0] sm:$0xff]
  %v3600 = vld [vmem:[%s3574 + $0xc8] sm:$0xff]
  %v3601 = vld [vmem:[%s3574 + $0xd0] sm:$0xff]
  %v3602 = vld [vmem:[%s3574 + $0xd8] sm:$0xff]
  %v3603 = vld [vmem:[%s3574 + $0xe0] sm:$0xff]
  %v3604 = vld [vmem:[%s3574 + $0xe8] sm:$0xff]
  %v3605 = vld [vmem:[%s3574 + $0xf0] sm:$0xff]
  %v3606 = vld [vmem:[%s3574 + $0xf8] sm:$0xff]
  %v3607 = vld [vmem:[%s3574 + $0x100] sm:$0xff]
  %v3608 = vld [vmem:[%s3574 + $0x108] sm:$0xff]
  %v3609 = vld [vmem:[%s3574 + $0x110] sm:$0xff]
  %v3610 = vld [vmem:[%s3574 + $0x118] sm:$0xff]
  %v3611 = vld [vmem:[%s3574 + $0x120] sm:$0xff]
  %v3612 = vld [vmem:[%s3574 + $0x128] sm:$0xff]
  %v3613 = vld [vmem:[%s3574 + $0x130] sm:$0xff]
  %v3614 = vld [vmem:[%s3574 + $0x138] sm:$0xff]
  %v3615 = vld [vmem:[%s3574 + $0x140] sm:$0xff]
  %v3616 = vld [vmem:[%s3574 + $0x148] sm:$0xff]
  %v3617 = vld [vmem:[%s3574 + $0x150] sm:$0xff]
  %v3618 = vld [vmem:[%s3574 + $0x158] sm:$0xff]
  %v3619 = vld [vmem:[%s3574 + $0x160] sm:$0xff]
  %v3620 = vld [vmem:[%s3574 + $0x168] sm:$0xff]
  %v3621 = vld [vmem:[%s3574 + $0x170] sm:$0xff]
  %v3622 = vld [vmem:[%s3574 + $0x178] sm:$0xff]
  %v3623 = vld [vmem:[%s3574 + $0x180] sm:$0xff]
  %v3624 = vld [vmem:[%s3574 + $0x188] sm:$0xff]
  %v3625 = vld [vmem:[%s3574 + $0x190] sm:$0xff]
  %v3626 = vld [vmem:[%s3574 + $0x198] sm:$0xff]
  %v3627 = vld [vmem:[%s3574 + $0x1a0] sm:$0xff]
  %v3628 = vld [vmem:[%s3574 + $0x1a8] sm:$0xff]
  %v3629 = vld [vmem:[%s3574 + $0x1b0] sm:$0xff]
  %v3630 = vld [vmem:[%s3574 + $0x1b8] sm:$0xff]
  %v3631 = vld [vmem:[%s3574 + $0x1c0] sm:$0xff]
  %v3632 = vld [vmem:[%s3574 + $0x1c8] sm:$0xff]
  %v3633 = vld [vmem:[%s3574 + $0x1d0] sm:$0xff]
  %v3634 = vld [vmem:[%s3574 + $0x1d8] sm:$0xff]
  %v3635 = vld [vmem:[%s3574 + $0x1e0] sm:$0xff]
  %v3636 = vld [vmem:[%s3574 + $0x1e8] sm:$0xff]
  %v3637 = vld [vmem:[%s3574 + $0x1f0] sm:$0xff]
  %v3638 = vld [vmem:[%s3574 + $0x1f8] sm:$0xff]
  %v3639 = vld [vmem:[%s3574 + $0x200] sm:$0xff]
  %v3640 = vld [vmem:[%s3574 + $0x208] sm:$0xff]
  %v3641 = vld [vmem:[%s3574 + $0x210] sm:$0xff]
  %v3642 = vld [vmem:[%s3574 + $0x218] sm:$0xff]
  %v3643 = vld [vmem:[%s3574 + $0x220] sm:$0xff]
  %v3644 = vld [vmem:[%s3574 + $0x228] sm:$0xff]
  %v3645 = vld [vmem:[%s3574 + $0x230] sm:$0xff]
  %v3646 = vld [vmem:[%s3574 + $0x238] sm:$0xff]
  %v3647 = vld [vmem:[%s3574 + $0x240] sm:$0xff]
  %v3648 = vld [vmem:[%s3574 + $0x248] sm:$0xff]
  %v3649 = vld [vmem:[%s3574 + $0x250] sm:$0xff]
  %v3650 = vld [vmem:[%s3574 + $0x258] sm:$0xff]
  %v3651 = vld [vmem:[%s3574 + $0x260] sm:$0xff]
  %v3652 = vld [vmem:[%s3574 + $0x268] sm:$0xff]
  %v3653 = vld [vmem:[%s3574 + $0x270] sm:$0xff]
  %v3654 = vld [vmem:[%s3574 + $0x278] sm:$0xff]
  %v3655 = vld [vmem:[%s3574 + $0x280] sm:$0xff]
  %v3656 = vld [vmem:[%s3574 + $0x288] sm:$0xff]
  %v3657 = vld [vmem:[%s3574 + $0x290] sm:$0xff]
  %v3658 = vld [vmem:[%s3574 + $0x298] sm:$0xff]
  %v3659 = vld [vmem:[%s3574 + $0x2a0] sm:$0xff]
  %v3660 = vld [vmem:[%s3574 + $0x2a8] sm:$0xff]
  %v3661 = vld [vmem:[%s3574 + $0x2b0] sm:$0xff]
  %v3662 = vld [vmem:[%s3574 + $0x2b8] sm:$0xff]
  %v3663 = vld [vmem:[%s3574 + $0x2c0] sm:$0xff]
  %v3664 = vld [vmem:[%s3574 + $0x2c8] sm:$0xff]
  %v3665 = vld [vmem:[%s3574 + $0x2d0] sm:$0xff]
  %v3666 = vld [vmem:[%s3574 + $0x2d8] sm:$0xff]
  %v3667 = vld [vmem:[%s3574 + $0x2e0] sm:$0xff]
  %v3668 = vld [vmem:[%s3574 + $0x2e8] sm:$0xff]
  %v3669 = vld [vmem:[%s3574 + $0x2f0] sm:$0xff]
  %v3670 = vld [vmem:[%s3574 + $0x2f8] sm:$0xff]
  %v3671 = vld [vmem:[%s3574 + $0x300] sm:$0xff]
  %v3672 = vld [vmem:[%s3574 + $0x308] sm:$0xff]
  %v3673 = vld [vmem:[%s3574 + $0x310] sm:$0xff]
  %v3674 = vld [vmem:[%s3574 + $0x318] sm:$0xff]
  %v3675 = vld [vmem:[%s3574 + $0x320] sm:$0xff]
  %v3676 = vld [vmem:[%s3574 + $0x328] sm:$0xff]
  %v3677 = vld [vmem:[%s3574 + $0x330] sm:$0xff]
  %v3678 = vld [vmem:[%s3574 + $0x338] sm:$0xff]
  %v3679 = vld [vmem:[%s3574 + $0x340] sm:$0xff]
  %v3680 = vld [vmem:[%s3574 + $0x348] sm:$0xff]
  %v3681 = vld [vmem:[%s3574 + $0x350] sm:$0xff]
  %v3682 = vld [vmem:[%s3574 + $0x358] sm:$0xff]
  %v3683 = vld [vmem:[%s3574 + $0x360] sm:$0xff]
  %v3684 = vld [vmem:[%s3574 + $0x368] sm:$0xff]
  %v3685 = vld [vmem:[%s3574 + $0x370] sm:$0xff]
  %v3686 = vld [vmem:[%s3574 + $0x378] sm:$0xff]
  %v3687 = vld [vmem:[%s3574 + $0x380] sm:$0xff]
  %v3688 = vld [vmem:[%s3574 + $0x388] sm:$0xff]
  %v3689 = vld [vmem:[%s3574 + $0x390] sm:$0xff]
  %v3690 = vld [vmem:[%s3574 + $0x398] sm:$0xff]
  %v3691 = vld [vmem:[%s3574 + $0x3a0] sm:$0xff]
  %v3692 = vld [vmem:[%s3574 + $0x3a8] sm:$0xff]
  %v3693 = vld [vmem:[%s3574 + $0x3b0] sm:$0xff]
  %v3694 = vld [vmem:[%s3574 + $0x3b8] sm:$0xff]
  %v3695 = vld [vmem:[%s3574 + $0x3c0] sm:$0xff]
  %v3696 = vld [vmem:[%s3574 + $0x3c8] sm:$0xff]
  %v3697 = vld [vmem:[%s3574 + $0x3d0] sm:$0xff]
  %v3698 = vld [vmem:[%s3574 + $0x3d8] sm:$0xff]
  %v3699 = vld [vmem:[%s3574 + $0x3e0] sm:$0xff]
  %v3700 = vld [vmem:[%s3574 + $0x3e8] sm:$0xff]
  %v3701 = vld [vmem:[%s3574 + $0x3f0] sm:$0xff]
  %v3702 = vld [vmem:[%s3574 + $0x3f8] sm:$0xff]
  %vm3703 = vsmask.f32 7424
  %v3705 = vshrl.u32 %v1685, 16
  %v3707 = vshll.u32 %v1685, 16
  %v3709 = vrot.slane %v3707, 1
  %v3710 = vor.u32 %v3705, %v3709
  %v3712 = vshll.u32 %v1689, 16
  %v3714 = vrot.slane %v3712, 1
  %v3715 = vsel %vm3703, %v3710, %v3714
  %v3717 = vshrl.u32 %v1686, 16
  %v3719 = vshll.u32 %v1686, 16
  %v3721 = vrot.slane %v3719, 1
  %v3722 = vor.u32 %v3717, %v3721
  %v3724 = vshll.u32 %v1690, 16
  %v3726 = vrot.slane %v3724, 1
  %v3727 = vsel %vm3703, %v3722, %v3726
  %v3729 = vshrl.u32 %v1687, 16
  %v3731 = vshll.u32 %v1687, 16
  %v3733 = vrot.slane %v3731, 1
  %v3734 = vor.u32 %v3729, %v3733
  %v3736 = vshll.u32 %v1691, 16
  %v3738 = vrot.slane %v3736, 1
  %v3739 = vsel %vm3703, %v3734, %v3738
  %v3741 = vshrl.u32 %v1688, 16
  %v3743 = vshll.u32 %v1688, 16
  %v3745 = vrot.slane %v3743, 1
  %v3746 = vor.u32 %v3741, %v3745
  %v3748 = vshll.u32 %v1692, 16
  %v3750 = vrot.slane %v3748, 1
  %v3751 = vsel %vm3703, %v3746, %v3750
  %v3884 = vunpack.c.l.b16 %v3575
  %v3885 = vunpack.c.h.b16 %v3575
  %v3886 = vunpack.c.l.b16 %v3576
  %v3887 = vunpack.c.h.b16 %v3576
  %v3888 = vunpack.c.l.b16 %v3577
  %v3889 = vunpack.c.h.b16 %v3577
  %v3890 = vunpack.c.l.b16 %v3578
  %v3891 = vunpack.c.h.b16 %v3578
  %v3892 = vunpack.c.l.b16 %v3579
  %v3893 = vunpack.c.h.b16 %v3579
  %v3894 = vunpack.c.l.b16 %v3580
  %v3895 = vunpack.c.h.b16 %v3580
  %v3896 = vunpack.c.l.b16 %v3581
  %v3897 = vunpack.c.h.b16 %v3581
  %v3898 = vunpack.c.l.b16 %v3582
  %v3899 = vunpack.c.h.b16 %v3582
  %v3900 = vunpack.c.l.b16 %v3583
  %v3901 = vunpack.c.h.b16 %v3583
  %v3902 = vunpack.c.l.b16 %v3584
  %v3903 = vunpack.c.h.b16 %v3584
  %v3904 = vunpack.c.l.b16 %v3585
  %v3905 = vunpack.c.h.b16 %v3585
  %v3906 = vunpack.c.l.b16 %v3586
  %v3907 = vunpack.c.h.b16 %v3586
  %v3908 = vunpack.c.l.b16 %v3587
  %v3909 = vunpack.c.h.b16 %v3587
  %v3910 = vunpack.c.l.b16 %v3588
  %v3911 = vunpack.c.h.b16 %v3588
  %v3912 = vunpack.c.l.b16 %v3589
  %v3913 = vunpack.c.h.b16 %v3589
  %v3914 = vunpack.c.l.b16 %v3590
  %v3915 = vunpack.c.h.b16 %v3590
  %v3916 = vunpack.c.l.b16 %v3591
  %v3917 = vunpack.c.h.b16 %v3591
  %v3918 = vunpack.c.l.b16 %v3592
  %v3919 = vunpack.c.h.b16 %v3592
  %v3920 = vunpack.c.l.b16 %v3593
  %v3921 = vunpack.c.h.b16 %v3593
  %v3922 = vunpack.c.l.b16 %v3594
  %v3923 = vunpack.c.h.b16 %v3594
  %v3924 = vunpack.c.l.b16 %v3595
  %v3925 = vunpack.c.h.b16 %v3595
  %v3926 = vunpack.c.l.b16 %v3596
  %v3927 = vunpack.c.h.b16 %v3596
  %v3928 = vunpack.c.l.b16 %v3597
  %v3929 = vunpack.c.h.b16 %v3597
  %v3930 = vunpack.c.l.b16 %v3598
  %v3931 = vunpack.c.h.b16 %v3598
  %v3932 = vunpack.c.l.b16 %v3599
  %v3933 = vunpack.c.h.b16 %v3599
  %v3934 = vunpack.c.l.b16 %v3600
  %v3935 = vunpack.c.h.b16 %v3600
  %v3936 = vunpack.c.l.b16 %v3601
  %v3937 = vunpack.c.h.b16 %v3601
  %v3938 = vunpack.c.l.b16 %v3602
  %v3939 = vunpack.c.h.b16 %v3602
  %v3940 = vunpack.c.l.b16 %v3603
  %v3941 = vunpack.c.h.b16 %v3603
  %v3942 = vunpack.c.l.b16 %v3604
  %v3943 = vunpack.c.h.b16 %v3604
  %v3944 = vunpack.c.l.b16 %v3605
  %v3945 = vunpack.c.h.b16 %v3605
  %v3946 = vunpack.c.l.b16 %v3606
  %v3947 = vunpack.c.h.b16 %v3606
  %v3948 = vunpack.c.l.b16 %v3607
  %v3949 = vunpack.c.h.b16 %v3607
  %v3950 = vunpack.c.l.b16 %v3608
  %v3951 = vunpack.c.h.b16 %v3608
  %v3952 = vunpack.c.l.b16 %v3609
  %v3953 = vunpack.c.h.b16 %v3609
  %v3954 = vunpack.c.l.b16 %v3610
  %v3955 = vunpack.c.h.b16 %v3610
  %v3956 = vunpack.c.l.b16 %v3611
  %v3957 = vunpack.c.h.b16 %v3611
  %v3958 = vunpack.c.l.b16 %v3612
  %v3959 = vunpack.c.h.b16 %v3612
  %v3960 = vunpack.c.l.b16 %v3613
  %v3961 = vunpack.c.h.b16 %v3613
  %v3962 = vunpack.c.l.b16 %v3614
  %v3963 = vunpack.c.h.b16 %v3614
  %v3964 = vunpack.c.l.b16 %v3615
  %v3965 = vunpack.c.h.b16 %v3615
  %v3966 = vunpack.c.l.b16 %v3616
  %v3967 = vunpack.c.h.b16 %v3616
  %v3968 = vunpack.c.l.b16 %v3617
  %v3969 = vunpack.c.h.b16 %v3617
  %v3970 = vunpack.c.l.b16 %v3618
  %v3971 = vunpack.c.h.b16 %v3618
  %v3972 = vunpack.c.l.b16 %v3619
  %v3973 = vunpack.c.h.b16 %v3619
  %v3974 = vunpack.c.l.b16 %v3620
  %v3975 = vunpack.c.h.b16 %v3620
  %v3976 = vunpack.c.l.b16 %v3621
  %v3977 = vunpack.c.h.b16 %v3621
  %v3978 = vunpack.c.l.b16 %v3622
  %v3979 = vunpack.c.h.b16 %v3622
  %v3980 = vunpack.c.l.b16 %v3623
  %v3981 = vunpack.c.h.b16 %v3623
  %v3982 = vunpack.c.l.b16 %v3624
  %v3983 = vunpack.c.h.b16 %v3624
  %v3984 = vunpack.c.l.b16 %v3625
  %v3985 = vunpack.c.h.b16 %v3625
  %v3986 = vunpack.c.l.b16 %v3626
  %v3987 = vunpack.c.h.b16 %v3626
  %v3988 = vunpack.c.l.b16 %v3627
  %v3989 = vunpack.c.h.b16 %v3627
  %v3990 = vunpack.c.l.b16 %v3628
  %v3991 = vunpack.c.h.b16 %v3628
  %v3992 = vunpack.c.l.b16 %v3629
  %v3993 = vunpack.c.h.b16 %v3629
  %v3994 = vunpack.c.l.b16 %v3630
  %v3995 = vunpack.c.h.b16 %v3630
  %v3996 = vunpack.c.l.b16 %v3631
  %v3997 = vunpack.c.h.b16 %v3631
  %v3998 = vunpack.c.l.b16 %v3632
  %v3999 = vunpack.c.h.b16 %v3632
  %v4000 = vunpack.c.l.b16 %v3633
  %v4001 = vunpack.c.h.b16 %v3633
  %v4002 = vunpack.c.l.b16 %v3634
  %v4003 = vunpack.c.h.b16 %v3634
  %v4004 = vunpack.c.l.b16 %v3635
  %v4005 = vunpack.c.h.b16 %v3635
  %v4006 = vunpack.c.l.b16 %v3636
  %v4007 = vunpack.c.h.b16 %v3636
  %v4008 = vunpack.c.l.b16 %v3637
  %v4009 = vunpack.c.h.b16 %v3637
  %v4010 = vunpack.c.l.b16 %v3638
  %v4011 = vunpack.c.h.b16 %v3638
  %v4012 = vunpack.c.l.b16 %v3639
  %v4013 = vunpack.c.h.b16 %v3639
  %v4014 = vunpack.c.l.b16 %v3640
  %v4015 = vunpack.c.h.b16 %v3640
  %v4016 = vunpack.c.l.b16 %v3641
  %v4017 = vunpack.c.h.b16 %v3641
  %v4018 = vunpack.c.l.b16 %v3642
  %v4019 = vunpack.c.h.b16 %v3642
  %v4020 = vunpack.c.l.b16 %v3643
  %v4021 = vunpack.c.h.b16 %v3643
  %v4022 = vunpack.c.l.b16 %v3644
  %v4023 = vunpack.c.h.b16 %v3644
  %v4024 = vunpack.c.l.b16 %v3645
  %v4025 = vunpack.c.h.b16 %v3645
  %v4026 = vunpack.c.l.b16 %v3646
  %v4027 = vunpack.c.h.b16 %v3646
  %v4028 = vunpack.c.l.b16 %v3647
  %v4029 = vunpack.c.h.b16 %v3647
  %v4030 = vunpack.c.l.b16 %v3648
  %v4031 = vunpack.c.h.b16 %v3648
  %v4032 = vunpack.c.l.b16 %v3649
  %v4033 = vunpack.c.h.b16 %v3649
  %v4034 = vunpack.c.l.b16 %v3650
  %v4035 = vunpack.c.h.b16 %v3650
  %v4036 = vunpack.c.l.b16 %v3651
  %v4037 = vunpack.c.h.b16 %v3651
  %v4038 = vunpack.c.l.b16 %v3652
  %v4039 = vunpack.c.h.b16 %v3652
  %v4040 = vunpack.c.l.b16 %v3653
  %v4041 = vunpack.c.h.b16 %v3653
  %v4042 = vunpack.c.l.b16 %v3654
  %v4043 = vunpack.c.h.b16 %v3654
  %v4044 = vunpack.c.l.b16 %v3655
  %v4045 = vunpack.c.h.b16 %v3655
  %v4046 = vunpack.c.l.b16 %v3656
  %v4047 = vunpack.c.h.b16 %v3656
  %v4048 = vunpack.c.l.b16 %v3657
  %v4049 = vunpack.c.h.b16 %v3657
  %v4050 = vunpack.c.l.b16 %v3658
  %v4051 = vunpack.c.h.b16 %v3658
  %v4052 = vunpack.c.l.b16 %v3659
  %v4053 = vunpack.c.h.b16 %v3659
  %v4054 = vunpack.c.l.b16 %v3660
  %v4055 = vunpack.c.h.b16 %v3660
  %v4056 = vunpack.c.l.b16 %v3661
  %v4057 = vunpack.c.h.b16 %v3661
  %v4058 = vunpack.c.l.b16 %v3662
  %v4059 = vunpack.c.h.b16 %v3662
  %v4060 = vunpack.c.l.b16 %v3663
  %v4061 = vunpack.c.h.b16 %v3663
  %v4062 = vunpack.c.l.b16 %v3664
  %v4063 = vunpack.c.h.b16 %v3664
  %v4064 = vunpack.c.l.b16 %v3665
  %v4065 = vunpack.c.h.b16 %v3665
  %v4066 = vunpack.c.l.b16 %v3666
  %v4067 = vunpack.c.h.b16 %v3666
  %v4068 = vunpack.c.l.b16 %v3667
  %v4069 = vunpack.c.h.b16 %v3667
  %v4070 = vunpack.c.l.b16 %v3668
  %v4071 = vunpack.c.h.b16 %v3668
  %v4072 = vunpack.c.l.b16 %v3669
  %v4073 = vunpack.c.h.b16 %v3669
  %v4074 = vunpack.c.l.b16 %v3670
  %v4075 = vunpack.c.h.b16 %v3670
  %v4076 = vunpack.c.l.b16 %v3671
  %v4077 = vunpack.c.h.b16 %v3671
  %v4078 = vunpack.c.l.b16 %v3672
  %v4079 = vunpack.c.h.b16 %v3672
  %v4080 = vunpack.c.l.b16 %v3673
  %v4081 = vunpack.c.h.b16 %v3673
  %v4082 = vunpack.c.l.b16 %v3674
  %v4083 = vunpack.c.h.b16 %v3674
  %v4084 = vunpack.c.l.b16 %v3675
  %v4085 = vunpack.c.h.b16 %v3675
  %v4086 = vunpack.c.l.b16 %v3676
  %v4087 = vunpack.c.h.b16 %v3676
  %v4088 = vunpack.c.l.b16 %v3677
  %v4089 = vunpack.c.h.b16 %v3677
  %v4090 = vunpack.c.l.b16 %v3678
  %v4091 = vunpack.c.h.b16 %v3678
  %v4092 = vunpack.c.l.b16 %v3679
  %v4093 = vunpack.c.h.b16 %v3679
  %v4094 = vunpack.c.l.b16 %v3680
  %v4095 = vunpack.c.h.b16 %v3680
  %v4096 = vunpack.c.l.b16 %v3681
  %v4097 = vunpack.c.h.b16 %v3681
  %v4098 = vunpack.c.l.b16 %v3682
  %v4099 = vunpack.c.h.b16 %v3682
  %v4100 = vunpack.c.l.b16 %v3683
  %v4101 = vunpack.c.h.b16 %v3683
  %v4102 = vunpack.c.l.b16 %v3684
  %v4103 = vunpack.c.h.b16 %v3684
  %v4104 = vunpack.c.l.b16 %v3685
  %v4105 = vunpack.c.h.b16 %v3685
  %v4106 = vunpack.c.l.b16 %v3686
  %v4107 = vunpack.c.h.b16 %v3686
  %v4108 = vunpack.c.l.b16 %v3687
  %v4109 = vunpack.c.h.b16 %v3687
  %v4110 = vunpack.c.l.b16 %v3688
  %v4111 = vunpack.c.h.b16 %v3688
  %v4112 = vunpack.c.l.b16 %v3689
  %v4113 = vunpack.c.h.b16 %v3689
  %v4114 = vunpack.c.l.b16 %v3690
  %v4115 = vunpack.c.h.b16 %v3690
  %v4116 = vunpack.c.l.b16 %v3691
  %v4117 = vunpack.c.h.b16 %v3691
  %v4118 = vunpack.c.l.b16 %v3692
  %v4119 = vunpack.c.h.b16 %v3692
  %v4120 = vunpack.c.l.b16 %v3693
  %v4121 = vunpack.c.h.b16 %v3693
  %v4122 = vunpack.c.l.b16 %v3694
  %v4123 = vunpack.c.h.b16 %v3694
  %v4124 = vunpack.c.l.b16 %v3695
  %v4125 = vunpack.c.h.b16 %v3695
  %v4126 = vunpack.c.l.b16 %v3696
  %v4127 = vunpack.c.h.b16 %v3696
  %v4128 = vunpack.c.l.b16 %v3697
  %v4129 = vunpack.c.h.b16 %v3697
  %v4130 = vunpack.c.l.b16 %v3698
  %v4131 = vunpack.c.h.b16 %v3698
  %v4132 = vunpack.c.l.b16 %v3699
  %v4133 = vunpack.c.h.b16 %v3699
  %v4134 = vunpack.c.l.b16 %v3700
  %v4135 = vunpack.c.h.b16 %v3700
  %v4136 = vunpack.c.l.b16 %v3701
  %v4137 = vunpack.c.h.b16 %v3701
  %v4138 = vunpack.c.l.b16 %v3702
  %v4139 = vunpack.c.h.b16 %v3702
  %v4140 = vpack.c.b16 %v3888, %v3884
  %v4141 = vpack.c.b16 %v3889, %v3885
  %v4142 = vpack.c.b16 %v3890, %v3886
  %v4143 = vpack.c.b16 %v3891, %v3887
  %v4144 = vpack.c.b16 %v3896, %v3892
  %v4145 = vpack.c.b16 %v3897, %v3893
  %v4146 = vpack.c.b16 %v3898, %v3894
  %v4147 = vpack.c.b16 %v3899, %v3895
  %v4148 = vpack.c.b16 %v3904, %v3900
  %v4149 = vpack.c.b16 %v3905, %v3901
  %v4150 = vpack.c.b16 %v3906, %v3902
  %v4151 = vpack.c.b16 %v3907, %v3903
  %v4152 = vpack.c.b16 %v3912, %v3908
  %v4153 = vpack.c.b16 %v3913, %v3909
  %v4154 = vpack.c.b16 %v3914, %v3910
  %v4155 = vpack.c.b16 %v3915, %v3911
  %v4156 = vpack.c.b16 %v3920, %v3916
  %v4157 = vpack.c.b16 %v3921, %v3917
  %v4158 = vpack.c.b16 %v3922, %v3918
  %v4159 = vpack.c.b16 %v3923, %v3919
  %v4160 = vpack.c.b16 %v3928, %v3924
  %v4161 = vpack.c.b16 %v3929, %v3925
  %v4162 = vpack.c.b16 %v3930, %v3926
  %v4163 = vpack.c.b16 %v3931, %v3927
  %v4164 = vpack.c.b16 %v3936, %v3932
  %v4165 = vpack.c.b16 %v3937, %v3933
  %v4166 = vpack.c.b16 %v3938, %v3934
  %v4167 = vpack.c.b16 %v3939, %v3935
  %v4168 = vpack.c.b16 %v3944, %v3940
  %v4169 = vpack.c.b16 %v3945, %v3941
  %v4170 = vpack.c.b16 %v3946, %v3942
  %v4171 = vpack.c.b16 %v3947, %v3943
  %v4172 = vpack.c.b16 %v3952, %v3948
  %v4173 = vpack.c.b16 %v3953, %v3949
  %v4174 = vpack.c.b16 %v3954, %v3950
  %v4175 = vpack.c.b16 %v3955, %v3951
  %v4176 = vpack.c.b16 %v3960, %v3956
  %v4177 = vpack.c.b16 %v3961, %v3957
  %v4178 = vpack.c.b16 %v3962, %v3958
  %v4179 = vpack.c.b16 %v3963, %v3959
  %v4180 = vpack.c.b16 %v3968, %v3964
  %v4181 = vpack.c.b16 %v3969, %v3965
  %v4182 = vpack.c.b16 %v3970, %v3966
  %v4183 = vpack.c.b16 %v3971, %v3967
  %v4184 = vpack.c.b16 %v3976, %v3972
  %v4185 = vpack.c.b16 %v3977, %v3973
  %v4186 = vpack.c.b16 %v3978, %v3974
  %v4187 = vpack.c.b16 %v3979, %v3975
  %v4188 = vpack.c.b16 %v3984, %v3980
  %v4189 = vpack.c.b16 %v3985, %v3981
  %v4190 = vpack.c.b16 %v3986, %v3982
  %v4191 = vpack.c.b16 %v3987, %v3983
  %v4192 = vpack.c.b16 %v3992, %v3988
  %v4193 = vpack.c.b16 %v3993, %v3989
  %v4194 = vpack.c.b16 %v3994, %v3990
  %v4195 = vpack.c.b16 %v3995, %v3991
  %v4196 = vpack.c.b16 %v4000, %v3996
  %v4197 = vpack.c.b16 %v4001, %v3997
  %v4198 = vpack.c.b16 %v4002, %v3998
  %v4199 = vpack.c.b16 %v4003, %v3999
  %v4200 = vpack.c.b16 %v4008, %v4004
  %v4201 = vpack.c.b16 %v4009, %v4005
  %v4202 = vpack.c.b16 %v4010, %v4006
  %v4203 = vpack.c.b16 %v4011, %v4007
  %v4204 = vpack.c.b16 %v4016, %v4012
  %v4205 = vpack.c.b16 %v4017, %v4013
  %v4206 = vpack.c.b16 %v4018, %v4014
  %v4207 = vpack.c.b16 %v4019, %v4015
  %v4208 = vpack.c.b16 %v4024, %v4020
  %v4209 = vpack.c.b16 %v4025, %v4021
  %v4210 = vpack.c.b16 %v4026, %v4022
  %v4211 = vpack.c.b16 %v4027, %v4023
  %v4212 = vpack.c.b16 %v4032, %v4028
  %v4213 = vpack.c.b16 %v4033, %v4029
  %v4214 = vpack.c.b16 %v4034, %v4030
  %v4215 = vpack.c.b16 %v4035, %v4031
  %v4216 = vpack.c.b16 %v4040, %v4036
  %v4217 = vpack.c.b16 %v4041, %v4037
  %v4218 = vpack.c.b16 %v4042, %v4038
  %v4219 = vpack.c.b16 %v4043, %v4039
  %v4220 = vpack.c.b16 %v4048, %v4044
  %v4221 = vpack.c.b16 %v4049, %v4045
  %v4222 = vpack.c.b16 %v4050, %v4046
  %v4223 = vpack.c.b16 %v4051, %v4047
  %v4224 = vpack.c.b16 %v4056, %v4052
  %v4225 = vpack.c.b16 %v4057, %v4053
  %v4226 = vpack.c.b16 %v4058, %v4054
  %v4227 = vpack.c.b16 %v4059, %v4055
  %v4228 = vpack.c.b16 %v4064, %v4060
  %v4229 = vpack.c.b16 %v4065, %v4061
  %v4230 = vpack.c.b16 %v4066, %v4062
  %v4231 = vpack.c.b16 %v4067, %v4063
  %v4232 = vpack.c.b16 %v4072, %v4068
  %v4233 = vpack.c.b16 %v4073, %v4069
  %v4234 = vpack.c.b16 %v4074, %v4070
  %v4235 = vpack.c.b16 %v4075, %v4071
  %v4236 = vpack.c.b16 %v4080, %v4076
  %v4237 = vpack.c.b16 %v4081, %v4077
  %v4238 = vpack.c.b16 %v4082, %v4078
  %v4239 = vpack.c.b16 %v4083, %v4079
  %v4240 = vpack.c.b16 %v4088, %v4084
  %v4241 = vpack.c.b16 %v4089, %v4085
  %v4242 = vpack.c.b16 %v4090, %v4086
  %v4243 = vpack.c.b16 %v4091, %v4087
  %v4244 = vpack.c.b16 %v4096, %v4092
  %v4245 = vpack.c.b16 %v4097, %v4093
  %v4246 = vpack.c.b16 %v4098, %v4094
  %v4247 = vpack.c.b16 %v4099, %v4095
  %v4248 = vpack.c.b16 %v4104, %v4100
  %v4249 = vpack.c.b16 %v4105, %v4101
  %v4250 = vpack.c.b16 %v4106, %v4102
  %v4251 = vpack.c.b16 %v4107, %v4103
  %v4252 = vpack.c.b16 %v4112, %v4108
  %v4253 = vpack.c.b16 %v4113, %v4109
  %v4254 = vpack.c.b16 %v4114, %v4110
  %v4255 = vpack.c.b16 %v4115, %v4111
  %v4256 = vpack.c.b16 %v4120, %v4116
  %v4257 = vpack.c.b16 %v4121, %v4117
  %v4258 = vpack.c.b16 %v4122, %v4118
  %v4259 = vpack.c.b16 %v4123, %v4119
  %v4260 = vpack.c.b16 %v4128, %v4124
  %v4261 = vpack.c.b16 %v4129, %v4125
  %v4262 = vpack.c.b16 %v4130, %v4126
  %v4263 = vpack.c.b16 %v4131, %v4127
  %v4264 = vpack.c.b16 %v4136, %v4132
  %v4265 = vpack.c.b16 %v4137, %v4133
  %v4266 = vpack.c.b16 %v4138, %v4134
  %v4267 = vpack.c.b16 %v4139, %v4135
  %4396 = vmatprep.subr.bf16.mxu0 %v4141
  %4397 = vmatpush1.bf16.msra.mxu0 %v4140
  %4398 = vmatprep.subr.bf16.mxu0 %v4145
  %4399 = vmatpush1.bf16.msra.mxu0 %v4144
  %4400 = vmatprep.subr.bf16.mxu0 %v4149
  %4401 = vmatpush1.bf16.msra.mxu0 %v4148
  %4402 = vmatprep.subr.bf16.mxu0 %v4153
  %4403 = vmatpush1.bf16.msra.mxu0 %v4152
  %4404 = vmatprep.subr.bf16.mxu0 %v4157
  %4405 = vmatpush1.bf16.msra.mxu0 %v4156
  %4406 = vmatprep.subr.bf16.mxu0 %v4161
  %4407 = vmatpush1.bf16.msra.mxu0 %v4160
  %4408 = vmatprep.subr.bf16.mxu0 %v4165
  %4409 = vmatpush1.bf16.msra.mxu0 %v4164
  %4410 = vmatprep.subr.bf16.mxu0 %v4169
  %4411 = vmatpush1.bf16.msra.mxu0 %v4168
  %4412 = vmatprep.subr.bf16.mxu0 %v4173
  %4413 = vmatpush1.bf16.msra.mxu0 %v4172
  %4414 = vmatprep.subr.bf16.mxu0 %v4177
  %4415 = vmatpush1.bf16.msra.mxu0 %v4176
  %4416 = vmatprep.subr.bf16.mxu0 %v4181
  %4417 = vmatpush1.bf16.msra.mxu0 %v4180
  %4418 = vmatprep.subr.bf16.mxu0 %v4185
  %4419 = vmatpush1.bf16.msra.mxu0 %v4184
  %4420 = vmatprep.subr.bf16.mxu0 %v4189
  %4421 = vmatpush1.bf16.msra.mxu0 %v4188
  %4422 = vmatprep.subr.bf16.mxu0 %v4193
  %4423 = vmatpush1.bf16.msra.mxu0 %v4192
  %4424 = vmatprep.subr.bf16.mxu0 %v4197
  %4425 = vmatpush1.bf16.msra.mxu0 %v4196
  %4426 = vmatprep.subr.bf16.mxu0 %v4201
  %4427 = vmatpush1.bf16.msra.mxu0 %v4200
  %4428 = vmatprep.mubr.bf16.mxu0 %v3727
  %4429 = vmatmul.mubr.bf16.gmra.mrb[0].mxu0 %v3715
  %v4430 = vpop.f32.mrb[0].mxu0
  %v4431 = vadd.f32 0.0, %v4430
  %v4432 = vpop.f32.mrb[0].mxu0
  %v4433 = vadd.f32 0.0, %v4432
  %v4434 = vpop.f32.mrb[0].mxu0
  %v4435 = vadd.f32 0.0, %v4434
  %v4436 = vpop.f32.mrb[0].mxu0
  %v4437 = vadd.f32 0.0, %v4436
  %4438 = vdwg.mxu0
  %4439 = vmatprep.subr.bf16.mxu0 %v4205
  %4440 = vmatpush1.bf16.msra.mxu0 %v4204
  %4441 = vmatprep.subr.bf16.mxu0 %v4209
  %4442 = vmatpush1.bf16.msra.mxu0 %v4208
  %4443 = vmatprep.subr.bf16.mxu0 %v4213
  %4444 = vmatpush1.bf16.msra.mxu0 %v4212
  %4445 = vmatprep.subr.bf16.mxu0 %v4217
  %4446 = vmatpush1.bf16.msra.mxu0 %v4216
  %4447 = vmatprep.subr.bf16.mxu0 %v4221
  %4448 = vmatpush1.bf16.msra.mxu0 %v4220
  %4449 = vmatprep.subr.bf16.mxu0 %v4225
  %4450 = vmatpush1.bf16.msra.mxu0 %v4224
  %4451 = vmatprep.subr.bf16.mxu0 %v4229
  %4452 = vmatpush1.bf16.msra.mxu0 %v4228
  %4453 = vmatprep.subr.bf16.mxu0 %v4233
  %4454 = vmatpush1.bf16.msra.mxu0 %v4232
  %4455 = vmatprep.subr.bf16.mxu0 %v4237
  %4456 = vmatpush1.bf16.msra.mxu0 %v4236
  %4457 = vmatprep.subr.bf16.mxu0 %v4241
  %4458 = vmatpush1.bf16.msra.mxu0 %v4240
  %4459 = vmatprep.subr.bf16.mxu0 %v4245
  %4460 = vmatpush1.bf16.msra.mxu0 %v4244
  %4461 = vmatprep.subr.bf16.mxu0 %v4249
  %4462 = vmatpush1.bf16.msra.mxu0 %v4248
  %4463 = vmatprep.subr.bf16.mxu0 %v4253
  %4464 = vmatpush1.bf16.msra.mxu0 %v4252
  %4465 = vmatprep.subr.bf16.mxu0 %v4257
  %4466 = vmatpush1.bf16.msra.mxu0 %v4256
  %4467 = vmatprep.subr.bf16.mxu0 %v4261
  %4468 = vmatpush1.bf16.msra.mxu0 %v4260
  %4469 = vmatprep.subr.bf16.mxu0 %v4265
  %4470 = vmatpush1.bf16.msra.mxu0 %v4264
  %4471 = vmatprep.mubr.bf16.mxu0 %v3751
  %4472 = vmatmul.mubr.bf16.gmra.mrb[0].mxu0 %v3739
  %v4473 = vpop.f32.mrb[0].mxu0
  %v4474 = vadd.f32 %v4431, %v4473
  %v4475 = vpop.f32.mrb[0].mxu0
  %v4476 = vadd.f32 %v4433, %v4475
  %v4477 = vpop.f32.mrb[0].mxu0
  %v4478 = vadd.f32 %v4435, %v4477
  %v4479 = vpop.f32.mrb[0].mxu0
  %v4480 = vadd.f32 %v4437, %v4479
  %4481 = vdwg.mxu0
  %4482 = vmatprep.subr.bf16.mxu0 %v4143
  %4483 = vmatpush1.bf16.msra.mxu0 %v4142
  %4484 = vmatprep.subr.bf16.mxu0 %v4147
  %4485 = vmatpush1.bf16.msra.mxu0 %v4146
  %4486 = vmatprep.subr.bf16.mxu0 %v4151
  %4487 = vmatpush1.bf16.msra.mxu0 %v4150
  %4488 = vmatprep.subr.bf16.mxu0 %v4155
  %4489 = vmatpush1.bf16.msra.mxu0 %v4154
  %4490 = vmatprep.subr.bf16.mxu0 %v4159
  %4491 = vmatpush1.bf16.msra.mxu0 %v4158
  %4492 = vmatprep.subr.bf16.mxu0 %v4163
  %4493 = vmatpush1.bf16.msra.mxu0 %v4162
  %4494 = vmatprep.subr.bf16.mxu0 %v4167
  %4495 = vmatpush1.bf16.msra.mxu0 %v4166
  %4496 = vmatprep.subr.bf16.mxu0 %v4171
  %4497 = vmatpush1.bf16.msra.mxu0 %v4170
  %4498 = vmatprep.subr.bf16.mxu0 %v4175
  %4499 = vmatpush1.bf16.msra.mxu0 %v4174
  %4500 = vmatprep.subr.bf16.mxu0 %v4179
  %4501 = vmatpush1.bf16.msra.mxu0 %v4178
  %4502 = vmatprep.subr.bf16.mxu0 %v4183
  %4503 = vmatpush1.bf16.msra.mxu0 %v4182
  %4504 = vmatprep.subr.bf16.mxu0 %v4187
  %4505 = vmatpush1.bf16.msra.mxu0 %v4186
  %4506 = vmatprep.subr.bf16.mxu0 %v4191
  %4507 = vmatpush1.bf16.msra.mxu0 %v4190
  %4508 = vmatprep.subr.bf16.mxu0 %v4195
  %4509 = vmatpush1.bf16.msra.mxu0 %v4194
  %4510 = vmatprep.subr.bf16.mxu0 %v4199
  %4511 = vmatpush1.bf16.msra.mxu0 %v4198
  %4512 = vmatprep.subr.bf16.mxu0 %v4203
  %4513 = vmatpush1.bf16.msra.mxu0 %v4202
  %4514 = vmatprep.mubr.bf16.mxu0 %v3727
  %4515 = vmatmul.mubr.bf16.gmra.mrb[0].mxu0 %v3715
  %v4516 = vpop.f32.mrb[0].mxu0
  %v4517 = vadd.f32 0.0, %v4516
  %v4518 = vpop.f32.mrb[0].mxu0
  %v4519 = vadd.f32 0.0, %v4518
  %v4520 = vpop.f32.mrb[0].mxu0
  %v4521 = vadd.f32 0.0, %v4520
  %v4522 = vpop.f32.mrb[0].mxu0
  %v4523 = vadd.f32 0.0, %v4522
  %4524 = vdwg.mxu0
  %4525 = vmatprep.subr.bf16.mxu0 %v4207
  %4526 = vmatpush1.bf16.msra.mxu0 %v4206
  %4527 = vmatprep.subr.bf16.mxu0 %v4211
  %4528 = vmatpush1.bf16.msra.mxu0 %v4210
  %4529 = vmatprep.subr.bf16.mxu0 %v4215
  %4530 = vmatpush1.bf16.msra.mxu0 %v4214
  %4531 = vmatprep.subr.bf16.mxu0 %v4219
  %4532 = vmatpush1.bf16.msra.mxu0 %v4218
  %4533 = vmatprep.subr.bf16.mxu0 %v4223
  %4534 = vmatpush1.bf16.msra.mxu0 %v4222
  %4535 = vmatprep.subr.bf16.mxu0 %v4227
  %4536 = vmatpush1.bf16.msra.mxu0 %v4226
  %4537 = vmatprep.subr.bf16.mxu0 %v4231
  %4538 = vmatpush1.bf16.msra.mxu0 %v4230
  %4539 = vmatprep.subr.bf16.mxu0 %v4235
  %4540 = vmatpush1.bf16.msra.mxu0 %v4234
  %4541 = vmatprep.subr.bf16.mxu0 %v4239
  %4542 = vmatpush1.bf16.msra.mxu0 %v4238
  %4543 = vmatprep.subr.bf16.mxu0 %v4243
  %4544 = vmatpush1.bf16.msra.mxu0 %v4242
  %4545 = vmatprep.subr.bf16.mxu0 %v4247
  %4546 = vmatpush1.bf16.msra.mxu0 %v4246
  %4547 = vmatprep.subr.bf16.mxu0 %v4251
  %4548 = vmatpush1.bf16.msra.mxu0 %v4250
  %4549 = vmatprep.subr.bf16.mxu0 %v4255
  %4550 = vmatpush1.bf16.msra.mxu0 %v4254
  %4551 = vmatprep.subr.bf16.mxu0 %v4259
  %4552 = vmatpush1.bf16.msra.mxu0 %v4258
  %4553 = vmatprep.subr.bf16.mxu0 %v4263
  %4554 = vmatpush1.bf16.msra.mxu0 %v4262
  %4555 = vmatprep.subr.bf16.mxu0 %v4267
  %4556 = vmatpush1.bf16.msra.mxu0 %v4266
  %4557 = vmatprep.mubr.bf16.mxu0 %v3751
  %4558 = vmatmul.mubr.bf16.gmra.mrb[0].mxu0 %v3739
  %v4559 = vpop.f32.mrb[0].mxu0
  %v4560 = vadd.f32 %v4517, %v4559
  %v4561 = vpop.f32.mrb[0].mxu0
  %v4562 = vadd.f32 %v4519, %v4561
  %v4563 = vpop.f32.mrb[0].mxu0
  %v4564 = vadd.f32 %v4521, %v4563
  %v4565 = vpop.f32.mrb[0].mxu0
  %v4566 = vadd.f32 %v4523, %v4565
  %4567 = vdwg.mxu0
  %v4568 = vadd.f32 %v3480, %v4474
  %v4569 = vadd.f32 %v3482, %v4476
  %v4570 = vadd.f32 %v3566, %v4560
  %v4571 = vadd.f32 %v3568, %v4562
  %v4572 = vadd.f32 %v3484, %v4478
  %v4573 = vadd.f32 %v3486, %v4480
  %v4574 = vadd.f32 %v3570, %v4564
  %v4575 = vadd.f32 %v3572, %v4566
  %v4576 = vld [vmem:[%s7] sm:$0xf]
  %v4578 = vlaneseq
  %v4579 = vshrl.u32 %v4578, 7
  %v4580 = vsub.s32 0, %v4579
  %v4581 = vrot.slane %v4576, %v4580
  %v4582 = vlaneseq
  %v4583 = vshrl.u32 %v4582, 7
  %v4584 = vsub.s32 1, %v4583
  %v4585 = vrot.slane %v4576, %v4584
  %v4586 = vlaneseq
  %v4587 = vshrl.u32 %v4586, 7
  %v4588 = vsub.s32 2, %v4587
  %v4589 = vrot.slane %v4576, %v4588
  %v4590 = vlaneseq
  %v4591 = vshrl.u32 %v4590, 7
  %v4592 = vsub.s32 3, %v4591
  %v4593 = vrot.slane %v4576, %v4592
  %v4598 = vadd.f32 %v4568, %v4581
  %v4599 = vadd.f32 %v4569, %v4585
  %v4600 = vadd.f32 %v4570, %v4589
  %v4601 = vadd.f32 %v4571, %v4593
  %v4602 = vadd.f32 %v4572, %v4581
  %v4603 = vadd.f32 %v4573, %v4585
  %v4604 = vadd.f32 %v4574, %v4589
  %v4605 = vadd.f32 %v4575, %v4593
  %v4606 = vmax.f32 %v4598, 0.0
  %v4607 = vmax.f32 %v4599, 0.0
  %v4608 = vmax.f32 %v4600, 0.0
  %v4609 = vmax.f32 %v4601, 0.0
  %v4610 = vmax.f32 %v4602, 0.0
  %v4611 = vmax.f32 %v4603, 0.0
  %v4612 = vmax.f32 %v4604, 0.0
  %v4613 = vmax.f32 %v4605, 0.0
  %4614 = vst.msk [vmem:[#allocation6] ss:$8 sm:$0xf] %vm1597, 0.0
  %4615 = vst.msk [vmem:[#allocation6] ss:$8 sm:$0x0] %vm1597, 0.0
  %s4616 = scalar_lea.vmem [#allocation6], 65
  %4617 = vst.msk [vmem:[%s4616] ss:$8 sm:$0xf] %vm1597, 0.0
  %4618 = vst.msk [vmem:[%s4616] ss:$8 sm:$0x0] %vm1597, 0.0
  %v4627 = vrot.slane %v4606, 7
  %v4628 = vrot.slane %v4607, 7
  %v4629 = vrot.slane %v4608, 7
  %v4630 = vrot.slane %v4609, 7
  %v4631 = vrot.slane %v4610, 7
  %v4632 = vsel %vm1608, %v4627, %v4631
  %v4633 = vrot.slane %v4611, 7
  %v4634 = vsel %vm1608, %v4628, %v4633
  %v4635 = vrot.slane %v4612, 7
  %v4636 = vsel %vm1608, %v4629, %v4635
  %v4637 = vrot.slane %v4613, 7
  %v4638 = vsel %vm1608, %v4630, %v4637
  %4651 = vst [vmem:[#allocation6] sm:$0xfe] %v4627
  %4652 = vst [vmem:[#allocation6 + $0x8] sm:$0xfe] %v4628
  %4653 = vst [vmem:[#allocation6 + $0x10] sm:$0xfe] %v4629
  %4654 = vst [vmem:[#allocation6 + $0x18] sm:$0xfe] %v4630
  %4655 = vst [vmem:[#allocation6 + $0x20] sm:$0xff] %v4632
  %4656 = vst [vmem:[#allocation6 + $0x28] sm:$0xff] %v4634
  %4657 = vst [vmem:[#allocation6 + $0x30] sm:$0xff] %v4636
  %4658 = vst [vmem:[#allocation6 + $0x38] sm:$0xff] %v4638
  %4659 = vst [vmem:[#allocation6 + $0x40] sm:$0x1] %v4631
  %4660 = vst [vmem:[#allocation6 + $0x48] sm:$0x1] %v4633
  %4661 = vst [vmem:[#allocation6 + $0x50] sm:$0x1] %v4635
  %4662 = vst [vmem:[#allocation6 + $0x58] sm:$0x1] %v4637
  %v4663 = vld [vmem:[#allocation6] sm:$0xff]
  %v4664 = vld [vmem:[#allocation6 + $0x8] sm:$0xff]
  %v4665 = vld [vmem:[#allocation6 + $0x10] sm:$0xff]
  %v4666 = vld [vmem:[#allocation6 + $0x18] sm:$0xff]
  %v4667 = vld [vmem:[#allocation6 + $0x20] sm:$0xff]
  %v4668 = vld [vmem:[#allocation6 + $0x28] sm:$0xff]
  %v4669 = vld [vmem:[#allocation6 + $0x30] sm:$0xff]
  %v4670 = vld [vmem:[#allocation6 + $0x38] sm:$0xff]
  %v4671 = vpack.c.bf16 %v4667, %v4663
  %v4672 = vpack.c.bf16 %v4668, %v4664
  %v4673 = vpack.c.bf16 %v4669, %v4665
  %v4674 = vpack.c.bf16 %v4670, %v4666
  %v4675 = vld [vmem:[#allocation6] sm:$0xfe]
  %v4676 = vld [vmem:[#allocation6 + $0x8] sm:$0xfe]
  %v4677 = vld [vmem:[#allocation6 + $0x10] sm:$0xfe]
  %v4678 = vld [vmem:[#allocation6 + $0x18] sm:$0xfe]
  %v4679 = vld [vmem:[#allocation6 + $0x40] sm:$0x1]
  %v4680 = vld [vmem:[#allocation6 + $0x48] sm:$0x1]
  %v4681 = vld [vmem:[#allocation6 + $0x50] sm:$0x1]
  %v4682 = vld [vmem:[#allocation6 + $0x58] sm:$0x1]
  %v4683 = vpack.c.bf16 %v4667, %v4675
  %v4684 = vpack.c.bf16 %v4668, %v4676
  %v4685 = vpack.c.bf16 %v4669, %v4677
  %v4686 = vpack.c.bf16 %v4670, %v4678
  %v4687 = vpack.c.bf16 %v4679, %v4679
  %v4688 = vpack.c.bf16 %v4680, %v4680
  %v4689 = vpack.c.bf16 %v4681, %v4681
  %v4690 = vpack.c.bf16 %v4682, %v4682
  %v4691 = vld [vmem:[#allocation6] sm:$0xfc]
  %v4692 = vld [vmem:[#allocation6 + $0x8] sm:$0xfc]
  %v4693 = vld [vmem:[#allocation6 + $0x10] sm:$0xfc]
  %v4694 = vld [vmem:[#allocation6 + $0x18] sm:$0xfc]
  %v4695 = vld [vmem:[#allocation6 + $0x40] sm:$0x3]
  %v4696 = vld [vmem:[#allocation6 + $0x48] sm:$0x3]
  %v4697 = vld [vmem:[#allocation6 + $0x50] sm:$0x3]
  %v4698 = vld [vmem:[#allocation6 + $0x58] sm:$0x3]
  %v4699 = vpack.c.bf16 %v4667, %v4691
  %v4700 = vpack.c.bf16 %v4668, %v4692
  %v4701 = vpack.c.bf16 %v4669, %v4693
  %v4702 = vpack.c.bf16 %v4670, %v4694
  %v4703 = vpack.c.bf16 %v4695, %v4695
  %v4704 = vpack.c.bf16 %v4696, %v4696
  %v4705 = vpack.c.bf16 %v4697, %v4697
  %v4706 = vpack.c.bf16 %v4698, %v4698
  %v4707 = vld [vmem:[%s8] sm:$0xf]
  %v4708 = vld [vmem:[%s8 + $0x4] sm:$0xf]
  %v4709 = vld [vmem:[%s8 + $0x8] sm:$0xf]
  %v4710 = vld [vmem:[%s8 + $0xc] sm:$0xf]
  %v4711 = vld [vmem:[%s8 + $0x10] sm:$0xf]
  %v4712 = vld [vmem:[%s8 + $0x14] sm:$0xf]
  %v4713 = vld [vmem:[%s8 + $0x18] sm:$0xf]
  %v4714 = vld [vmem:[%s8 + $0x1c] sm:$0xf]
  %v4715 = vld [vmem:[%s8 + $0x20] sm:$0xf]
  %v4716 = vld [vmem:[%s8 + $0x24] sm:$0xf]
  %v4717 = vld [vmem:[%s8 + $0x28] sm:$0xf]
  %v4718 = vld [vmem:[%s8 + $0x2c] sm:$0xf]
  %v4719 = vld [vmem:[%s8 + $0x30] sm:$0xf]
  %v4720 = vld [vmem:[%s8 + $0x34] sm:$0xf]
  %v4721 = vld [vmem:[%s8 + $0x38] sm:$0xf]
  %v4722 = vld [vmem:[%s8 + $0x3c] sm:$0xf]
  %v4723 = vld [vmem:[%s8 + $0x40] sm:$0xf]
  %v4724 = vld [vmem:[%s8 + $0x44] sm:$0xf]
  %v4725 = vld [vmem:[%s8 + $0x48] sm:$0xf]
  %v4726 = vld [vmem:[%s8 + $0x4c] sm:$0xf]
  %v4727 = vld [vmem:[%s8 + $0x50] sm:$0xf]
  %v4728 = vld [vmem:[%s8 + $0x54] sm:$0xf]
  %v4729 = vld [vmem:[%s8 + $0x58] sm:$0xf]
  %v4730 = vld [vmem:[%s8 + $0x5c] sm:$0xf]
  %v4731 = vld [vmem:[%s8 + $0x60] sm:$0xf]
  %v4732 = vld [vmem:[%s8 + $0x64] sm:$0xf]
  %v4733 = vld [vmem:[%s8 + $0x68] sm:$0xf]
  %v4734 = vld [vmem:[%s8 + $0x6c] sm:$0xf]
  %v4735 = vld [vmem:[%s8 + $0x70] sm:$0xf]
  %v4736 = vld [vmem:[%s8 + $0x74] sm:$0xf]
  %v4737 = vld [vmem:[%s8 + $0x78] sm:$0xf]
  %v4738 = vld [vmem:[%s8 + $0x7c] sm:$0xf]
  %v4739 = vld [vmem:[%s8 + $0x80] sm:$0xf]
  %v4740 = vld [vmem:[%s8 + $0x84] sm:$0xf]
  %v4741 = vld [vmem:[%s8 + $0x88] sm:$0xf]
  %v4742 = vld [vmem:[%s8 + $0x8c] sm:$0xf]
  %v4743 = vld [vmem:[%s8 + $0x90] sm:$0xf]
  %v4744 = vld [vmem:[%s8 + $0x94] sm:$0xf]
  %v4745 = vld [vmem:[%s8 + $0x98] sm:$0xf]
  %v4746 = vld [vmem:[%s8 + $0x9c] sm:$0xf]
  %v4747 = vld [vmem:[%s8 + $0xa0] sm:$0xf]
  %v4748 = vld [vmem:[%s8 + $0xa4] sm:$0xf]
  %v4749 = vld [vmem:[%s8 + $0xa8] sm:$0xf]
  %v4750 = vld [vmem:[%s8 + $0xac] sm:$0xf]
  %v4751 = vld [vmem:[%s8 + $0xb0] sm:$0xf]
  %v4752 = vld [vmem:[%s8 + $0xb4] sm:$0xf]
  %v4753 = vld [vmem:[%s8 + $0xb8] sm:$0xf]
  %v4754 = vld [vmem:[%s8 + $0xbc] sm:$0xf]
  %v4755 = vld [vmem:[%s8 + $0xc0] sm:$0xf]
  %v4756 = vld [vmem:[%s8 + $0xc4] sm:$0xf]
  %v4757 = vld [vmem:[%s8 + $0xc8] sm:$0xf]
  %v4758 = vld [vmem:[%s8 + $0xcc] sm:$0xf]
  %v4759 = vld [vmem:[%s8 + $0xd0] sm:$0xf]
  %v4760 = vld [vmem:[%s8 + $0xd4] sm:$0xf]
  %v4761 = vld [vmem:[%s8 + $0xd8] sm:$0xf]
  %v4762 = vld [vmem:[%s8 + $0xdc] sm:$0xf]
  %v4763 = vld [vmem:[%s8 + $0xe0] sm:$0xf]
  %v4764 = vld [vmem:[%s8 + $0xe4] sm:$0xf]
  %v4765 = vld [vmem:[%s8 + $0xe8] sm:$0xf]
  %v4766 = vld [vmem:[%s8 + $0xec] sm:$0xf]
  %v4767 = vld [vmem:[%s8 + $0xf0] sm:$0xf]
  %v4768 = vld [vmem:[%s8 + $0xf4] sm:$0xf]
  %v4769 = vld [vmem:[%s8 + $0xf8] sm:$0xf]
  %v4770 = vld [vmem:[%s8 + $0xfc] sm:$0xf]
  %s4771 = scalar_lea.vmem %s8, 256
  %v4772 = vld [vmem:[%s4771] sm:$0xf]
  %v4773 = vld [vmem:[%s4771 + $0x4] sm:$0xf]
  %v4774 = vld [vmem:[%s4771 + $0x8] sm:$0xf]
  %v4775 = vld [vmem:[%s4771 + $0xc] sm:$0xf]
  %v4776 = vld [vmem:[%s4771 + $0x10] sm:$0xf]
  %v4777 = vld [vmem:[%s4771 + $0x14] sm:$0xf]
  %v4778 = vld [vmem:[%s4771 + $0x18] sm:$0xf]
  %v4779 = vld [vmem:[%s4771 + $0x1c] sm:$0xf]
  %v4780 = vld [vmem:[%s4771 + $0x20] sm:$0xf]
  %v4781 = vld [vmem:[%s4771 + $0x24] sm:$0xf]
  %v4782 = vld [vmem:[%s4771 + $0x28] sm:$0xf]
  %v4783 = vld [vmem:[%s4771 + $0x2c] sm:$0xf]
  %v4784 = vld [vmem:[%s4771 + $0x30] sm:$0xf]
  %v4785 = vld [vmem:[%s4771 + $0x34] sm:$0xf]
  %v4786 = vld [vmem:[%s4771 + $0x38] sm:$0xf]
  %v4787 = vld [vmem:[%s4771 + $0x3c] sm:$0xf]
  %v4788 = vld [vmem:[%s4771 + $0x40] sm:$0xf]
  %v4789 = vld [vmem:[%s4771 + $0x44] sm:$0xf]
  %v4790 = vld [vmem:[%s4771 + $0x48] sm:$0xf]
  %v4791 = vld [vmem:[%s4771 + $0x4c] sm:$0xf]
  %v4792 = vld [vmem:[%s4771 + $0x50] sm:$0xf]
  %v4793 = vld [vmem:[%s4771 + $0x54] sm:$0xf]
  %v4794 = vld [vmem:[%s4771 + $0x58] sm:$0xf]
  %v4795 = vld [vmem:[%s4771 + $0x5c] sm:$0xf]
  %v4796 = vld [vmem:[%s4771 + $0x60] sm:$0xf]
  %v4797 = vld [vmem:[%s4771 + $0x64] sm:$0xf]
  %v4798 = vld [vmem:[%s4771 + $0x68] sm:$0xf]
  %v4799 = vld [vmem:[%s4771 + $0x6c] sm:$0xf]
  %v4800 = vld [vmem:[%s4771 + $0x70] sm:$0xf]
  %v4801 = vld [vmem:[%s4771 + $0x74] sm:$0xf]
  %v4802 = vld [vmem:[%s4771 + $0x78] sm:$0xf]
  %v4803 = vld [vmem:[%s4771 + $0x7c] sm:$0xf]
  %v4804 = vld [vmem:[%s4771 + $0x80] sm:$0xf]
  %v4805 = vld [vmem:[%s4771 + $0x84] sm:$0xf]
  %v4806 = vld [vmem:[%s4771 + $0x88] sm:$0xf]
  %v4807 = vld [vmem:[%s4771 + $0x8c] sm:$0xf]
  %v4808 = vld [vmem:[%s4771 + $0x90] sm:$0xf]
  %v4809 = vld [vmem:[%s4771 + $0x94] sm:$0xf]
  %v4810 = vld [vmem:[%s4771 + $0x98] sm:$0xf]
  %v4811 = vld [vmem:[%s4771 + $0x9c] sm:$0xf]
  %v4812 = vld [vmem:[%s4771 + $0xa0] sm:$0xf]
  %v4813 = vld [vmem:[%s4771 + $0xa4] sm:$0xf]
  %v4814 = vld [vmem:[%s4771 + $0xa8] sm:$0xf]
  %v4815 = vld [vmem:[%s4771 + $0xac] sm:$0xf]
  %v4816 = vld [vmem:[%s4771 + $0xb0] sm:$0xf]
  %v4817 = vld [vmem:[%s4771 + $0xb4] sm:$0xf]
  %v4818 = vld [vmem:[%s4771 + $0xb8] sm:$0xf]
  %v4819 = vld [vmem:[%s4771 + $0xbc] sm:$0xf]
  %v4820 = vld [vmem:[%s4771 + $0xc0] sm:$0xf]
  %v4821 = vld [vmem:[%s4771 + $0xc4] sm:$0xf]
  %v4822 = vld [vmem:[%s4771 + $0xc8] sm:$0xf]
  %v4823 = vld [vmem:[%s4771 + $0xcc] sm:$0xf]
  %v4824 = vld [vmem:[%s4771 + $0xd0] sm:$0xf]
  %v4825 = vld [vmem:[%s4771 + $0xd4] sm:$0xf]
  %v4826 = vld [vmem:[%s4771 + $0xd8] sm:$0xf]
  %v4827 = vld [vmem:[%s4771 + $0xdc] sm:$0xf]
  %v4828 = vld [vmem:[%s4771 + $0xe0] sm:$0xf]
  %v4829 = vld [vmem:[%s4771 + $0xe4] sm:$0xf]
  %v4830 = vld [vmem:[%s4771 + $0xe8] sm:$0xf]
  %v4831 = vld [vmem:[%s4771 + $0xec] sm:$0xf]
  %v4832 = vld [vmem:[%s4771 + $0xf0] sm:$0xf]
  %v4833 = vld [vmem:[%s4771 + $0xf4] sm:$0xf]
  %v4834 = vld [vmem:[%s4771 + $0xf8] sm:$0xf]
  %v4835 = vld [vmem:[%s4771 + $0xfc] sm:$0xf]
  %v4837 = vshrl.u32 %v4683, 16
  %v4839 = vshll.u32 %v4683, 16
  %v4841 = vrot.slane %v4839, 1
  %v4842 = vor.u32 %v4837, %v4841
  %v4844 = vshll.u32 %v4687, 16
  %v4846 = vrot.slane %v4844, 1
  %v4847 = vsel %vm3703, %v4842, %v4846
  %v4849 = vshrl.u32 %v4684, 16
  %v4851 = vshll.u32 %v4684, 16
  %v4853 = vrot.slane %v4851, 1
  %v4854 = vor.u32 %v4849, %v4853
  %v4856 = vshll.u32 %v4688, 16
  %v4858 = vrot.slane %v4856, 1
  %v4859 = vsel %vm3703, %v4854, %v4858
  %v4861 = vshrl.u32 %v4685, 16
  %v4863 = vshll.u32 %v4685, 16
  %v4865 = vrot.slane %v4863, 1
  %v4866 = vor.u32 %v4861, %v4865
  %v4868 = vshll.u32 %v4689, 16
  %v4870 = vrot.slane %v4868, 1
  %v4871 = vsel %vm3703, %v4866, %v4870
  %v4873 = vshrl.u32 %v4686, 16
  %v4875 = vshll.u32 %v4686, 16
  %v4877 = vrot.slane %v4875, 1
  %v4878 = vor.u32 %v4873, %v4877
  %v4880 = vshll.u32 %v4690, 16
  %v4882 = vrot.slane %v4880, 1
  %v4883 = vsel %vm3703, %v4878, %v4882
  %v4952 = vunpack.c.l.b16 %v4772
  %v4953 = vunpack.c.l.b16 %v4773
  %v4954 = vunpack.c.l.b16 %v4774
  %v4955 = vunpack.c.l.b16 %v4775
  %v4956 = vunpack.c.l.b16 %v4776
  %v4957 = vunpack.c.l.b16 %v4777
  %v4958 = vunpack.c.l.b16 %v4778
  %v4959 = vunpack.c.l.b16 %v4779
  %v4960 = vunpack.c.l.b16 %v4780
  %v4961 = vunpack.c.l.b16 %v4781
  %v4962 = vunpack.c.l.b16 %v4782
  %v4963 = vunpack.c.l.b16 %v4783
  %v4964 = vunpack.c.l.b16 %v4784
  %v4965 = vunpack.c.l.b16 %v4785
  %v4966 = vunpack.c.l.b16 %v4786
  %v4967 = vunpack.c.l.b16 %v4787
  %v4968 = vunpack.c.l.b16 %v4788
  %v4969 = vunpack.c.l.b16 %v4789
  %v4970 = vunpack.c.l.b16 %v4790
  %v4971 = vunpack.c.l.b16 %v4791
  %v4972 = vunpack.c.l.b16 %v4792
  %v4973 = vunpack.c.l.b16 %v4793
  %v4974 = vunpack.c.l.b16 %v4794
  %v4975 = vunpack.c.l.b16 %v4795
  %v4976 = vunpack.c.l.b16 %v4796
  %v4977 = vunpack.c.l.b16 %v4797
  %v4978 = vunpack.c.l.b16 %v4798
  %v4979 = vunpack.c.l.b16 %v4799
  %v4980 = vunpack.c.l.b16 %v4800
  %v4981 = vunpack.c.l.b16 %v4801
  %v4982 = vunpack.c.l.b16 %v4802
  %v4983 = vunpack.c.l.b16 %v4803
  %v4984 = vunpack.c.l.b16 %v4804
  %v4985 = vunpack.c.l.b16 %v4805
  %v4986 = vunpack.c.l.b16 %v4806
  %v4987 = vunpack.c.l.b16 %v4807
  %v4988 = vunpack.c.l.b16 %v4808
  %v4989 = vunpack.c.l.b16 %v4809
  %v4990 = vunpack.c.l.b16 %v4810
  %v4991 = vunpack.c.l.b16 %v4811
  %v4992 = vunpack.c.l.b16 %v4812
  %v4993 = vunpack.c.l.b16 %v4813
  %v4994 = vunpack.c.l.b16 %v4814
  %v4995 = vunpack.c.l.b16 %v4815
  %v4996 = vunpack.c.l.b16 %v4816
  %v4997 = vunpack.c.l.b16 %v4817
  %v4998 = vunpack.c.l.b16 %v4818
  %v4999 = vunpack.c.l.b16 %v4819
  %v5000 = vunpack.c.l.b16 %v4820
  %v5001 = vunpack.c.l.b16 %v4821
  %v5002 = vunpack.c.l.b16 %v4822
  %v5003 = vunpack.c.l.b16 %v4823
  %v5004 = vunpack.c.l.b16 %v4824
  %v5005 = vunpack.c.l.b16 %v4825
  %v5006 = vunpack.c.l.b16 %v4826
  %v5007 = vunpack.c.l.b16 %v4827
  %v5008 = vunpack.c.l.b16 %v4828
  %v5009 = vunpack.c.l.b16 %v4829
  %v5010 = vunpack.c.l.b16 %v4830
  %v5011 = vunpack.c.l.b16 %v4831
  %v5012 = vunpack.c.l.b16 %v4832
  %v5013 = vunpack.c.l.b16 %v4833
  %v5014 = vunpack.c.l.b16 %v4834
  %v5015 = vunpack.c.l.b16 %v4835
  %v5016 = vpack.c.b16 %v4953, %v4952
  %v5017 = vpack.c.b16 %v4955, %v4954
  %v5018 = vpack.c.b16 %v4957, %v4956
  %v5019 = vpack.c.b16 %v4959, %v4958
  %v5020 = vpack.c.b16 %v4961, %v4960
  %v5021 = vpack.c.b16 %v4963, %v4962
  %v5022 = vpack.c.b16 %v4965, %v4964
  %v5023 = vpack.c.b16 %v4967, %v4966
  %v5024 = vpack.c.b16 %v4969, %v4968
  %v5025 = vpack.c.b16 %v4971, %v4970
  %v5026 = vpack.c.b16 %v4973, %v4972
  %v5027 = vpack.c.b16 %v4975, %v4974
  %v5028 = vpack.c.b16 %v4977, %v4976
  %v5029 = vpack.c.b16 %v4979, %v4978
  %v5030 = vpack.c.b16 %v4981, %v4980
  %v5031 = vpack.c.b16 %v4983, %v4982
  %v5032 = vpack.c.b16 %v4985, %v4984
  %v5033 = vpack.c.b16 %v4987, %v4986
  %v5034 = vpack.c.b16 %v4989, %v4988
  %v5035 = vpack.c.b16 %v4991, %v4990
  %v5036 = vpack.c.b16 %v4993, %v4992
  %v5037 = vpack.c.b16 %v4995, %v4994
  %v5038 = vpack.c.b16 %v4997, %v4996
  %v5039 = vpack.c.b16 %v4999, %v4998
  %v5040 = vpack.c.b16 %v5001, %v5000
  %v5041 = vpack.c.b16 %v5003, %v5002
  %v5042 = vpack.c.b16 %v5005, %v5004
  %v5043 = vpack.c.b16 %v5007, %v5006
  %v5044 = vpack.c.b16 %v5009, %v5008
  %v5045 = vpack.c.b16 %v5011, %v5010
  %v5046 = vpack.c.b16 %v5013, %v5012
  %v5047 = vpack.c.b16 %v5015, %v5014
  %5080 = vmatprep.subr.bf16.mxu0 0
  %5081 = vmatpush1.bf16.msra.mxu0 %v5016
  %5082 = vmatprep.subr.bf16.mxu0 0
  %5083 = vmatpush1.bf16.msra.mxu0 %v5017
  %5084 = vmatprep.subr.bf16.mxu0 0
  %5085 = vmatpush1.bf16.msra.mxu0 %v5018
  %5086 = vmatprep.subr.bf16.mxu0 0
  %5087 = vmatpush1.bf16.msra.mxu0 %v5019
  %5088 = vmatprep.subr.bf16.mxu0 0
  %5089 = vmatpush1.bf16.msra.mxu0 %v5020
  %5090 = vmatprep.subr.bf16.mxu0 0
  %5091 = vmatpush1.bf16.msra.mxu0 %v5021
  %5092 = vmatprep.subr.bf16.mxu0 0
  %5093 = vmatpush1.bf16.msra.mxu0 %v5022
  %5094 = vmatprep.subr.bf16.mxu0 0
  %5095 = vmatpush1.bf16.msra.mxu0 %v5023
  %5096 = vmatprep.subr.bf16.mxu0 0
  %5097 = vmatpush1.bf16.msra.mxu0 %v5024
  %5098 = vmatprep.subr.bf16.mxu0 0
  %5099 = vmatpush1.bf16.msra.mxu0 %v5025
  %5100 = vmatprep.subr.bf16.mxu0 0
  %5101 = vmatpush1.bf16.msra.mxu0 %v5026
  %5102 = vmatprep.subr.bf16.mxu0 0
  %5103 = vmatpush1.bf16.msra.mxu0 %v5027
  %5104 = vmatprep.subr.bf16.mxu0 0
  %5105 = vmatpush1.bf16.msra.mxu0 %v5028
  %5106 = vmatprep.subr.bf16.mxu0 0
  %5107 = vmatpush1.bf16.msra.mxu0 %v5029
  %5108 = vmatprep.subr.bf16.mxu0 0
  %5109 = vmatpush1.bf16.msra.mxu0 %v5030
  %5110 = vmatprep.subr.bf16.mxu0 0
  %5111 = vmatpush1.bf16.msra.mxu0 %v5031
  %5112 = vmatprep.mubr.bf16.mxu0 %v4859
  %5113 = vmatmul.mubr.bf16.gmra.mrb[0].mxu0 %v4847
  %v5114 = vpop.f32.mrb[0].mxu0
  %v5115 = vadd.f32 0.0, %v5114
  %v5116 = vpop.f32.mrb[0].mxu0
  %v5117 = vpop.f32.mrb[0].mxu0
  %v5118 = vadd.f32 0.0, %v5117
  %v5119 = vpop.f32.mrb[0].mxu0
  %5120 = vdwg.mxu0
  %5121 = vmatprep.subr.bf16.mxu0 0
  %5122 = vmatpush1.bf16.msra.mxu0 %v5032
  %5123 = vmatprep.subr.bf16.mxu0 0
  %5124 = vmatpush1.bf16.msra.mxu0 %v5033
  %5125 = vmatprep.subr.bf16.mxu0 0
  %5126 = vmatpush1.bf16.msra.mxu0 %v5034
  %5127 = vmatprep.subr.bf16.mxu0 0
  %5128 = vmatpush1.bf16.msra.mxu0 %v5035
  %5129 = vmatprep.subr.bf16.mxu0 0
  %5130 = vmatpush1.bf16.msra.mxu0 %v5036
  %5131 = vmatprep.subr.bf16.mxu0 0
  %5132 = vmatpush1.bf16.msra.mxu0 %v5037
  %5133 = vmatprep.subr.bf16.mxu0 0
  %5134 = vmatpush1.bf16.msra.mxu0 %v5038
  %5135 = vmatprep.subr.bf16.mxu0 0
  %5136 = vmatpush1.bf16.msra.mxu0 %v5039
  %5137 = vmatprep.subr.bf16.mxu0 0
  %5138 = vmatpush1.bf16.msra.mxu0 %v5040
  %5139 = vmatprep.subr.bf16.mxu0 0
  %5140 = vmatpush1.bf16.msra.mxu0 %v5041
  %5141 = vmatprep.subr.bf16.mxu0 0
  %5142 = vmatpush1.bf16.msra.mxu0 %v5042
  %5143 = vmatprep.subr.bf16.mxu0 0
  %5144 = vmatpush1.bf16.msra.mxu0 %v5043
  %5145 = vmatprep.subr.bf16.mxu0 0
  %5146 = vmatpush1.bf16.msra.mxu0 %v5044
  %5147 = vmatprep.subr.bf16.mxu0 0
  %5148 = vmatpush1.bf16.msra.mxu0 %v5045
  %5149 = vmatprep.subr.bf16.mxu0 0
  %5150 = vmatpush1.bf16.msra.mxu0 %v5046
  %5151 = vmatprep.subr.bf16.mxu0 0
  %5152 = vmatpush1.bf16.msra.mxu0 %v5047
  %5153 = vmatprep.mubr.bf16.mxu0 %v4883
  %5154 = vmatmul.mubr.bf16.gmra.mrb[0].mxu0 %v4871
  %v5155 = vpop.f32.mrb[0].mxu0
  %v5156 = vadd.f32 %v5115, %v5155
  %v5157 = vpop.f32.mrb[0].mxu0
  %v5158 = vpop.f32.mrb[0].mxu0
  %v5159 = vadd.f32 %v5118, %v5158
  %v5160 = vpop.f32.mrb[0].mxu0
  %5161 = vdwg.mxu0
  %v5226 = vunpack.c.l.b16 %v4707
  %v5227 = vunpack.c.l.b16 %v4708
  %v5228 = vunpack.c.l.b16 %v4709
  %v5229 = vunpack.c.l.b16 %v4710
  %v5230 = vunpack.c.l.b16 %v4711
  %v5231 = vunpack.c.l.b16 %v4712
  %v5232 = vunpack.c.l.b16 %v4713
  %v5233 = vunpack.c.l.b16 %v4714
  %v5234 = vunpack.c.l.b16 %v4715
  %v5235 = vunpack.c.l.b16 %v4716
  %v5236 = vunpack.c.l.b16 %v4717
  %v5237 = vunpack.c.l.b16 %v4718
  %v5238 = vunpack.c.l.b16 %v4719
  %v5239 = vunpack.c.l.b16 %v4720
  %v5240 = vunpack.c.l.b16 %v4721
  %v5241 = vunpack.c.l.b16 %v4722
  %v5242 = vunpack.c.l.b16 %v4723
  %v5243 = vunpack.c.l.b16 %v4724
  %v5244 = vunpack.c.l.b16 %v4725
  %v5245 = vunpack.c.l.b16 %v4726
  %v5246 = vunpack.c.l.b16 %v4727
  %v5247 = vunpack.c.l.b16 %v4728
  %v5248 = vunpack.c.l.b16 %v4729
  %v5249 = vunpack.c.l.b16 %v4730
  %v5250 = vunpack.c.l.b16 %v4731
  %v5251 = vunpack.c.l.b16 %v4732
  %v5252 = vunpack.c.l.b16 %v4733
  %v5253 = vunpack.c.l.b16 %v4734
  %v5254 = vunpack.c.l.b16 %v4735
  %v5255 = vunpack.c.l.b16 %v4736
  %v5256 = vunpack.c.l.b16 %v4737
  %v5257 = vunpack.c.l.b16 %v4738
  %v5258 = vunpack.c.l.b16 %v4739
  %v5259 = vunpack.c.l.b16 %v4740
  %v5260 = vunpack.c.l.b16 %v4741
  %v5261 = vunpack.c.l.b16 %v4742
  %v5262 = vunpack.c.l.b16 %v4743
  %v5263 = vunpack.c.l.b16 %v4744
  %v5264 = vunpack.c.l.b16 %v4745
  %v5265 = vunpack.c.l.b16 %v4746
  %v5266 = vunpack.c.l.b16 %v4747
  %v5267 = vunpack.c.l.b16 %v4748
  %v5268 = vunpack.c.l.b16 %v4749
  %v5269 = vunpack.c.l.b16 %v4750
  %v5270 = vunpack.c.l.b16 %v4751
  %v5271 = vunpack.c.l.b16 %v4752
  %v5272 = vunpack.c.l.b16 %v4753
  %v5273 = vunpack.c.l.b16 %v4754
  %v5274 = vunpack.c.l.b16 %v4755
  %v5275 = vunpack.c.l.b16 %v4756
  %v5276 = vunpack.c.l.b16 %v4757
  %v5277 = vunpack.c.l.b16 %v4758
  %v5278 = vunpack.c.l.b16 %v4759
  %v5279 = vunpack.c.l.b16 %v4760
  %v5280 = vunpack.c.l.b16 %v4761
  %v5281 = vunpack.c.l.b16 %v4762
  %v5282 = vunpack.c.l.b16 %v4763
  %v5283 = vunpack.c.l.b16 %v4764
  %v5284 = vunpack.c.l.b16 %v4765
  %v5285 = vunpack.c.l.b16 %v4766
  %v5286 = vunpack.c.l.b16 %v4767
  %v5287 = vunpack.c.l.b16 %v4768
  %v5288 = vunpack.c.l.b16 %v4769
  %v5289 = vunpack.c.l.b16 %v4770
  %v5290 = vpack.c.b16 %v5227, %v5226
  %v5291 = vpack.c.b16 %v5229, %v5228
  %v5292 = vpack.c.b16 %v5231, %v5230
  %v5293 = vpack.c.b16 %v5233, %v5232
  %v5294 = vpack.c.b16 %v5235, %v5234
  %v5295 = vpack.c.b16 %v5237, %v5236
  %v5296 = vpack.c.b16 %v5239, %v5238
  %v5297 = vpack.c.b16 %v5241, %v5240
  %v5298 = vpack.c.b16 %v5243, %v5242
  %v5299 = vpack.c.b16 %v5245, %v5244
  %v5300 = vpack.c.b16 %v5247, %v5246
  %v5301 = vpack.c.b16 %v5249, %v5248
  %v5302 = vpack.c.b16 %v5251, %v5250
  %v5303 = vpack.c.b16 %v5253, %v5252
  %v5304 = vpack.c.b16 %v5255, %v5254
  %v5305 = vpack.c.b16 %v5257, %v5256
  %v5306 = vpack.c.b16 %v5259, %v5258
  %v5307 = vpack.c.b16 %v5261, %v5260
  %v5308 = vpack.c.b16 %v5263, %v5262
  %v5309 = vpack.c.b16 %v5265, %v5264
  %v5310 = vpack.c.b16 %v5267, %v5266
  %v5311 = vpack.c.b16 %v5269, %v5268
  %v5312 = vpack.c.b16 %v5271, %v5270
  %v5313 = vpack.c.b16 %v5273, %v5272
  %v5314 = vpack.c.b16 %v5275, %v5274
  %v5315 = vpack.c.b16 %v5277, %v5276
  %v5316 = vpack.c.b16 %v5279, %v5278
  %v5317 = vpack.c.b16 %v5281, %v5280
  %v5318 = vpack.c.b16 %v5283, %v5282
  %v5319 = vpack.c.b16 %v5285, %v5284
  %v5320 = vpack.c.b16 %v5287, %v5286
  %v5321 = vpack.c.b16 %v5289, %v5288
  %5354 = vmatprep.subr.bf16.mxu0 0
  %5355 = vmatpush1.bf16.msra.mxu0 %v5290
  %5356 = vmatprep.subr.bf16.mxu0 0
  %5357 = vmatpush1.bf16.msra.mxu0 %v5291
  %5358 = vmatprep.subr.bf16.mxu0 0
  %5359 = vmatpush1.bf16.msra.mxu0 %v5292
  %5360 = vmatprep.subr.bf16.mxu0 0
  %5361 = vmatpush1.bf16.msra.mxu0 %v5293
  %5362 = vmatprep.subr.bf16.mxu0 0
  %5363 = vmatpush1.bf16.msra.mxu0 %v5294
  %5364 = vmatprep.subr.bf16.mxu0 0
  %5365 = vmatpush1.bf16.msra.mxu0 %v5295
  %5366 = vmatprep.subr.bf16.mxu0 0
  %5367 = vmatpush1.bf16.msra.mxu0 %v5296
  %5368 = vmatprep.subr.bf16.mxu0 0
  %5369 = vmatpush1.bf16.msra.mxu0 %v5297
  %5370 = vmatprep.subr.bf16.mxu0 0
  %5371 = vmatpush1.bf16.msra.mxu0 %v5298
  %5372 = vmatprep.subr.bf16.mxu0 0
  %5373 = vmatpush1.bf16.msra.mxu0 %v5299
  %5374 = vmatprep.subr.bf16.mxu0 0
  %5375 = vmatpush1.bf16.msra.mxu0 %v5300
  %5376 = vmatprep.subr.bf16.mxu0 0
  %5377 = vmatpush1.bf16.msra.mxu0 %v5301
  %5378 = vmatprep.subr.bf16.mxu0 0
  %5379 = vmatpush1.bf16.msra.mxu0 %v5302
  %5380 = vmatprep.subr.bf16.mxu0 0
  %5381 = vmatpush1.bf16.msra.mxu0 %v5303
  %5382 = vmatprep.subr.bf16.mxu0 0
  %5383 = vmatpush1.bf16.msra.mxu0 %v5304
  %5384 = vmatprep.subr.bf16.mxu0 0
  %5385 = vmatpush1.bf16.msra.mxu0 %v5305
  %5386 = vmatprep.mubr.bf16.mxu0 %v4672
  %5387 = vmatmul.mubr.bf16.gmra.mrb[0].mxu0 %v4671
  %v5388 = vpop.f32.mrb[0].mxu0
  %v5389 = vadd.f32 %v5156, %v5388
  %v5390 = vpop.f32.mrb[0].mxu0
  %v5391 = vpop.f32.mrb[0].mxu0
  %v5392 = vadd.f32 %v5159, %v5391
  %v5393 = vpop.f32.mrb[0].mxu0
  %5394 = vdwg.mxu0
  %5395 = vmatprep.subr.bf16.mxu0 0
  %5396 = vmatpush1.bf16.msra.mxu0 %v5306
  %5397 = vmatprep.subr.bf16.mxu0 0
  %5398 = vmatpush1.bf16.msra.mxu0 %v5307
  %5399 = vmatprep.subr.bf16.mxu0 0
  %5400 = vmatpush1.bf16.msra.mxu0 %v5308
  %5401 = vmatprep.subr.bf16.mxu0 0
  %5402 = vmatpush1.bf16.msra.mxu0 %v5309
  %5403 = vmatprep.subr.bf16.mxu0 0
  %5404 = vmatpush1.bf16.msra.mxu0 %v5310
  %5405 = vmatprep.subr.bf16.mxu0 0
  %5406 = vmatpush1.bf16.msra.mxu0 %v5311
  %5407 = vmatprep.subr.bf16.mxu0 0
  %5408 = vmatpush1.bf16.msra.mxu0 %v5312
  %5409 = vmatprep.subr.bf16.mxu0 0
  %5410 = vmatpush1.bf16.msra.mxu0 %v5313
  %5411 = vmatprep.subr.bf16.mxu0 0
  %5412 = vmatpush1.bf16.msra.mxu0 %v5314
  %5413 = vmatprep.subr.bf16.mxu0 0
  %5414 = vmatpush1.bf16.msra.mxu0 %v5315
  %5415 = vmatprep.subr.bf16.mxu0 0
  %5416 = vmatpush1.bf16.msra.mxu0 %v5316
  %5417 = vmatprep.subr.bf16.mxu0 0
  %5418 = vmatpush1.bf16.msra.mxu0 %v5317
  %5419 = vmatprep.subr.bf16.mxu0 0
  %5420 = vmatpush1.bf16.msra.mxu0 %v5318
  %5421 = vmatprep.subr.bf16.mxu0 0
  %5422 = vmatpush1.bf16.msra.mxu0 %v5319
  %5423 = vmatprep.subr.bf16.mxu0 0
  %5424 = vmatpush1.bf16.msra.mxu0 %v5320
  %5425 = vmatprep.subr.bf16.mxu0 0
  %5426 = vmatpush1.bf16.msra.mxu0 %v5321
  %5427 = vmatprep.mubr.bf16.mxu0 %v4674
  %5428 = vmatmul.mubr.bf16.gmra.mrb[0].mxu0 %v4673
  %v5429 = vpop.f32.mrb[0].mxu0
  %v5430 = vadd.f32 %v5389, %v5429
  %v5431 = vpop.f32.mrb[0].mxu0
  %v5432 = vpop.f32.mrb[0].mxu0
  %v5433 = vadd.f32 %v5392, %v5432
  %v5434 = vpop.f32.mrb[0].mxu0
  %5435 = vdwg.mxu0
  %s5436 = scalar_lea.vmem %s8, 512
  %v5437 = vld [vmem:[%s5436] sm:$0xf]
  %v5438 = vld [vmem:[%s5436 + $0x4] sm:$0xf]
  %v5439 = vld [vmem:[%s5436 + $0x8] sm:$0xf]
  %v5440 = vld [vmem:[%s5436 + $0xc] sm:$0xf]
  %v5441 = vld [vmem:[%s5436 + $0x10] sm:$0xf]
  %v5442 = vld [vmem:[%s5436 + $0x14] sm:$0xf]
  %v5443 = vld [vmem:[%s5436 + $0x18] sm:$0xf]
  %v5444 = vld [vmem:[%s5436 + $0x1c] sm:$0xf]
  %v5445 = vld [vmem:[%s5436 + $0x20] sm:$0xf]
  %v5446 = vld [vmem:[%s5436 + $0x24] sm:$0xf]
  %v5447 = vld [vmem:[%s5436 + $0x28] sm:$0xf]
  %v5448 = vld [vmem:[%s5436 + $0x2c] sm:$0xf]
  %v5449 = vld [vmem:[%s5436 + $0x30] sm:$0xf]
  %v5450 = vld [vmem:[%s5436 + $0x34] sm:$0xf]
  %v5451 = vld [vmem:[%s5436 + $0x38] sm:$0xf]
  %v5452 = vld [vmem:[%s5436 + $0x3c] sm:$0xf]
  %v5453 = vld [vmem:[%s5436 + $0x40] sm:$0xf]
  %v5454 = vld [vmem:[%s5436 + $0x44] sm:$0xf]
  %v5455 = vld [vmem:[%s5436 + $0x48] sm:$0xf]
  %v5456 = vld [vmem:[%s5436 + $0x4c] sm:$0xf]
  %v5457 = vld [vmem:[%s5436 + $0x50] sm:$0xf]
  %v5458 = vld [vmem:[%s5436 + $0x54] sm:$0xf]
  %v5459 = vld [vmem:[%s5436 + $0x58] sm:$0xf]
  %v5460 = vld [vmem:[%s5436 + $0x5c] sm:$0xf]
  %v5461 = vld [vmem:[%s5436 + $0x60] sm:$0xf]
  %v5462 = vld [vmem:[%s5436 + $0x64] sm:$0xf]
  %v5463 = vld [vmem:[%s5436 + $0x68] sm:$0xf]
  %v5464 = vld [vmem:[%s5436 + $0x6c] sm:$0xf]
  %v5465 = vld [vmem:[%s5436 + $0x70] sm:$0xf]
  %v5466 = vld [vmem:[%s5436 + $0x74] sm:$0xf]
  %v5467 = vld [vmem:[%s5436 + $0x78] sm:$0xf]
  %v5468 = vld [vmem:[%s5436 + $0x7c] sm:$0xf]
  %v5469 = vld [vmem:[%s5436 + $0x80] sm:$0xf]
  %v5470 = vld [vmem:[%s5436 + $0x84] sm:$0xf]
  %v5471 = vld [vmem:[%s5436 + $0x88] sm:$0xf]
  %v5472 = vld [vmem:[%s5436 + $0x8c] sm:$0xf]
  %v5473 = vld [vmem:[%s5436 + $0x90] sm:$0xf]
  %v5474 = vld [vmem:[%s5436 + $0x94] sm:$0xf]
  %v5475 = vld [vmem:[%s5436 + $0x98] sm:$0xf]
  %v5476 = vld [vmem:[%s5436 + $0x9c] sm:$0xf]
  %v5477 = vld [vmem:[%s5436 + $0xa0] sm:$0xf]
  %v5478 = vld [vmem:[%s5436 + $0xa4] sm:$0xf]
  %v5479 = vld [vmem:[%s5436 + $0xa8] sm:$0xf]
  %v5480 = vld [vmem:[%s5436 + $0xac] sm:$0xf]
  %v5481 = vld [vmem:[%s5436 + $0xb0] sm:$0xf]
  %v5482 = vld [vmem:[%s5436 + $0xb4] sm:$0xf]
  %v5483 = vld [vmem:[%s5436 + $0xb8] sm:$0xf]
  %v5484 = vld [vmem:[%s5436 + $0xbc] sm:$0xf]
  %v5485 = vld [vmem:[%s5436 + $0xc0] sm:$0xf]
  %v5486 = vld [vmem:[%s5436 + $0xc4] sm:$0xf]
  %v5487 = vld [vmem:[%s5436 + $0xc8] sm:$0xf]
  %v5488 = vld [vmem:[%s5436 + $0xcc] sm:$0xf]
  %v5489 = vld [vmem:[%s5436 + $0xd0] sm:$0xf]
  %v5490 = vld [vmem:[%s5436 + $0xd4] sm:$0xf]
  %v5491 = vld [vmem:[%s5436 + $0xd8] sm:$0xf]
  %v5492 = vld [vmem:[%s5436 + $0xdc] sm:$0xf]
  %v5493 = vld [vmem:[%s5436 + $0xe0] sm:$0xf]
  %v5494 = vld [vmem:[%s5436 + $0xe4] sm:$0xf]
  %v5495 = vld [vmem:[%s5436 + $0xe8] sm:$0xf]
  %v5496 = vld [vmem:[%s5436 + $0xec] sm:$0xf]
  %v5497 = vld [vmem:[%s5436 + $0xf0] sm:$0xf]
  %v5498 = vld [vmem:[%s5436 + $0xf4] sm:$0xf]
  %v5499 = vld [vmem:[%s5436 + $0xf8] sm:$0xf]
  %v5500 = vld [vmem:[%s5436 + $0xfc] sm:$0xf]
  %vm5509 = vcmask 1046528
  %v5510 = vrot.slane %v4699, 1
  %v5511 = vrot.slane %v4703, 1
  %v5512 = vsel %vm5509, %v5510, %v5511
  %v5513 = vrot.slane %v4700, 1
  %v5514 = vrot.slane %v4704, 1
  %v5515 = vsel %vm5509, %v5513, %v5514
  %v5516 = vrot.slane %v4701, 1
  %v5517 = vrot.slane %v4705, 1
  %v5518 = vsel %vm5509, %v5516, %v5517
  %v5519 = vrot.slane %v4702, 1
  %v5520 = vrot.slane %v4706, 1
  %v5521 = vsel %vm5509, %v5519, %v5520
  %v5590 = vunpack.c.l.b16 %v5437
  %v5591 = vunpack.c.l.b16 %v5438
  %v5592 = vunpack.c.l.b16 %v5439
  %v5593 = vunpack.c.l.b16 %v5440
  %v5594 = vunpack.c.l.b16 %v5441
  %v5595 = vunpack.c.l.b16 %v5442
  %v5596 = vunpack.c.l.b16 %v5443
  %v5597 = vunpack.c.l.b16 %v5444
  %v5598 = vunpack.c.l.b16 %v5445
  %v5599 = vunpack.c.l.b16 %v5446
  %v5600 = vunpack.c.l.b16 %v5447
  %v5601 = vunpack.c.l.b16 %v5448
  %v5602 = vunpack.c.l.b16 %v5449
  %v5603 = vunpack.c.l.b16 %v5450
  %v5604 = vunpack.c.l.b16 %v5451
  %v5605 = vunpack.c.l.b16 %v5452
  %v5606 = vunpack.c.l.b16 %v5453
  %v5607 = vunpack.c.l.b16 %v5454
  %v5608 = vunpack.c.l.b16 %v5455
  %v5609 = vunpack.c.l.b16 %v5456
  %v5610 = vunpack.c.l.b16 %v5457
  %v5611 = vunpack.c.l.b16 %v5458
  %v5612 = vunpack.c.l.b16 %v5459
  %v5613 = vunpack.c.l.b16 %v5460
  %v5614 = vunpack.c.l.b16 %v5461
  %v5615 = vunpack.c.l.b16 %v5462
  %v5616 = vunpack.c.l.b16 %v5463
  %v5617 = vunpack.c.l.b16 %v5464
  %v5618 = vunpack.c.l.b16 %v5465
  %v5619 = vunpack.c.l.b16 %v5466
  %v5620 = vunpack.c.l.b16 %v5467
  %v5621 = vunpack.c.l.b16 %v5468
  %v5622 = vunpack.c.l.b16 %v5469
  %v5623 = vunpack.c.l.b16 %v5470
  %v5624 = vunpack.c.l.b16 %v5471
  %v5625 = vunpack.c.l.b16 %v5472
  %v5626 = vunpack.c.l.b16 %v5473
  %v5627 = vunpack.c.l.b16 %v5474
  %v5628 = vunpack.c.l.b16 %v5475
  %v5629 = vunpack.c.l.b16 %v5476
  %v5630 = vunpack.c.l.b16 %v5477
  %v5631 = vunpack.c.l.b16 %v5478
  %v5632 = vunpack.c.l.b16 %v5479
  %v5633 = vunpack.c.l.b16 %v5480
  %v5634 = vunpack.c.l.b16 %v5481
  %v5635 = vunpack.c.l.b16 %v5482
  %v5636 = vunpack.c.l.b16 %v5483
  %v5637 = vunpack.c.l.b16 %v5484
  %v5638 = vunpack.c.l.b16 %v5485
  %v5639 = vunpack.c.l.b16 %v5486
  %v5640 = vunpack.c.l.b16 %v5487
  %v5641 = vunpack.c.l.b16 %v5488
  %v5642 = vunpack.c.l.b16 %v5489
  %v5643 = vunpack.c.l.b16 %v5490
  %v5644 = vunpack.c.l.b16 %v5491
  %v5645 = vunpack.c.l.b16 %v5492
  %v5646 = vunpack.c.l.b16 %v5493
  %v5647 = vunpack.c.l.b16 %v5494
  %v5648 = vunpack.c.l.b16 %v5495
  %v5649 = vunpack.c.l.b16 %v5496
  %v5650 = vunpack.c.l.b16 %v5497
  %v5651 = vunpack.c.l.b16 %v5498
  %v5652 = vunpack.c.l.b16 %v5499
  %v5653 = vunpack.c.l.b16 %v5500
  %v5654 = vpack.c.b16 %v5591, %v5590
  %v5655 = vpack.c.b16 %v5593, %v5592
  %v5656 = vpack.c.b16 %v5595, %v5594
  %v5657 = vpack.c.b16 %v5597, %v5596
  %v5658 = vpack.c.b16 %v5599, %v5598
  %v5659 = vpack.c.b16 %v5601, %v5600
  %v5660 = vpack.c.b16 %v5603, %v5602
  %v5661 = vpack.c.b16 %v5605, %v5604
  %v5662 = vpack.c.b16 %v5607, %v5606
  %v5663 = vpack.c.b16 %v5609, %v5608
  %v5664 = vpack.c.b16 %v5611, %v5610
  %v5665 = vpack.c.b16 %v5613, %v5612
  %v5666 = vpack.c.b16 %v5615, %v5614
  %v5667 = vpack.c.b16 %v5617, %v5616
  %v5668 = vpack.c.b16 %v5619, %v5618
  %v5669 = vpack.c.b16 %v5621, %v5620
  %v5670 = vpack.c.b16 %v5623, %v5622
  %v5671 = vpack.c.b16 %v5625, %v5624
  %v5672 = vpack.c.b16 %v5627, %v5626
  %v5673 = vpack.c.b16 %v5629, %v5628
  %v5674 = vpack.c.b16 %v5631, %v5630
  %v5675 = vpack.c.b16 %v5633, %v5632
  %v5676 = vpack.c.b16 %v5635, %v5634
  %v5677 = vpack.c.b16 %v5637, %v5636
  %v5678 = vpack.c.b16 %v5639, %v5638
  %v5679 = vpack.c.b16 %v5641, %v5640
  %v5680 = vpack.c.b16 %v5643, %v5642
  %v5681 = vpack.c.b16 %v5645, %v5644
  %v5682 = vpack.c.b16 %v5647, %v5646
  %v5683 = vpack.c.b16 %v5649, %v5648
  %v5684 = vpack.c.b16 %v5651, %v5650
  %v5685 = vpack.c.b16 %v5653, %v5652
  %5718 = vmatprep.subr.bf16.mxu0 0
  %5719 = vmatpush1.bf16.msra.mxu0 %v5654
  %5720 = vmatprep.subr.bf16.mxu0 0
  %5721 = vmatpush1.bf16.msra.mxu0 %v5655
  %5722 = vmatprep.subr.bf16.mxu0 0
  %5723 = vmatpush1.bf16.msra.mxu0 %v5656
  %5724 = vmatprep.subr.bf16.mxu0 0
  %5725 = vmatpush1.bf16.msra.mxu0 %v5657
  %5726 = vmatprep.subr.bf16.mxu0 0
  %5727 = vmatpush1.bf16.msra.mxu0 %v5658
  %5728 = vmatprep.subr.bf16.mxu0 0
  %5729 = vmatpush1.bf16.msra.mxu0 %v5659
  %5730 = vmatprep.subr.bf16.mxu0 0
  %5731 = vmatpush1.bf16.msra.mxu0 %v5660
  %5732 = vmatprep.subr.bf16.mxu0 0
  %5733 = vmatpush1.bf16.msra.mxu0 %v5661
  %5734 = vmatprep.subr.bf16.mxu0 0
  %5735 = vmatpush1.bf16.msra.mxu0 %v5662
  %5736 = vmatprep.subr.bf16.mxu0 0
  %5737 = vmatpush1.bf16.msra.mxu0 %v5663
  %5738 = vmatprep.subr.bf16.mxu0 0
  %5739 = vmatpush1.bf16.msra.mxu0 %v5664
  %5740 = vmatprep.subr.bf16.mxu0 0
  %5741 = vmatpush1.bf16.msra.mxu0 %v5665
  %5742 = vmatprep.subr.bf16.mxu0 0
  %5743 = vmatpush1.bf16.msra.mxu0 %v5666
  %5744 = vmatprep.subr.bf16.mxu0 0
  %5745 = vmatpush1.bf16.msra.mxu0 %v5667
  %5746 = vmatprep.subr.bf16.mxu0 0
  %5747 = vmatpush1.bf16.msra.mxu0 %v5668
  %5748 = vmatprep.subr.bf16.mxu0 0
  %5749 = vmatpush1.bf16.msra.mxu0 %v5669
  %5750 = vmatprep.mubr.bf16.mxu0 %v5515
  %5751 = vmatmul.mubr.bf16.gmra.mrb[0].mxu0 %v5512
  %v5752 = vpop.f32.mrb[0].mxu0
  %v5753 = vadd.f32 0.0, %v5752
  %v5754 = vpop.f32.mrb[0].mxu0
  %v5755 = vpop.f32.mrb[0].mxu0
  %v5756 = vadd.f32 0.0, %v5755
  %v5757 = vpop.f32.mrb[0].mxu0
  %5758 = vdwg.mxu0
  %5759 = vmatprep.subr.bf16.mxu0 0
  %5760 = vmatpush1.bf16.msra.mxu0 %v5670
  %5761 = vmatprep.subr.bf16.mxu0 0
  %5762 = vmatpush1.bf16.msra.mxu0 %v5671
  %5763 = vmatprep.subr.bf16.mxu0 0
  %5764 = vmatpush1.bf16.msra.mxu0 %v5672
  %5765 = vmatprep.subr.bf16.mxu0 0
  %5766 = vmatpush1.bf16.msra.mxu0 %v5673
  %5767 = vmatprep.subr.bf16.mxu0 0
  %5768 = vmatpush1.bf16.msra.mxu0 %v5674
  %5769 = vmatprep.subr.bf16.mxu0 0
  %5770 = vmatpush1.bf16.msra.mxu0 %v5675
  %5771 = vmatprep.subr.bf16.mxu0 0
  %5772 = vmatpush1.bf16.msra.mxu0 %v5676
  %5773 = vmatprep.subr.bf16.mxu0 0
  %5774 = vmatpush1.bf16.msra.mxu0 %v5677
  %5775 = vmatprep.subr.bf16.mxu0 0
  %5776 = vmatpush1.bf16.msra.mxu0 %v5678
  %5777 = vmatprep.subr.bf16.mxu0 0
  %5778 = vmatpush1.bf16.msra.mxu0 %v5679
  %5779 = vmatprep.subr.bf16.mxu0 0
  %5780 = vmatpush1.bf16.msra.mxu0 %v5680
  %5781 = vmatprep.subr.bf16.mxu0 0
  %5782 = vmatpush1.bf16.msra.mxu0 %v5681
  %5783 = vmatprep.subr.bf16.mxu0 0
  %5784 = vmatpush1.bf16.msra.mxu0 %v5682
  %5785 = vmatprep.subr.bf16.mxu0 0
  %5786 = vmatpush1.bf16.msra.mxu0 %v5683
  %5787 = vmatprep.subr.bf16.mxu0 0
  %5788 = vmatpush1.bf16.msra.mxu0 %v5684
  %5789 = vmatprep.subr.bf16.mxu0 0
  %5790 = vmatpush1.bf16.msra.mxu0 %v5685
  %5791 = vmatprep.mubr.bf16.mxu0 %v5521
  %5792 = vmatmul.mubr.bf16.gmra.mrb[0].mxu0 %v5518
  %v5793 = vpop.f32.mrb[0].mxu0
  %v5794 = vadd.f32 %v5753, %v5793
  %v5795 = vpop.f32.mrb[0].mxu0
  %v5796 = vpop.f32.mrb[0].mxu0
  %v5797 = vadd.f32 %v5756, %v5796
  %v5798 = vpop.f32.mrb[0].mxu0
  %5799 = vdwg.mxu0
  %v5800 = vadd.f32 %v5430, %v5794
  %v5801 = vadd.f32 %v5433, %v5797
  %v5802 = vld [vmem:[%s9] sm:$0x1]
  %v5804 = vlaneseq
  %v5805 = vshrl.u32 %v5804, 7
  %v5806 = vsub.s32 0, %v5805
  %v5807 = vrot.slane %v5802, %v5806
  %v5809 = vadd.f32 %v5800, %v5807
  %v5810 = vadd.f32 %v5801, %v5807
  %v5811 = vld [vmem:[%s10] sm:$0xff]
  %v5812 = vld [vmem:[%s10 + $0x8] sm:$0xff]
  %v5813 = vmul.f32 %v5809, 0.1
  %v5814 = vmul.f32 %v5810, 0.1
  %5817 = vrot.lane.b32.xlu0 %v5811, 96
  %v5818 = vpop.permute.xlu0 %5817
  %5819 = vrot.lane.b32.xlu0 %v5812, 96
  %v5820 = vpop.permute.xlu0 %5819
  %v5823 = vmul.f32 %v5813, %v5818
  %v5824 = vmul.f32 %v5814, %v5820
  %v5825 = vadd.f32 %v5823, %v5811
  %v5826 = vadd.f32 %v5824, %v5812
  %v5827 = vmul.f32 %v5809, 0.2
  %v5828 = vmul.f32 %v5810, 0.2
  %v5829 = vmin.f32 %v5827, 6.9077554
  %v5830 = vmin.f32 %v5828, 6.9077554
  %v5831 = vmul.f32 %v5829, 1.442695
  %v5832 = vpow.pop %v5831
  %v5833 = vmul.f32 %v5830, 1.442695
  %v5834 = vpow.pop %v5833
  %v5835 = vmul.f32 %v5832, %v5811
  %v5836 = vmul.f32 %v5834, %v5812
  %v5837 = vmul.f32 %v5835, 0.5
  %v5838 = vmul.f32 %v5836, 0.5
  %5841 = vrot.lane.b32.xlu0 %v5837, 96
  %v5842 = vpop.permute.xlu0 %5841
  %5843 = vrot.lane.b32.xlu0 %v5838, 96
  %v5844 = vpop.permute.xlu0 %5843
  %v5847 = vsub.f32 %v5825, %v5842
  %v5848 = vsub.f32 %v5826, %v5844
  %v5849 = vadd.f32 %v5825, %v5842
  %v5850 = vadd.f32 %v5826, %v5844
  %5853 = vrot.lane.b32.xlu0 %v5809, 112
  %v5854 = vpop.permute.xlu0 %5853
  %5855 = vrot.lane.b32.xlu0 %v5810, 112
  %v5856 = vpop.permute.xlu0 %5855
  %v5859 = vmax.f32 %v5809, %v5854
  %v5860 = vmax.f32 %v5810, %v5856
  %5863 = vrot.lane.b32.xlu0 %v5859, 96
  %v5864 = vpop.permute.xlu0 %5863
  %5865 = vrot.lane.b32.xlu0 %v5860, 96
  %v5866 = vpop.permute.xlu0 %5865
  %v5869 = vmax.f32 %v5859, %v5864
  %v5870 = vmax.f32 %v5860, %v5866
  %v5871 = vsub.f32 %v5809, %v5869
  %v5872 = vsub.f32 %v5810, %v5870
  %v5873 = vmul.f32 %v5871, 1.442695
  %v5874 = vpow.pop %v5873
  %v5875 = vmul.f32 %v5872, 1.442695
  %v5876 = vpow.pop %v5875
  %5879 = vrot.lane.b32.xlu0 %v5869, 16
  %v5880 = vpop.permute.xlu0 %5879
  %5881 = vrot.lane.b32.xlu0 %v5870, 16
  %v5882 = vpop.permute.xlu0 %5881
  %v5885 = vsub.f32 %v5809, %v5880
  %v5886 = vsub.f32 %v5810, %v5882
  %v5887 = vmul.f32 %v5885, 1.442695
  %v5888 = vpow.pop %v5887
  %v5889 = vmul.f32 %v5886, 1.442695
  %v5890 = vpow.pop %v5889
  %5891 = vrot.lane.b32.xlu0 %v5869, 32
  %v5892 = vpop.permute.xlu0 %5891
  %5893 = vrot.lane.b32.xlu0 %v5870, 32
  %v5894 = vpop.permute.xlu0 %5893
  %v5897 = vsub.f32 %v5809, %v5892
  %v5898 = vsub.f32 %v5810, %v5894
  %v5899 = vmul.f32 %v5897, 1.442695
  %v5900 = vpow.pop %v5899
  %v5901 = vmul.f32 %v5898, 1.442695
  %v5902 = vpow.pop %v5901
  %5903 = vrot.lane.b32.xlu0 %v5869, 48
  %v5904 = vpop.permute.xlu0 %5903
  %5905 = vrot.lane.b32.xlu0 %v5870, 48
  %v5906 = vpop.permute.xlu0 %5905
  %v5909 = vsub.f32 %v5809, %v5904
  %v5910 = vsub.f32 %v5810, %v5906
  %v5911 = vmul.f32 %v5909, 1.442695
  %v5912 = vpow.pop %v5911
  %v5913 = vmul.f32 %v5910, 1.442695
  %v5914 = vpow.pop %v5913
  %5917 = vrot.lane.b32.xlu0 %v5888, 112
  %v5918 = vpop.permute.xlu0 %5917
  %5919 = vrot.lane.b32.xlu0 %v5890, 112
  %v5920 = vpop.permute.xlu0 %5919
  %v5923 = vadd.f32 %v5874, %v5918
  %v5924 = vadd.f32 %v5876, %v5920
  %5927 = vrot.lane.b32.xlu0 %v5900, 96
  %v5928 = vpop.permute.xlu0 %5927
  %5929 = vrot.lane.b32.xlu0 %v5902, 96
  %v5930 = vpop.permute.xlu0 %5929
  %v5933 = vadd.f32 %v5923, %v5928
  %v5934 = vadd.f32 %v5924, %v5930
  %5937 = vrot.lane.b32.xlu0 %v5912, 80
  %v5938 = vpop.permute.xlu0 %5937
  %5939 = vrot.lane.b32.xlu0 %v5914, 80
  %v5940 = vpop.permute.xlu0 %5939
  %v5943 = vadd.f32 %v5933, %v5938
  %v5944 = vadd.f32 %v5934, %v5940
  %v5945 = vrcp.pop %v5943
  %v5946 = vmul.f32 1.0, %v5945
  %v5947 = vrcp.pop %v5944
  %v5948 = vmul.f32 1.0, %v5947
  %v5949 = vmul.f32 %v5874, %v5946
  %v5950 = vmul.f32 %v5876, %v5948
  %5953 = vrot.lane.b32.xlu0 %v5946, 16
  %v5954 = vpop.permute.xlu0 %5953
  %5955 = vrot.lane.b32.xlu0 %v5948, 16
  %v5956 = vpop.permute.xlu0 %5955
  %v5959 = vmul.f32 %v5888, %v5954
  %v5960 = vmul.f32 %v5890, %v5956
  %5961 = vrot.lane.b32.xlu0 %v5946, 32
  %v5962 = vpop.permute.xlu0 %5961
  %5963 = vrot.lane.b32.xlu0 %v5948, 32
  %v5964 = vpop.permute.xlu0 %5963
  %v5967 = vmul.f32 %v5900, %v5962
  %v5968 = vmul.f32 %v5902, %v5964
  %5969 = vrot.lane.b32.xlu0 %v5946, 48
  %v5970 = vpop.permute.xlu0 %5969
  %5971 = vrot.lane.b32.xlu0 %v5948, 48
  %v5972 = vpop.permute.xlu0 %5971
  %v5975 = vmul.f32 %v5912, %v5970
  %v5976 = vmul.f32 %v5914, %v5972
  %v5977 = vld [vmem:[%s11] sm:$0xff]
  %v5978 = vld [vmem:[%s11 + $0x8] sm:$0xff]
  %v5979 = vld [vmem:[%s11 + $0x10] sm:$0xff]
  %v5980 = vld [vmem:[%s11 + $0x18] sm:$0xff]
  %v5981 = vld [vmem:[%s11 + $0x20] sm:$0xff]
  %v5982 = vld [vmem:[%s11 + $0x28] sm:$0xff]
  %v5983 = vld [vmem:[%s11 + $0x30] sm:$0xff]
  %v5984 = vld [vmem:[%s11 + $0x38] sm:$0xff]
  %5987 = vrot.lane.b32.xlu0 %v5847, 112
  %v5988 = vpop.permute.xlu0 %5987
  %5989 = vrot.lane.b32.xlu0 %v5848, 112
  %v5990 = vpop.permute.xlu0 %5989
  %vm5991 = vcmask 130048
  %v5992 = vsel %vm5991, %v5988, 0
  %v5994 = vsel %vm5991, %v5990, 0
  %5996 = vmatprep.subr.mxu0 0.0
  %5997 = vmatpush1.msra.mxu0 %v5979
  %5998 = vmatprep.subr.mxu0 0.0
  %5999 = vmatpush1.msra.mxu0 %v5980
  %6000 = vmatprep.subr.mxu0 0.0
  %6001 = vmatpush1.msra.mxu0 0.0
  %6002 = vmatprep.subr.mxu0 0.0
  %6003 = vmatpush1.msra.mxu0 0.0
  %6004 = vmatprep.subr.mxu0 0.0
  %6005 = vmatpush1.msra.mxu0 0.0
  %6006 = vmatprep.subr.mxu0 0.0
  %6007 = vmatpush1.msra.mxu0 0.0
  %6008 = vmatprep.subr.mxu0 0.0
  %6009 = vmatpush1.msra.mxu0 0.0
  %6010 = vmatprep.subr.mxu0 0.0
  %6011 = vmatpush1.msra.mxu0 0.0
  %6012 = vmatprep.subr.mxu0 0.0
  %6013 = vmatpush1.msra.mxu0 0.0
  %6014 = vmatprep.subr.mxu0 0.0
  %6015 = vmatpush1.msra.mxu0 0.0
  %6016 = vmatprep.subr.mxu0 0.0
  %6017 = vmatpush1.msra.mxu0 0.0
  %6018 = vmatprep.subr.mxu0 0.0
  %6019 = vmatpush1.msra.mxu0 0.0
  %6020 = vmatprep.subr.mxu0 0.0
  %6021 = vmatpush1.msra.mxu0 0.0
  %6022 = vmatprep.subr.mxu0 0.0
  %6023 = vmatpush1.msra.mxu0 0.0
  %6024 = vmatprep.subr.mxu0 0.0
  %6025 = vmatpush1.msra.mxu0 0.0
  %6026 = vmatprep.subr.mxu0 0.0
  %6027 = vmatpush1.msra.mxu0 0.0
  %6028 = vmatprep.subr.mxu0 0.0
  %6029 = vmatpush1.msra.mxu0 0.0
  %6030 = vmatprep.subr.mxu0 0.0
  %6031 = vmatpush1.msra.mxu0 0.0
  %6032 = vmatprep.subr.mxu0 0.0
  %6033 = vmatpush1.msra.mxu0 0.0
  %6034 = vmatprep.subr.mxu0 0.0
  %6035 = vmatpush1.msra.mxu0 0.0
  %6036 = vmatprep.subr.mxu0 0.0
  %6037 = vmatpush1.msra.mxu0 0.0
  %6038 = vmatprep.subr.mxu0 0.0
  %6039 = vmatpush1.msra.mxu0 0.0
  %6040 = vmatprep.subr.mxu0 0.0
  %6041 = vmatpush1.msra.mxu0 0.0
  %6042 = vmatprep.subr.mxu0 0.0
  %6043 = vmatpush1.msra.mxu0 0.0
  %6044 = vmatprep.subr.mxu0 0.0
  %6045 = vmatpush1.msra.mxu0 0.0
  %6046 = vmatprep.subr.mxu0 0.0
  %6047 = vmatpush1.msra.mxu0 0.0
  %6048 = vmatprep.subr.mxu0 0.0
  %6049 = vmatpush1.msra.mxu0 0.0
  %6050 = vmatprep.subr.mxu0 0.0
  %6051 = vmatpush1.msra.mxu0 0.0
  %6052 = vmatprep.subr.mxu0 0.0
  %6053 = vmatpush1.msra.mxu0 0.0
  %6054 = vmatprep.subr.mxu0 0.0
  %6055 = vmatpush1.msra.mxu0 0.0
  %6056 = vmatprep.subr.mxu0 0.0
  %6057 = vmatpush1.msra.mxu0 0.0
  %6058 = vmatprep.subr.mxu0 0.0
  %6059 = vmatpush1.msra.mxu0 0.0
  %6060 = vmatprep.mubr.f32.mxu0 0.0
  %6061 = vmatmul.mubr.f32.gmra.mrb[0].mxu0 %v5992
  %v6062 = vpop.f32.mrb[0].mxu0
  %v6063 = vadd.f32 0.0, %v6062
  %v6064 = vpop.f32.mrb[0].mxu0
  %6065 = vmatprep.mubr.f32.mxu0 0.0
  %6066 = vmatmul.mubr.f32.gmra.mrb[0].mxu0 %v5994
  %v6067 = vpop.f32.mrb[0].mxu0
  %v6068 = vadd.f32 0.0, %v6067
  %v6069 = vpop.f32.mrb[0].mxu0
  %6070 = vdwg.mxu0
  %v6071 = vsel %vm5991, %v5847, 0
  %v6073 = vsel %vm5991, %v5848, 0
  %6075 = vmatprep.subr.mxu0 0.0
  %6076 = vmatpush1.msra.mxu0 %v5977
  %6077 = vmatprep.subr.mxu0 0.0
  %6078 = vmatpush1.msra.mxu0 %v5978
  %6079 = vmatprep.subr.mxu0 0.0
  %6080 = vmatpush1.msra.mxu0 0.0
  %6081 = vmatprep.subr.mxu0 0.0
  %6082 = vmatpush1.msra.mxu0 0.0
  %6083 = vmatprep.subr.mxu0 0.0
  %6084 = vmatpush1.msra.mxu0 0.0
  %6085 = vmatprep.subr.mxu0 0.0
  %6086 = vmatpush1.msra.mxu0 0.0
  %6087 = vmatprep.subr.mxu0 0.0
  %6088 = vmatpush1.msra.mxu0 0.0
  %6089 = vmatprep.subr.mxu0 0.0
  %6090 = vmatpush1.msra.mxu0 0.0
  %6091 = vmatprep.subr.mxu0 0.0
  %6092 = vmatpush1.msra.mxu0 0.0
  %6093 = vmatprep.subr.mxu0 0.0
  %6094 = vmatpush1.msra.mxu0 0.0
  %6095 = vmatprep.subr.mxu0 0.0
  %6096 = vmatpush1.msra.mxu0 0.0
  %6097 = vmatprep.subr.mxu0 0.0
  %6098 = vmatpush1.msra.mxu0 0.0
  %6099 = vmatprep.subr.mxu0 0.0
  %6100 = vmatpush1.msra.mxu0 0.0
  %6101 = vmatprep.subr.mxu0 0.0
  %6102 = vmatpush1.msra.mxu0 0.0
  %6103 = vmatprep.subr.mxu0 0.0
  %6104 = vmatpush1.msra.mxu0 0.0
  %6105 = vmatprep.subr.mxu0 0.0
  %6106 = vmatpush1.msra.mxu0 0.0
  %6107 = vmatprep.subr.mxu0 0.0
  %6108 = vmatpush1.msra.mxu0 0.0
  %6109 = vmatprep.subr.mxu0 0.0
  %6110 = vmatpush1.msra.mxu0 0.0
  %6111 = vmatprep.subr.mxu0 0.0
  %6112 = vmatpush1.msra.mxu0 0.0
  %6113 = vmatprep.subr.mxu0 0.0
  %6114 = vmatpush1.msra.mxu0 0.0
  %6115 = vmatprep.subr.mxu0 0.0
  %6116 = vmatpush1.msra.mxu0 0.0
  %6117 = vmatprep.subr.mxu0 0.0
  %6118 = vmatpush1.msra.mxu0 0.0
  %6119 = vmatprep.subr.mxu0 0.0
  %6120 = vmatpush1.msra.mxu0 0.0
  %6121 = vmatprep.subr.mxu0 0.0
  %6122 = vmatpush1.msra.mxu0 0.0
  %6123 = vmatprep.subr.mxu0 0.0
  %6124 = vmatpush1.msra.mxu0 0.0
  %6125 = vmatprep.subr.mxu0 0.0
  %6126 = vmatpush1.msra.mxu0 0.0
  %6127 = vmatprep.subr.mxu0 0.0
  %6128 = vmatpush1.msra.mxu0 0.0
  %6129 = vmatprep.subr.mxu0 0.0
  %6130 = vmatpush1.msra.mxu0 0.0
  %6131 = vmatprep.subr.mxu0 0.0
  %6132 = vmatpush1.msra.mxu0 0.0
  %6133 = vmatprep.subr.mxu0 0.0
  %6134 = vmatpush1.msra.mxu0 0.0
  %6135 = vmatprep.subr.mxu0 0.0
  %6136 = vmatpush1.msra.mxu0 0.0
  %6137 = vmatprep.subr.mxu0 0.0
  %6138 = vmatpush1.msra.mxu0 0.0
  %6139 = vmatprep.mubr.f32.mxu0 0.0
  %6140 = vmatmul.mubr.f32.gmra.mrb[0].mxu0 %v6071
  %v6141 = vpop.f32.mrb[0].mxu0
  %v6142 = vadd.f32 %v6063, %v6141
  %v6143 = vpop.f32.mrb[0].mxu0
  %6144 = vmatprep.mubr.f32.mxu0 0.0
  %6145 = vmatmul.mubr.f32.gmra.mrb[0].mxu0 %v6073
  %v6146 = vpop.f32.mrb[0].mxu0
  %v6147 = vadd.f32 %v6068, %v6146
  %v6148 = vpop.f32.mrb[0].mxu0
  %6149 = vdwg.mxu0
  %v6151 = vsel %vm5991, %v5849, 0
  %v6154 = vsel %vm5991, %v5850, 0
  %6156 = vmatprep.subr.mxu0 0.0
  %6157 = vmatpush1.msra.mxu0 %v5981
  %6158 = vmatprep.subr.mxu0 0.0
  %6159 = vmatpush1.msra.mxu0 %v5982
  %6160 = vmatprep.subr.mxu0 0.0
  %6161 = vmatpush1.msra.mxu0 0.0
  %6162 = vmatprep.subr.mxu0 0.0
  %6163 = vmatpush1.msra.mxu0 0.0
  %6164 = vmatprep.subr.mxu0 0.0
  %6165 = vmatpush1.msra.mxu0 0.0
  %6166 = vmatprep.subr.mxu0 0.0
  %6167 = vmatpush1.msra.mxu0 0.0
  %6168 = vmatprep.subr.mxu0 0.0
  %6169 = vmatpush1.msra.mxu0 0.0
  %6170 = vmatprep.subr.mxu0 0.0
  %6171 = vmatpush1.msra.mxu0 0.0
  %6172 = vmatprep.subr.mxu0 0.0
  %6173 = vmatpush1.msra.mxu0 0.0
  %6174 = vmatprep.subr.mxu0 0.0
  %6175 = vmatpush1.msra.mxu0 0.0
  %6176 = vmatprep.subr.mxu0 0.0
  %6177 = vmatpush1.msra.mxu0 0.0
  %6178 = vmatprep.subr.mxu0 0.0
  %6179 = vmatpush1.msra.mxu0 0.0
  %6180 = vmatprep.subr.mxu0 0.0
  %6181 = vmatpush1.msra.mxu0 0.0
  %6182 = vmatprep.subr.mxu0 0.0
  %6183 = vmatpush1.msra.mxu0 0.0
  %6184 = vmatprep.subr.mxu0 0.0
  %6185 = vmatpush1.msra.mxu0 0.0
  %6186 = vmatprep.subr.mxu0 0.0
  %6187 = vmatpush1.msra.mxu0 0.0
  %6188 = vmatprep.subr.mxu0 0.0
  %6189 = vmatpush1.msra.mxu0 0.0
  %6190 = vmatprep.subr.mxu0 0.0
  %6191 = vmatpush1.msra.mxu0 0.0
  %6192 = vmatprep.subr.mxu0 0.0
  %6193 = vmatpush1.msra.mxu0 0.0
  %6194 = vmatprep.subr.mxu0 0.0
  %6195 = vmatpush1.msra.mxu0 0.0
  %6196 = vmatprep.subr.mxu0 0.0
  %6197 = vmatpush1.msra.mxu0 0.0
  %6198 = vmatprep.subr.mxu0 0.0
  %6199 = vmatpush1.msra.mxu0 0.0
  %6200 = vmatprep.subr.mxu0 0.0
  %6201 = vmatpush1.msra.mxu0 0.0
  %6202 = vmatprep.subr.mxu0 0.0
  %6203 = vmatpush1.msra.mxu0 0.0
  %6204 = vmatprep.subr.mxu0 0.0
  %6205 = vmatpush1.msra.mxu0 0.0
  %6206 = vmatprep.subr.mxu0 0.0
  %6207 = vmatpush1.msra.mxu0 0.0
  %6208 = vmatprep.subr.mxu0 0.0
  %6209 = vmatpush1.msra.mxu0 0.0
  %6210 = vmatprep.subr.mxu0 0.0
  %6211 = vmatpush1.msra.mxu0 0.0
  %6212 = vmatprep.subr.mxu0 0.0
  %6213 = vmatpush1.msra.mxu0 0.0
  %6214 = vmatprep.subr.mxu0 0.0
  %6215 = vmatpush1.msra.mxu0 0.0
  %6216 = vmatprep.subr.mxu0 0.0
  %6217 = vmatpush1.msra.mxu0 0.0
  %6218 = vmatprep.subr.mxu0 0.0
  %6219 = vmatpush1.msra.mxu0 0.0
  %6220 = vmatprep.mubr.f32.mxu0 0.0
  %6221 = vmatmul.mubr.f32.gmra.mrb[0].mxu0 %v6151
  %v6222 = vpop.f32.mrb[0].mxu0
  %v6223 = vadd.f32 0.0, %v6222
  %v6224 = vpop.f32.mrb[0].mxu0
  %6225 = vmatprep.mubr.f32.mxu0 0.0
  %6226 = vmatmul.mubr.f32.gmra.mrb[0].mxu0 %v6154
  %v6227 = vpop.f32.mrb[0].mxu0
  %v6228 = vadd.f32 0.0, %v6227
  %v6229 = vpop.f32.mrb[0].mxu0
  %6230 = vdwg.mxu0
  %v6231 = vadd.f32 %v6142, %v6223
  %v6232 = vadd.f32 %v6147, %v6228
  %6233 = vrot.lane.b32.xlu0 %v5849, 112
  %v6234 = vpop.permute.xlu0 %6233
  %6235 = vrot.lane.b32.xlu0 %v5850, 112
  %v6236 = vpop.permute.xlu0 %6235
  %v6237 = vsel %vm5991, %v6234, 0
  %v6239 = vsel %vm5991, %v6236, 0
  %6241 = vmatprep.subr.mxu0 0.0
  %6242 = vmatpush1.msra.mxu0 %v5983
  %6243 = vmatprep.subr.mxu0 0.0
  %6244 = vmatpush1.msra.mxu0 %v5984
  %6245 = vmatprep.subr.mxu0 0.0
  %6246 = vmatpush1.msra.mxu0 0.0
  %6247 = vmatprep.subr.mxu0 0.0
  %6248 = vmatpush1.msra.mxu0 0.0
  %6249 = vmatprep.subr.mxu0 0.0
  %6250 = vmatpush1.msra.mxu0 0.0
  %6251 = vmatprep.subr.mxu0 0.0
  %6252 = vmatpush1.msra.mxu0 0.0
  %6253 = vmatprep.subr.mxu0 0.0
  %6254 = vmatpush1.msra.mxu0 0.0
  %6255 = vmatprep.subr.mxu0 0.0
  %6256 = vmatpush1.msra.mxu0 0.0
  %6257 = vmatprep.subr.mxu0 0.0
  %6258 = vmatpush1.msra.mxu0 0.0
  %6259 = vmatprep.subr.mxu0 0.0
  %6260 = vmatpush1.msra.mxu0 0.0
  %6261 = vmatprep.subr.mxu0 0.0
  %6262 = vmatpush1.msra.mxu0 0.0
  %6263 = vmatprep.subr.mxu0 0.0
  %6264 = vmatpush1.msra.mxu0 0.0
  %6265 = vmatprep.subr.mxu0 0.0
  %6266 = vmatpush1.msra.mxu0 0.0
  %6267 = vmatprep.subr.mxu0 0.0
  %6268 = vmatpush1.msra.mxu0 0.0
  %6269 = vmatprep.subr.mxu0 0.0
  %6270 = vmatpush1.msra.mxu0 0.0
  %6271 = vmatprep.subr.mxu0 0.0
  %6272 = vmatpush1.msra.mxu0 0.0
  %6273 = vmatprep.subr.mxu0 0.0
  %6274 = vmatpush1.msra.mxu0 0.0
  %6275 = vmatprep.subr.mxu0 0.0
  %6276 = vmatpush1.msra.mxu0 0.0
  %6277 = vmatprep.subr.mxu0 0.0
  %6278 = vmatpush1.msra.mxu0 0.0
  %6279 = vmatprep.subr.mxu0 0.0
  %6280 = vmatpush1.msra.mxu0 0.0
  %6281 = vmatprep.subr.mxu0 0.0
  %6282 = vmatpush1.msra.mxu0 0.0
  %6283 = vmatprep.subr.mxu0 0.0
  %6284 = vmatpush1.msra.mxu0 0.0
  %6285 = vmatprep.subr.mxu0 0.0
  %6286 = vmatpush1.msra.mxu0 0.0
  %6287 = vmatprep.subr.mxu0 0.0
  %6288 = vmatpush1.msra.mxu0 0.0
  %6289 = vmatprep.subr.mxu0 0.0
  %6290 = vmatpush1.msra.mxu0 0.0
  %6291 = vmatprep.subr.mxu0 0.0
  %6292 = vmatpush1.msra.mxu0 0.0
  %6293 = vmatprep.subr.mxu0 0.0
  %6294 = vmatpush1.msra.mxu0 0.0
  %6295 = vmatprep.subr.mxu0 0.0
  %6296 = vmatpush1.msra.mxu0 0.0
  %6297 = vmatprep.subr.mxu0 0.0
  %6298 = vmatpush1.msra.mxu0 0.0
  %6299 = vmatprep.subr.mxu0 0.0
  %6300 = vmatpush1.msra.mxu0 0.0
  %6301 = vmatprep.subr.mxu0 0.0
  %6302 = vmatpush1.msra.mxu0 0.0
  %6303 = vmatprep.subr.mxu0 0.0
  %6304 = vmatpush1.msra.mxu0 0.0
  %6305 = vmatprep.mubr.f32.mxu0 0.0
  %6306 = vmatmul.mubr.f32.gmra.mrb[0].mxu0 %v6237
  %v6307 = vpop.f32.mrb[0].mxu0
  %v6308 = vadd.f32 0.0, %v6307
  %v6309 = vpop.f32.mrb[0].mxu0
  %6310 = vmatprep.mubr.f32.mxu0 0.0
  %6311 = vmatmul.mubr.f32.gmra.mrb[0].mxu0 %v6239
  %v6312 = vpop.f32.mrb[0].mxu0
  %v6313 = vadd.f32 0.0, %v6312
  %v6314 = vpop.f32.mrb[0].mxu0
  %6315 = vdwg.mxu0
  %v6316 = vadd.f32 %v6231, %v6308
  %v6317 = vadd.f32 %v6232, %v6313
  %vm6318 = vcmask 523264
  %6319 = vst.msk [vmem:[%s12] sm:$0xff] %vm6318, %v6316
  %6320 = vst.msk [vmem:[%s12 + $0x8] sm:$0xff] %vm6318, %v6317
  %6323 = vrot.lane.b32.xlu0 %v5959, 48
  %v6324 = vpop.permute.xlu0 %6323
  %6325 = vrot.lane.b32.xlu0 %v5960, 48
  %v6326 = vpop.permute.xlu0 %6325
  %v6327 = vsel %vm5991, %v6324, 0
  %v6329 = vsel %vm5991, %v6326, 0
  %6331 = vmatprep.subr.mxu0 0.0
  %6332 = vmatpush1.msra.mxu0 %v5979
  %6333 = vmatprep.subr.mxu0 0.0
  %6334 = vmatpush1.msra.mxu0 %v5980
  %6335 = vmatprep.subr.mxu0 0.0
  %6336 = vmatpush1.msra.mxu0 0.0
  %6337 = vmatprep.subr.mxu0 0.0
  %6338 = vmatpush1.msra.mxu0 0.0
  %6339 = vmatprep.subr.mxu0 0.0
  %6340 = vmatpush1.msra.mxu0 0.0
  %6341 = vmatprep.subr.mxu0 0.0
  %6342 = vmatpush1.msra.mxu0 0.0
  %6343 = vmatprep.subr.mxu0 0.0
  %6344 = vmatpush1.msra.mxu0 0.0
  %6345 = vmatprep.subr.mxu0 0.0
  %6346 = vmatpush1.msra.mxu0 0.0
  %6347 = vmatprep.subr.mxu0 0.0
  %6348 = vmatpush1.msra.mxu0 0.0
  %6349 = vmatprep.subr.mxu0 0.0
  %6350 = vmatpush1.msra.mxu0 0.0
  %6351 = vmatprep.subr.mxu0 0.0
  %6352 = vmatpush1.msra.mxu0 0.0
  %6353 = vmatprep.subr.mxu0 0.0
  %6354 = vmatpush1.msra.mxu0 0.0
  %6355 = vmatprep.subr.mxu0 0.0
  %6356 = vmatpush1.msra.mxu0 0.0
  %6357 = vmatprep.subr.mxu0 0.0
  %6358 = vmatpush1.msra.mxu0 0.0
  %6359 = vmatprep.subr.mxu0 0.0
  %6360 = vmatpush1.msra.mxu0 0.0
  %6361 = vmatprep.subr.mxu0 0.0
  %6362 = vmatpush1.msra.mxu0 0.0
  %6363 = vmatprep.subr.mxu0 0.0
  %6364 = vmatpush1.msra.mxu0 0.0
  %6365 = vmatprep.subr.mxu0 0.0
  %6366 = vmatpush1.msra.mxu0 0.0
  %6367 = vmatprep.subr.mxu0 0.0
  %6368 = vmatpush1.msra.mxu0 0.0
  %6369 = vmatprep.subr.mxu0 0.0
  %6370 = vmatpush1.msra.mxu0 0.0
  %6371 = vmatprep.subr.mxu0 0.0
  %6372 = vmatpush1.msra.mxu0 0.0
  %6373 = vmatprep.subr.mxu0 0.0
  %6374 = vmatpush1.msra.mxu0 0.0
  %6375 = vmatprep.subr.mxu0 0.0
  %6376 = vmatpush1.msra.mxu0 0.0
  %6377 = vmatprep.subr.mxu0 0.0
  %6378 = vmatpush1.msra.mxu0 0.0
  %6379 = vmatprep.subr.mxu0 0.0
  %6380 = vmatpush1.msra.mxu0 0.0
  %6381 = vmatprep.subr.mxu0 0.0
  %6382 = vmatpush1.msra.mxu0 0.0
  %6383 = vmatprep.subr.mxu0 0.0
  %6384 = vmatpush1.msra.mxu0 0.0
  %6385 = vmatprep.subr.mxu0 0.0
  %6386 = vmatpush1.msra.mxu0 0.0
  %6387 = vmatprep.subr.mxu0 0.0
  %6388 = vmatpush1.msra.mxu0 0.0
  %6389 = vmatprep.subr.mxu0 0.0
  %6390 = vmatpush1.msra.mxu0 0.0
  %6391 = vmatprep.subr.mxu0 0.0
  %6392 = vmatpush1.msra.mxu0 0.0
  %6393 = vmatprep.subr.mxu0 0.0
  %6394 = vmatpush1.msra.mxu0 0.0
  %6395 = vmatprep.mubr.f32.mxu0 0.0
  %6396 = vmatmul.mubr.f32.gmra.mrb[0].mxu0 %v6327
  %v6397 = vpop.f32.mrb[0].mxu0
  %v6398 = vadd.f32 0.0, %v6397
  %v6399 = vpop.f32.mrb[0].mxu0
  %6400 = vmatprep.mubr.f32.mxu0 0.0
  %6401 = vmatmul.mubr.f32.gmra.mrb[0].mxu0 %v6329
  %v6402 = vpop.f32.mrb[0].mxu0
  %v6403 = vadd.f32 0.0, %v6402
  %v6404 = vpop.f32.mrb[0].mxu0
  %6405 = vdwg.mxu0
  %6408 = vrot.lane.b32.xlu0 %v5949, 64
  %v6409 = vpop.permute.xlu0 %6408
  %6410 = vrot.lane.b32.xlu0 %v5950, 64
  %v6411 = vpop.permute.xlu0 %6410
  %v6412 = vsel %vm5991, %v6409, 0
  %v6414 = vsel %vm5991, %v6411, 0
  %6416 = vmatprep.subr.mxu0 0.0
  %6417 = vmatpush1.msra.mxu0 %v5977
  %6418 = vmatprep.subr.mxu0 0.0
  %6419 = vmatpush1.msra.mxu0 %v5978
  %6420 = vmatprep.subr.mxu0 0.0
  %6421 = vmatpush1.msra.mxu0 0.0
  %6422 = vmatprep.subr.mxu0 0.0
  %6423 = vmatpush1.msra.mxu0 0.0
  %6424 = vmatprep.subr.mxu0 0.0
  %6425 = vmatpush1.msra.mxu0 0.0
  %6426 = vmatprep.subr.mxu0 0.0
  %6427 = vmatpush1.msra.mxu0 0.0
  %6428 = vmatprep.subr.mxu0 0.0
  %6429 = vmatpush1.msra.mxu0 0.0
  %6430 = vmatprep.subr.mxu0 0.0
  %6431 = vmatpush1.msra.mxu0 0.0
  %6432 = vmatprep.subr.mxu0 0.0
  %6433 = vmatpush1.msra.mxu0 0.0
  %6434 = vmatprep.subr.mxu0 0.0
  %6435 = vmatpush1.msra.mxu0 0.0
  %6436 = vmatprep.subr.mxu0 0.0
  %6437 = vmatpush1.msra.mxu0 0.0
  %6438 = vmatprep.subr.mxu0 0.0
  %6439 = vmatpush1.msra.mxu0 0.0
  %6440 = vmatprep.subr.mxu0 0.0
  %6441 = vmatpush1.msra.mxu0 0.0
  %6442 = vmatprep.subr.mxu0 0.0
  %6443 = vmatpush1.msra.mxu0 0.0
  %6444 = vmatprep.subr.mxu0 0.0
  %6445 = vmatpush1.msra.mxu0 0.0
  %6446 = vmatprep.subr.mxu0 0.0
  %6447 = vmatpush1.msra.mxu0 0.0
  %6448 = vmatprep.subr.mxu0 0.0
  %6449 = vmatpush1.msra.mxu0 0.0
  %6450 = vmatprep.subr.mxu0 0.0
  %6451 = vmatpush1.msra.mxu0 0.0
  %6452 = vmatprep.subr.mxu0 0.0
  %6453 = vmatpush1.msra.mxu0 0.0
  %6454 = vmatprep.subr.mxu0 0.0
  %6455 = vmatpush1.msra.mxu0 0.0
  %6456 = vmatprep.subr.mxu0 0.0
  %6457 = vmatpush1.msra.mxu0 0.0
  %6458 = vmatprep.subr.mxu0 0.0
  %6459 = vmatpush1.msra.mxu0 0.0
  %6460 = vmatprep.subr.mxu0 0.0
  %6461 = vmatpush1.msra.mxu0 0.0
  %6462 = vmatprep.subr.mxu0 0.0
  %6463 = vmatpush1.msra.mxu0 0.0
  %6464 = vmatprep.subr.mxu0 0.0
  %6465 = vmatpush1.msra.mxu0 0.0
  %6466 = vmatprep.subr.mxu0 0.0
  %6467 = vmatpush1.msra.mxu0 0.0
  %6468 = vmatprep.subr.mxu0 0.0
  %6469 = vmatpush1.msra.mxu0 0.0
  %6470 = vmatprep.subr.mxu0 0.0
  %6471 = vmatpush1.msra.mxu0 0.0
  %6472 = vmatprep.subr.mxu0 0.0
  %6473 = vmatpush1.msra.mxu0 0.0
  %6474 = vmatprep.subr.mxu0 0.0
  %6475 = vmatpush1.msra.mxu0 0.0
  %6476 = vmatprep.subr.mxu0 0.0
  %6477 = vmatpush1.msra.mxu0 0.0
  %6478 = vmatprep.subr.mxu0 0.0
  %6479 = vmatpush1.msra.mxu0 0.0
  %6480 = vmatprep.mubr.f32.mxu0 0.0
  %6481 = vmatmul.mubr.f32.gmra.mrb[0].mxu0 %v6412
  %v6482 = vpop.f32.mrb[0].mxu0
  %v6483 = vadd.f32 %v6398, %v6482
  %v6484 = vpop.f32.mrb[0].mxu0
  %6485 = vmatprep.mubr.f32.mxu0 0.0
  %6486 = vmatmul.mubr.f32.gmra.mrb[0].mxu0 %v6414
  %v6487 = vpop.f32.mrb[0].mxu0
  %v6488 = vadd.f32 %v6403, %v6487
  %v6489 = vpop.f32.mrb[0].mxu0
  %6490 = vdwg.mxu0
  %6493 = vrot.lane.b32.xlu0 %v5967, 32
  %v6494 = vpop.permute.xlu0 %6493
  %6495 = vrot.lane.b32.xlu0 %v5968, 32
  %v6496 = vpop.permute.xlu0 %6495
  %v6497 = vsel %vm5991, %v6494, 0
  %v6499 = vsel %vm5991, %v6496, 0
  %6501 = vmatprep.subr.mxu0 0.0
  %6502 = vmatpush1.msra.mxu0 %v5981
  %6503 = vmatprep.subr.mxu0 0.0
  %6504 = vmatpush1.msra.mxu0 %v5982
  %6505 = vmatprep.subr.mxu0 0.0
  %6506 = vmatpush1.msra.mxu0 0.0
  %6507 = vmatprep.subr.mxu0 0.0
  %6508 = vmatpush1.msra.mxu0 0.0
  %6509 = vmatprep.subr.mxu0 0.0
  %6510 = vmatpush1.msra.mxu0 0.0
  %6511 = vmatprep.subr.mxu0 0.0
  %6512 = vmatpush1.msra.mxu0 0.0
  %6513 = vmatprep.subr.mxu0 0.0
  %6514 = vmatpush1.msra.mxu0 0.0
  %6515 = vmatprep.subr.mxu0 0.0
  %6516 = vmatpush1.msra.mxu0 0.0
  %6517 = vmatprep.subr.mxu0 0.0
  %6518 = vmatpush1.msra.mxu0 0.0
  %6519 = vmatprep.subr.mxu0 0.0
  %6520 = vmatpush1.msra.mxu0 0.0
  %6521 = vmatprep.subr.mxu0 0.0
  %6522 = vmatpush1.msra.mxu0 0.0
  %6523 = vmatprep.subr.mxu0 0.0
  %6524 = vmatpush1.msra.mxu0 0.0
  %6525 = vmatprep.subr.mxu0 0.0
  %6526 = vmatpush1.msra.mxu0 0.0
  %6527 = vmatprep.subr.mxu0 0.0
  %6528 = vmatpush1.msra.mxu0 0.0
  %6529 = vmatprep.subr.mxu0 0.0
  %6530 = vmatpush1.msra.mxu0 0.0
  %6531 = vmatprep.subr.mxu0 0.0
  %6532 = vmatpush1.msra.mxu0 0.0
  %6533 = vmatprep.subr.mxu0 0.0
  %6534 = vmatpush1.msra.mxu0 0.0
  %6535 = vmatprep.subr.mxu0 0.0
  %6536 = vmatpush1.msra.mxu0 0.0
  %6537 = vmatprep.subr.mxu0 0.0
  %6538 = vmatpush1.msra.mxu0 0.0
  %6539 = vmatprep.subr.mxu0 0.0
  %6540 = vmatpush1.msra.mxu0 0.0
  %6541 = vmatprep.subr.mxu0 0.0
  %6542 = vmatpush1.msra.mxu0 0.0
  %6543 = vmatprep.subr.mxu0 0.0
  %6544 = vmatpush1.msra.mxu0 0.0
  %6545 = vmatprep.subr.mxu0 0.0
  %6546 = vmatpush1.msra.mxu0 0.0
  %6547 = vmatprep.subr.mxu0 0.0
  %6548 = vmatpush1.msra.mxu0 0.0
  %6549 = vmatprep.subr.mxu0 0.0
  %6550 = vmatpush1.msra.mxu0 0.0
  %6551 = vmatprep.subr.mxu0 0.0
  %6552 = vmatpush1.msra.mxu0 0.0
  %6553 = vmatprep.subr.mxu0 0.0
  %6554 = vmatpush1.msra.mxu0 0.0
  %6555 = vmatprep.subr.mxu0 0.0
  %6556 = vmatpush1.msra.mxu0 0.0
  %6557 = vmatprep.subr.mxu0 0.0
  %6558 = vmatpush1.msra.mxu0 0.0
  %6559 = vmatprep.subr.mxu0 0.0
  %6560 = vmatpush1.msra.mxu0 0.0
  %6561 = vmatprep.subr.mxu0 0.0
  %6562 = vmatpush1.msra.mxu0 0.0
  %6563 = vmatprep.subr.mxu0 0.0
  %6564 = vmatpush1.msra.mxu0 0.0
  %6565 = vmatprep.mubr.f32.mxu0 0.0
  %6566 = vmatmul.mubr.f32.gmra.mrb[0].mxu0 %v6497
  %v6567 = vpop.f32.mrb[0].mxu0
  %v6568 = vadd.f32 0.0, %v6567
  %v6569 = vpop.f32.mrb[0].mxu0
  %6570 = vmatprep.mubr.f32.mxu0 0.0
  %6571 = vmatmul.mubr.f32.gmra.mrb[0].mxu0 %v6499
  %v6572 = vpop.f32.mrb[0].mxu0
  %v6573 = vadd.f32 0.0, %v6572
  %v6574 = vpop.f32.mrb[0].mxu0
  %6575 = vdwg.mxu0
  %v6576 = vadd.f32 %v6483, %v6568
  %v6577 = vadd.f32 %v6488, %v6573
  %6580 = vrot.lane.b32.xlu0 %v5975, 16
  %v6581 = vpop.permute.xlu0 %6580
  %6582 = vrot.lane.b32.xlu0 %v5976, 16
  %v6583 = vpop.permute.xlu0 %6582
  %v6584 = vsel %vm5991, %v6581, 0
  %v6586 = vsel %vm5991, %v6583, 0
  %6588 = vmatprep.subr.mxu0 0.0
  %6589 = vmatpush1.msra.mxu0 %v5983
  %6590 = vmatprep.subr.mxu0 0.0
  %6591 = vmatpush1.msra.mxu0 %v5984
  %6592 = vmatprep.subr.mxu0 0.0
  %6593 = vmatpush1.msra.mxu0 0.0
  %6594 = vmatprep.subr.mxu0 0.0
  %6595 = vmatpush1.msra.mxu0 0.0
  %6596 = vmatprep.subr.mxu0 0.0
  %6597 = vmatpush1.msra.mxu0 0.0
  %6598 = vmatprep.subr.mxu0 0.0
  %6599 = vmatpush1.msra.mxu0 0.0
  %6600 = vmatprep.subr.mxu0 0.0
  %6601 = vmatpush1.msra.mxu0 0.0
  %6602 = vmatprep.subr.mxu0 0.0
  %6603 = vmatpush1.msra.mxu0 0.0
  %6604 = vmatprep.subr.mxu0 0.0
  %6605 = vmatpush1.msra.mxu0 0.0
  %6606 = vmatprep.subr.mxu0 0.0
  %6607 = vmatpush1.msra.mxu0 0.0
  %6608 = vmatprep.subr.mxu0 0.0
  %6609 = vmatpush1.msra.mxu0 0.0
  %6610 = vmatprep.subr.mxu0 0.0
  %6611 = vmatpush1.msra.mxu0 0.0
  %6612 = vmatprep.subr.mxu0 0.0
  %6613 = vmatpush1.msra.mxu0 0.0
  %6614 = vmatprep.subr.mxu0 0.0
  %6615 = vmatpush1.msra.mxu0 0.0
  %6616 = vmatprep.subr.mxu0 0.0
  %6617 = vmatpush1.msra.mxu0 0.0
  %6618 = vmatprep.subr.mxu0 0.0
  %6619 = vmatpush1.msra.mxu0 0.0
  %6620 = vmatprep.subr.mxu0 0.0
  %6621 = vmatpush1.msra.mxu0 0.0
  %6622 = vmatprep.subr.mxu0 0.0
  %6623 = vmatpush1.msra.mxu0 0.0
  %6624 = vmatprep.subr.mxu0 0.0
  %6625 = vmatpush1.msra.mxu0 0.0
  %6626 = vmatprep.subr.mxu0 0.0
  %6627 = vmatpush1.msra.mxu0 0.0
  %6628 = vmatprep.subr.mxu0 0.0
  %6629 = vmatpush1.msra.mxu0 0.0
  %6630 = vmatprep.subr.mxu0 0.0
  %6631 = vmatpush1.msra.mxu0 0.0
  %6632 = vmatprep.subr.mxu0 0.0
  %6633 = vmatpush1.msra.mxu0 0.0
  %6634 = vmatprep.subr.mxu0 0.0
  %6635 = vmatpush1.msra.mxu0 0.0
  %6636 = vmatprep.subr.mxu0 0.0
  %6637 = vmatpush1.msra.mxu0 0.0
  %6638 = vmatprep.subr.mxu0 0.0
  %6639 = vmatpush1.msra.mxu0 0.0
  %6640 = vmatprep.subr.mxu0 0.0
  %6641 = vmatpush1.msra.mxu0 0.0
  %6642 = vmatprep.subr.mxu0 0.0
  %6643 = vmatpush1.msra.mxu0 0.0
  %6644 = vmatprep.subr.mxu0 0.0
  %6645 = vmatpush1.msra.mxu0 0.0
  %6646 = vmatprep.subr.mxu0 0.0
  %6647 = vmatpush1.msra.mxu0 0.0
  %6648 = vmatprep.subr.mxu0 0.0
  %6649 = vmatpush1.msra.mxu0 0.0
  %6650 = vmatprep.subr.mxu0 0.0
  %6651 = vmatpush1.msra.mxu0 0.0
  %6652 = vmatprep.mubr.f32.mxu0 0.0
  %6653 = vmatmul.mubr.f32.gmra.mrb[0].mxu0 %v6584
  %v6654 = vpop.f32.mrb[0].mxu0
  %v6655 = vadd.f32 0.0, %v6654
  %v6656 = vpop.f32.mrb[0].mxu0
  %6657 = vmatprep.mubr.f32.mxu0 0.0
  %6658 = vmatmul.mubr.f32.gmra.mrb[0].mxu0 %v6586
  %v6659 = vpop.f32.mrb[0].mxu0
  %v6660 = vadd.f32 0.0, %v6659
  %v6661 = vpop.f32.mrb[0].mxu0
  %6662 = vdwg.mxu0
  %v6663 = vadd.f32 %v6576, %v6655
  %v6664 = vadd.f32 %v6577, %v6660
  %6665 = vst.msk [vmem:[%s13] sm:$0xff] %vm6318, %v6663
  %6666 = vst.msk [vmem:[%s13 + $0x8] sm:$0xff] %vm6318, %v6664
  // Predicated region
  $region50: #{torchscript_part_forward.1} parent=0 // pred_check
    _
  $region51: #{torchscript_part_forward.1} parent=0 // pred_check_branch
    %6668 = sbr.rel (0) target = $region53
  $region52: #{torchscript_part_forward.1} parent=0 // pred_region
    _
  $region53: #{torchscript_part_forward.1} parent=0 // pred_fallthru
    _
  // Predicated region
  $region54: #{torchscript_part_forward.1} parent=0 // pred_check
    _
  $region55: #{torchscript_part_forward.1} parent=0 // pred_check_branch
    %6670 = sbr.rel (0) target = $region57
  $region56: #{torchscript_part_forward.1} parent=0 // pred_region
    _
  $region57: #{torchscript_part_forward.1} parent=0 // pred_fallthru
    _
  // Predicated region
  $region58: #{torchscript_part_forward.1} parent=0 // pred_check
    _
  $region59: #{torchscript_part_forward.1} parent=0 // pred_check_branch
    %6672 = sbr.rel (0) target = $region61
  $region60: #{torchscript_part_forward.1} parent=0 // pred_region
    _
  $region61: #{torchscript_part_forward.1} parent=0 // pred_fallthru
    _
  // Predicated region
  $region62: #{torchscript_part_forward.1} parent=0 // pred_check
    _
  $region63: #{torchscript_part_forward.1} parent=0 // pred_check_branch
    %6674 = sbr.rel (0) target = $region65
  $region64: #{torchscript_part_forward.1} parent=0 // pred_region
    _
  $region65: #{torchscript_part_forward.1} parent=0 // pred_fallthru
    _

</llo_original>
